<compile_context>
chip_gen: v7x
topology: tpu7x:2x2x1
jax: 0.10.0
libtpu: 0.0.40
codegen_flags: <defaults>
</compile_context>

<pallas_src>
import math
from functools import partial

import jax
import jax.numpy as jnp
from jax import lax
from jax.experimental import pallas as pl
from jax.experimental.pallas import tpu as pltpu

# ----- scaled-down constants (original values in comments) -----
FEATURE_DIM = 128          # orig 384
HEADS = 8                  # orig 8
HEAD_DIM = FEATURE_DIM // HEADS
SPATIAL = 8                # orig 37
SEQ = SPATIAL * SPATIAL    # orig 1369
ENCODED_DIM = 32           # encoded_dim
DISPARITY_CHANNELS = 1
DISP_SIZE = 32             # initial disparity spatial size (orig 518)
OUT_SIZE = 32              # final F.interpolate target size (orig 518)
NUM_LEVELS = 4             # forward indexes combined_features[3]


def _round_up(x, m):
    return ((x + m - 1) // m) * m


def _compiler_params(sem, est_bytes):
    # Explicit scoped-VMEM budget from (rough) block footprints, clamped so it
    # always stays within v7x's 64 MiB physical VMEM.
    limit = int(min(max(est_bytes, 16 * 2**20), 64 * 2**20))
    return pltpu.CompilerParams(dimension_semantics=sem, vmem_limit_bytes=limit)


# ======================================================================
# Kernel 1: fused multi-head cross-attention.
#   grid = (B, query-tiles); K/V projected once per batch into VMEM scratch
#   (head-major, no lane-misaligned slicing); heads iterated with fori_loop so
#   only one score matrix is live; bf16 MXU inputs, f32 accumulation.
# ======================================================================
def _mha_kernel(xq_ref, xkv_ref, wq_ref, wk_ref, wv_ref,
                bq_ref, bk_ref, bv_ref, wo_ref, bo_ref,
                o_ref, k_sc, v_sc, *, heads, head_dim):
    qt = pl.program_id(1)
    tq, d = xq_ref.shape[1], xq_ref.shape[2]

    # Project K/V for all heads once per batch element (qt == 0), head-major.
    @pl.when(qt == 0)
    def _():
        xkv_bf = xkv_ref[0].astype(jnp.bfloat16)            # (N, D)

        def kv_body(h, carry):
            k_h = jnp.dot(xkv_bf, wk_ref[h],
                          preferred_element_type=jnp.float32) + bk_ref[h]
            v_h = jnp.dot(xkv_bf, wv_ref[h],
                          preferred_element_type=jnp.float32) + bv_ref[h]
            k_sc[h] = k_h.astype(jnp.bfloat16)
            v_sc[h] = v_h.astype(jnp.bfloat16)
            return carry

        lax.fori_loop(0, heads, kv_body, 0)

    xq_bf = xq_ref[0].astype(jnp.bfloat16)                  # (TQ, D)
    scale = 1.0 / math.sqrt(head_dim)

    def head_body(h, acc):
        q_h = (jnp.dot(xq_bf, wq_ref[h], preferred_element_type=jnp.float32)
               + bq_ref[h]) * scale                         # (TQ, Hd) f32
        s = lax.dot_general(q_h.astype(jnp.bfloat16), k_sc[h],
                            (((1,), (1,)), ((), ())),
                            preferred_element_type=jnp.float32)   # (TQ, N)
        s = s - jnp.max(s, axis=-1, keepdims=True)
        p = jnp.exp(s)
        p = p * pl.reciprocal(jnp.sum(p, axis=-1, keepdims=True), approx=True)
        o_h = jnp.dot(p.astype(jnp.bfloat16), v_sc[h],
                      preferred_element_type=jnp.float32)   # (TQ, Hd)
        return acc + jnp.dot(o_h.astype(jnp.bfloat16), wo_ref[h],
                             preferred_element_type=jnp.float32)  # (TQ, D)

    out = lax.fori_loop(0, heads, head_body, jnp.zeros((tq, d), jnp.float32))
    out = out + bo_ref[...]
    o_ref[0] = out.astype(o_ref.dtype)


def _pick_q_tile(n):
    for t in (512, 256, 128):
        if n % t == 0:
            return t
    return n   # e.g. 1369 = 37^2 at original scale -> single full tile


def mha_pallas(xq, xkv, p):
    B, N, D = xq.shape
    H, Hd = HEADS, HEAD_DIM
    TQ = _pick_q_tile(N)
    QT = N // TQ

    est = (2 * (TQ * D * 4 + N * D * 4)                         # activations
           + 2 * (4 * H * D * Hd * 2 + 3 * H * Hd * 4 + D * 4)  # weights/biases
           + 2 * H * N * 128 * 2                                # k/v scratch (lane-padded)
           + 2 * TQ * D * 4                                     # output
           + 4 * TQ * N * 4 + 2 * TQ * D * 4)                   # in-kernel temps

    full3 = lambda b, q: (0, 0, 0)
    return pl.pallas_call(
        partial(_mha_kernel, heads=H, head_dim=Hd),
        out_shape=jax.ShapeDtypeStruct((B, N, D), xq.dtype),
        grid=(B, QT),
        in_specs=[
            pl.BlockSpec((1, TQ, D), lambda b, q: (b, q, 0)),   # queries (tiled)
            pl.BlockSpec((1, N, D), lambda b, q: (b, 0, 0)),    # keys/values (resident)
            pl.BlockSpec((H, D, Hd), full3),                    # wq (bf16, head-major)
            pl.BlockSpec((H, D, Hd), full3),                    # wk
            pl.BlockSpec((H, D, Hd), full3),                    # wv
            pl.BlockSpec((H, 1, Hd), full3),                    # bq
            pl.BlockSpec((H, 1, Hd), full3),                    # bk
            pl.BlockSpec((H, 1, Hd), full3),                    # bv
            pl.BlockSpec((H, Hd, D), full3),                    # wo (bf16, head-major)
            pl.BlockSpec((1, D), lambda b, q: (0, 0)),          # bo
        ],
        out_specs=pl.BlockSpec((1, TQ, D), lambda b, q: (b, q, 0)),
        scratch_shapes=[pltpu.VMEM((H, N, Hd), jnp.bfloat16),
                        pltpu.VMEM((H, N, Hd), jnp.bfloat16)],
        compiler_params=_compiler_params(("parallel", "arbitrary"), est),
    )(xq, xkv, p["wq_h"], p["wk_h"], p["wv_h"],
      p["bq_h"], p["bk_h"], p["bv_h"], p["wo_h"], p["bo"])


# ======================================================================
# Kernel 2: tiled GEMM + bias (+ ReLU) with lane-dense (Cout, M) output.
#   Used for the FeatureEncoder convs via im2col (bf16 operands).
# ======================================================================
def _gemm_bias_kernel(w_ref, x_ref, b_ref, o_ref, *, relu):
    acc = jnp.dot(w_ref[...], x_ref[...], preferred_element_type=jnp.float32)
    acc = acc + b_ref[...]
    if relu:
        acc = jnp.maximum(acc, 0.0)
    o_ref[...] = acc.astype(o_ref.dtype)


def _im2col(x, k, stride, pad):
    # pure indexing / reshapes (host glue); the matmul hot path is in the kernel.
    B, C, H, W = x.shape
    Ho = (H + 2 * pad - k) // stride + 1
    Wo = (W + 2 * pad - k) // stride + 1
    xp = jnp.pad(x, ((0, 0), (0, 0), (pad, pad), (pad, pad)))
    cols = []
    for di in range(k):
        for dj in range(k):
            cols.append(xp[:, :,
                           di:di + stride * (Ho - 1) + 1:stride,
                           dj:dj + stride * (Wo - 1) + 1:stride])
    cols = jnp.stack(cols, axis=2)                           # (B, C, k*k, Ho, Wo)
    cols = cols.transpose(0, 3, 4, 1, 2).reshape(B * Ho * Wo, C * k * k)
    return cols, Ho, Wo


def conv2d_gemm_pallas(x, w, b, stride, relu):
    """PyTorch Conv2d(k=3, padding=1) semantics, NCHW, via im2col + tiled GEMM."""
    B = x.shape[0]
    Cout = w.shape[0]
    cols, Ho, Wo = _im2col(x, 3, stride, 1)                  # (M, K) f32
    M, K = cols.shape
    TM = min(512, _round_up(M, 128))
    Mpad = _round_up(M, TM)
    cols_t = jnp.pad(cols.T.astype(jnp.bfloat16), ((0, 0), (0, Mpad - M)))
    wmat = w.reshape(Cout, -1).astype(jnp.bfloat16)          # (Cout, K)
    bias = b.reshape(Cout, 1)

    est = 2 * (Cout * K * 2 + K * TM * 2 + Cout * TM * 4 + Cout * 4) + 2 * Cout * TM * 4
    out = pl.pallas_call(
        partial(_gemm_bias_kernel, relu=relu),
        out_shape=jax.ShapeDtypeStruct((Cout, Mpad), jnp.float32),
        grid=(Mpad // TM,),
        in_specs=[
            pl.BlockSpec((Cout, K), lambda m: (0, 0)),       # weights resident
            pl.BlockSpec((K, TM), lambda m: (0, m)),         # im2col tile
            pl.BlockSpec((Cout, 1), lambda m: (0, 0)),
        ],
        out_specs=pl.BlockSpec((Cout, TM), lambda m: (0, m)),  # lane-dense output
        compiler_params=_compiler_params(("parallel",), est),
    )(wmat, cols_t, bias)
    return out[:, :M].reshape(Cout, B, Ho, Wo).transpose(1, 0, 2, 3)


# ======================================================================
# Kernel 3: FiLM (global avg pool + linear + scale/shift) fused with the
#           0.5x bilinear downsample (two MXU matmuls).
# ======================================================================
def _film_resize_kernel(e_ref, wft_ref, bf_ref, d_ref, wy_ref, wxt_ref, o_ref, *, cd):
    he, we = e_ref.shape[2], e_ref.shape[3]
    e = e_ref[...]                                            # (1, Cenc, he, we)
    pooled = jnp.sum(jnp.sum(e, axis=3), axis=2) * (1.0 / (he * we))  # (1, Cenc)
    ss = jnp.dot(pooled, wft_ref[...],
                 preferred_element_type=jnp.float32) + bf_ref[...]    # (1, 2*cd)
    for c in range(cd):                                       # static, cd == 1 here
        scale = ss[:, c:c + 1]                                # (1, 1)
        shift = ss[:, cd + c:cd + c + 1]
        mod = d_ref[0, c] * scale + shift                     # (H, W)
        tmp = jnp.dot(wy_ref[...], mod, preferred_element_type=jnp.float32)
        o_ref[0, c] = jnp.dot(tmp, wxt_ref[...],
                              preferred_element_type=jnp.float32)


def film_resize_pallas(encoded, film_w, film_b, disparity):
    B, Cenc, he, we = encoded.shape
    _, Cd, H, W = disparity.shape
    Ho, Wo = H // 2, W // 2                                   # F.interpolate(scale=0.5)
    wft = film_w.T                                            # (Cenc, 2*Cd)
    bf = film_b.reshape(1, 2 * Cd)
    wy = _bilinear_matrix(Ho, H)
    wxt = _bilinear_matrix(Wo, W).T
    est = (2 * 4 * (Cenc * he * we + Cenc * 2 * Cd + 2 * Cd + Cd * H * W
                    + Ho * H + W * Wo + Cd * Ho * Wo)
           + 4 * (H * W + Ho * W))
    return pl.pallas_call(
        partial(_film_resize_kernel, cd=Cd),
        out_shape=jax.ShapeDtypeStruct((B, Cd, Ho, Wo), jnp.float32),
        grid=(B,),
        in_specs=[
            pl.BlockSpec((1, Cenc, he, we), lambda b: (b, 0, 0, 0)),
            pl.BlockSpec((Cenc, 2 * Cd), lambda b: (0, 0)),
            pl.BlockSpec((1, 2 * Cd), lambda b: (0, 0)),
            pl.BlockSpec((1, Cd, H, W), lambda b: (b, 0, 0, 0)),
            pl.BlockSpec((Ho, H), lambda b: (0, 0)),
            pl.BlockSpec((W, Wo), lambda b: (0, 0)),
        ],
        out_specs=pl.BlockSpec((1, Cd, Ho, Wo), lambda b: (b, 0, 0, 0)),
        compiler_params=_compiler_params(("parallel",), est),
    )(encoded, wft, bf, disparity, wy, wxt)


# ======================================================================
# Kernel 4: stand-in refinement net — two 1->1 channel 3x3 convs (pad=1) with
#           a ReLU in between, implemented as a fused direct VPU stencil
#           (9 shifted multiply-adds per conv, weights in SMEM, no im2col).
# ======================================================================
def _double_stencil_kernel(x_ref, w1_ref, b1_ref, w2_ref, b2_ref, o_ref, *, h, w):
    xp = x_ref[0, 0]                                          # (h+4, w+4), pad-by-2
    # conv1 evaluated on the 1-pixel-extended domain [0, h+2) x [0, w+2)
    acc1 = jnp.full((h + 2, w + 2), b1_ref[0], jnp.float32)
    for di in range(3):
        for dj in range(3):
            acc1 = acc1 + w1_ref[di * 3 + dj] * xp[di:di + h + 2, dj:dj + w + 2]
    acc1 = jnp.maximum(acc1, 0.0)
    # emulate zero-padding of the intermediate: zero the outer ring
    row = lax.broadcasted_iota(jnp.int32, (h + 2, w + 2), 0)
    col = lax.broadcasted_iota(jnp.int32, (h + 2, w + 2), 1)
    interior = (row >= 1) & (row <= h) & (col >= 1) & (col <= w)
    acc1 = jnp.where(interior, acc1, 0.0)
    # conv2 on the zero-padded ReLU output
    acc2 = jnp.full((h, w), b2_ref[0], jnp.float32)
    for di in range(3):
        for dj in range(3):
            acc2 = acc2 + w2_ref[di * 3 + dj] * acc1[di:di + h, dj:dj + w]
    o_ref[0, 0] = acc2.astype(o_ref.dtype)


def refine_stencil_pallas(x, w1, b1, w2, b2):
    B, C, H, W = x.shape
    assert C == 1
    xp = jnp.pad(x, ((0, 0), (0, 0), (2, 2), (2, 2)))
    est = 2 * 4 * ((H + 4) * (W + 4) + H * W) + 4 * 4 * (H + 2) * (W + 2)
    return pl.pallas_call(
        partial(_double_stencil_kernel, h=H, w=W),
        out_shape=jax.ShapeDtypeStruct((B, 1, H, W), jnp.float32),
        grid=(B,),
        in_specs=[
            pl.BlockSpec((1, 1, H + 4, W + 4), lambda b: (b, 0, 0, 0)),
            pl.BlockSpec(memory_space=pltpu.MemorySpace.SMEM),
            pl.BlockSpec(memory_space=pltpu.MemorySpace.SMEM),
            pl.BlockSpec(memory_space=pltpu.MemorySpace.SMEM),
            pl.BlockSpec(memory_space=pltpu.MemorySpace.SMEM),
        ],
        out_specs=pl.BlockSpec((1, 1, H, W), lambda b: (b, 0, 0, 0)),
        compiler_params=_compiler_params(("parallel",), est),
    )(xp, w1, b1, w2, b2)


# ======================================================================
# Kernel 5: bilinear upsample (align_corners=False) as two MXU matmuls, fused
#           with the residual add and the final squeeze(1).
# ======================================================================
def _resize_add_kernel(x_ref, wy_ref, wxt_ref, base_ref, o_ref):
    img = x_ref[0, 0]                                         # (Hi, Wi)
    tmp = jnp.dot(wy_ref[...], img, preferred_element_type=jnp.float32)
    up = jnp.dot(tmp, wxt_ref[...], preferred_element_type=jnp.float32)
    o_ref[0] = (up + base_ref[0, 0]).astype(o_ref.dtype)


def _bilinear_matrix(out_size, in_size):
    # PyTorch align_corners=False source-index convention (host-side glue).
    scale = in_size / out_size
    o = jnp.arange(out_size, dtype=jnp.float32)
    src = jnp.maximum((o + 0.5) * scale - 0.5, 0.0)
    x0 = jnp.minimum(jnp.floor(src), in_size - 1).astype(jnp.int32)
    x1 = jnp.minimum(x0 + 1, in_size - 1)
    w1 = src - x0.astype(jnp.float32)
    w0 = 1.0 - w1
    eye = jnp.eye(in_size, dtype=jnp.float32)
    return w0[:, None] * eye[x0] + w1[:, None] * eye[x1]      # (out, in)


def resize_add_pallas(x, base, out_hw):
    B, C, Hi, Wi = x.shape
    assert C == 1   # TODO(synk): reference squeeze(1) implies 1 disparity channel
    Ho, Wo = out_hw
    wy = _bilinear_matrix(Ho, Hi)
    wxt = _bilinear_matrix(Wo, Wi).T
    est = 2 * 4 * (Hi * Wi + Ho * Hi + Wi * Wo + 2 * Ho * Wo) + 4 * Ho * Wi
    return pl.pallas_call(
        _resize_add_kernel,
        out_shape=jax.ShapeDtypeStruct((B, Ho, Wo), jnp.float32),
        grid=(B,),
        in_specs=[
            pl.BlockSpec((1, 1, Hi, Wi), lambda b: (b, 0, 0, 0)),
            pl.BlockSpec((Ho, Hi), lambda b: (0, 0)),
            pl.BlockSpec((Wi, Wo), lambda b: (0, 0)),
            pl.BlockSpec((1, 1, Ho, Wo), lambda b: (b, 0, 0, 0)),
        ],
        out_specs=pl.BlockSpec((1, Ho, Wo), lambda b: (b, 0, 0)),
        compiler_params=_compiler_params(("parallel",), est),
    )(x, wy, wxt, base)


# ======================================================================
# Parameter initialization (mirrors the PyTorch init scheme of the module)
# ======================================================================
def _xavier(k, shape):
    bound = math.sqrt(6.0 / (shape[0] + shape[1]))
    return jax.random.uniform(k, shape, jnp.float32, -bound, bound)


def _kaiming(k, shape):
    # nn.init.kaiming_uniform_(w, nonlinearity='relu') => bound = sqrt(6 / fan_in)
    fan_in = shape[1] * shape[2] * shape[3]
    bound = math.sqrt(6.0 / fan_in)
    return jax.random.uniform(k, shape, jnp.float32, -bound, bound)


def init_params(key):
    D, H, Hd = FEATURE_DIM, HEADS, HEAD_DIM
    ks = jax.random.split(key, 8)
    in_proj_w = _xavier(ks[0], (3 * D, D))    # nn.MultiheadAttention in_proj_weight
    out_proj_w = _xavier(ks[1], (D, D))

    def head_major_in(w_block):               # (D_out, D_in) -> (H, D_in, Hd)
        return w_block.T.reshape(D, H, Hd).transpose(1, 0, 2)

    return {
        # MultiheadAttention weights, pre-split per head, bf16 for the MXU.
        "wq_h": head_major_in(in_proj_w[0 * D:1 * D]).astype(jnp.bfloat16),
        "wk_h": head_major_in(in_proj_w[1 * D:2 * D]).astype(jnp.bfloat16),
        "wv_h": head_major_in(in_proj_w[2 * D:3 * D]).astype(jnp.bfloat16),
        "bq_h": jnp.zeros((H, 1, Hd), jnp.float32),
        "bk_h": jnp.zeros((H, 1, Hd), jnp.float32),
        "bv_h": jnp.zeros((H, 1, Hd), jnp.float32),
        "wo_h": out_proj_w.T.reshape(H, Hd, D).astype(jnp.bfloat16),
        "bo": jnp.zeros((1, D), jnp.float32),
        # FeatureEncoder
        "conv1_w": _kaiming(ks[2], (D // 2, D, 3, 3)),
        "conv1_b": jnp.zeros((D // 2,), jnp.float32),
        "conv2_w": _kaiming(ks[3], (ENCODED_DIM, D // 2, 3, 3)),
        "conv2_b": jnp.zeros((ENCODED_DIM,), jnp.float32),
        # FiLM linear (PyTorch layout: (2*Cd, encoded_dim))
        "film_w": _xavier(ks[4], (2 * DISPARITY_CHANNELS, ENCODED_DIM)),
        "film_b": jnp.zeros((2 * DISPARITY_CHANNELS,), jnp.float32),
        # Stand-in refinement net (see TODO in forward), flattened 3x3 stencils
        "u1_w": _kaiming(ks[5], (1, 1, 3, 3)).reshape(9),
        "u1_b": jnp.zeros((1,), jnp.float32),
        "u2_w": _kaiming(ks[6], (1, 1, 3, 3)).reshape(9),
        "u2_b": jnp.zeros((1,), jnp.float32),
    }


# ======================================================================
# PPSNet_Refinement.forward
# ======================================================================
def ppsnet_refinement_forward(features_rgb, features_colored_dot_product,
                              initial_disparity, params):
    # The reference loops over all feature levels, but only combined_features[3]
    # feeds the rest of the graph and combined_features is never returned, so
    # levels 0-2 (and the dummy cls tokens) are dead work and are elided.
    fm1 = features_rgb[3][0]
    fm2 = features_colored_dot_product[3][0]
    attn = mha_pallas(fm1, fm2, params)                       # (B, SEQ, D)

    # Raw reshape exactly as in the reference: `.reshape(-1, 384, 37, 37)`.
    x = attn.reshape(-1, FEATURE_DIM, SPATIAL, SPATIAL)

    # FeatureEncoder: two stride-2 3x3 convs + ReLU (im2col + tiled bf16 GEMM).
    e = conv2d_gemm_pallas(x, params["conv1_w"], params["conv1_b"], stride=2, relu=True)
    e = conv2d_gemm_pallas(e, params["conv2_w"], params["conv2_b"], stride=2, relu=True)

    # FiLM modulation fused with F.interpolate(scale_factor=0.5, bilinear).
    mod = film_resize_pallas(e, params["film_w"], params["film_b"], initial_disparity)

    # TODO(synk): the reference `UNet` class is not provided in the module
    # source; a minimal 2-layer 3x3 conv refinement (ReLU between) is used as a
    # stand-in, implemented as a fused direct VPU stencil kernel.
    r = refine_stencil_pallas(mod, params["u1_w"], params["u1_b"],
                              params["u2_w"], params["u2_b"])

    # F.interpolate(size=(OUT,OUT), bilinear) + residual add + squeeze(1), fused.
    return resize_add_pallas(r, initial_disparity, (OUT_SIZE, OUT_SIZE))


# ======================================================================
if __name__ == "__main__":
    key = jax.random.PRNGKey(0)
    pkey, dkey = jax.random.split(key)
    params = init_params(pkey)

    B = 2
    keys = jax.random.split(dkey, 2 * NUM_LEVELS + 1)
    features_rgb, features_cdp = [], []
    for i in range(NUM_LEVELS):
        fm1 = jax.random.normal(keys[2 * i], (B, SEQ, FEATURE_DIM), jnp.float32)
        fm2 = jax.random.normal(keys[2 * i + 1], (B, SEQ, FEATURE_DIM), jnp.float32)
        cls = jnp.zeros((B, 1, FEATURE_DIM), jnp.float32)
        features_rgb.append((fm1, cls))
        features_cdp.append((fm2, cls))
    initial_disparity = jax.random.normal(
        keys[-1], (B, DISPARITY_CHANNELS, DISP_SIZE, DISP_SIZE), jnp.float32)

    fwd = jax.jit(ppsnet_refinement_forward)
    out = fwd(features_rgb, features_cdp, initial_disparity, params)
    out = jax.block_until_ready(out)
    assert out.shape == (B, OUT_SIZE, OUT_SIZE), out.shape
    assert bool(jnp.all(jnp.isfinite(out)))
    print("KERNEL_OK")
</pallas_src>

<mosaic_0001>
module attributes {stable_mosaic.version = 11 : i64} {
  func.func @_mha_kernel(%arg0: i32, %arg1: i32, %arg2: memref<1x64x128xf32, #tpu.memory_space<vmem>>, %arg3: memref<1x64x128xf32, #tpu.memory_space<vmem>>, %arg4: memref<8x128x16xbf16, #tpu.memory_space<vmem>>, %arg5: memref<8x128x16xbf16, #tpu.memory_space<vmem>>, %arg6: memref<8x128x16xbf16, #tpu.memory_space<vmem>>, %arg7: memref<8x1x16xf32, #tpu.memory_space<vmem>>, %arg8: memref<8x1x16xf32, #tpu.memory_space<vmem>>, %arg9: memref<8x1x16xf32, #tpu.memory_space<vmem>>, %arg10: memref<8x16x128xbf16, #tpu.memory_space<vmem>>, %arg11: memref<1x128xf32, #tpu.memory_space<vmem>>, %arg12: memref<1x64x128xf32, #tpu.memory_space<vmem>>, %arg13: memref<8x64x16xbf16, #tpu.memory_space<vmem>>, %arg14: memref<8x64x16xbf16, #tpu.memory_space<vmem>>) attributes {dimension_semantics = [#tpu.dimension_semantics<parallel>, #tpu.dimension_semantics<arbitrary>], iteration_bounds = array<i64: 2, 1>, scalar_prefetch = 0 : i64, scratch_operands = 2 : i64, tpu.core_type = #tpu.core_type<tc>, window_params = [{transform_indices = @transform_0, window_bounds = array<i64: 1, 64, 128>}, {transform_indices = @transform_1, window_bounds = array<i64: 1, 64, 128>}, {pipeline_mode = #tpu.pipeline_mode<synchronous>, transform_indices = @transform_2, window_bounds = array<i64: 8, 128, 16>}, {pipeline_mode = #tpu.pipeline_mode<synchronous>, transform_indices = @transform_3, window_bounds = array<i64: 8, 128, 16>}, {pipeline_mode = #tpu.pipeline_mode<synchronous>, transform_indices = @transform_4, window_bounds = array<i64: 8, 128, 16>}, {pipeline_mode = #tpu.pipeline_mode<synchronous>, transform_indices = @transform_5, window_bounds = array<i64: 8, 1, 16>}, {pipeline_mode = #tpu.pipeline_mode<synchronous>, transform_indices = @transform_6, window_bounds = array<i64: 8, 1, 16>}, {pipeline_mode = #tpu.pipeline_mode<synchronous>, transform_indices = @transform_7, window_bounds = array<i64: 8, 1, 16>}, {pipeline_mode = #tpu.pipeline_mode<synchronous>, transform_indices = @transform_8, window_bounds = array<i64: 8, 16, 128>}, {pipeline_mode = #tpu.pipeline_mode<synchronous>, transform_indices = @transform_9, window_bounds = array<i64: 1, 128>}, {transform_indices = @transform_10, window_bounds = array<i64: 1, 64, 128>}]} {
    %c0_i32 = arith.constant 0 : i32
    %0 = arith.cmpi eq, %arg1, %c0_i32 : i32
    %1 = arith.extui %0 : i1 to i32
    %c0_i32_0 = arith.constant 0 : i32
    %2 = arith.cmpi ne, %1, %c0_i32_0 : i32
    scf.if %2 {
      %c0_10 = arith.constant 0 : index
      %c0_11 = arith.constant 0 : index
      %c0_12 = arith.constant 0 : index
      %15 = vector.load %arg3[%c0_10, %c0_11, %c0_12] : memref<1x64x128xf32, #tpu.memory_space<vmem>>, vector<1x64x128xf32>
      %16 = vector.shape_cast %15 : vector<1x64x128xf32> to vector<64x128xf32>
      %17 = arith.truncf %16 : vector<64x128xf32> to vector<64x128xbf16>
      %c0_i32_13 = arith.constant 0 : i32
      %c8_i32_14 = arith.constant 8 : i32
      %18 = arith.addi %c0_i32_13, %c8_i32_14 : i32
      %c1_i32_15 = arith.constant 1 : i32
      scf.for %arg15 = %c0_i32_13 to %18 step %c1_i32_15  : i32 {
        %19 = arith.index_cast %arg15 : i32 to index
        %c0_17 = arith.constant 0 : index
        %c0_18 = arith.constant 0 : index
        %20 = vector.load %arg5[%19, %c0_17, %c0_18] : memref<8x128x16xbf16, #tpu.memory_space<vmem>>, vector<1x128x16xbf16>
        %21 = vector.shape_cast %20 : vector<1x128x16xbf16> to vector<128x16xbf16>
        %cst_19 = arith.constant dense<0.000000e+00> : vector<64x16xf32>
        %22 = tpu.matmul %17, %21, %cst_19 {dimension_numbers = #tpu.dot_dimension_numbers<[1], [0], [0], [1], [0, 0, 1, 1], [], []>} : vector<64x128xbf16>, vector<128x16xbf16>, vector<64x16xf32> -> vector<64x16xf32>
        %23 = arith.index_cast %arg15 : i32 to index
        %c0_20 = arith.constant 0 : index
        %c0_21 = arith.constant 0 : index
        %24 = vector.load %arg8[%23, %c0_20, %c0_21] : memref<8x1x16xf32, #tpu.memory_space<vmem>>, vector<1x1x16xf32>
        %25 = vector.shape_cast %24 : vector<1x1x16xf32> to vector<1x16xf32>
        %26 = vector.broadcast %25 : vector<1x16xf32> to vector<64x16xf32>
        %27 = arith.addf %22, %26 : vector<64x16xf32>
        %28 = arith.index_cast %arg15 : i32 to index
        %c0_22 = arith.constant 0 : index
        %c0_23 = arith.constant 0 : index
        %29 = vector.load %arg6[%28, %c0_22, %c0_23] : memref<8x128x16xbf16, #tpu.memory_space<vmem>>, vector<1x128x16xbf16>
        %30 = vector.shape_cast %29 : vector<1x128x16xbf16> to vector<128x16xbf16>
        %cst_24 = arith.constant dense<0.000000e+00> : vector<64x16xf32>
        %31 = tpu.matmul %17, %30, %cst_24 {dimension_numbers = #tpu.dot_dimension_numbers<[1], [0], [0], [1], [0, 0, 1, 1], [], []>} : vector<64x128xbf16>, vector<128x16xbf16>, vector<64x16xf32> -> vector<64x16xf32>
        %32 = arith.index_cast %arg15 : i32 to index
        %c0_25 = arith.constant 0 : index
        %c0_26 = arith.constant 0 : index
        %33 = vector.load %arg9[%32, %c0_25, %c0_26] : memref<8x1x16xf32, #tpu.memory_space<vmem>>, vector<1x1x16xf32>
        %34 = vector.shape_cast %33 : vector<1x1x16xf32> to vector<1x16xf32>
        %35 = vector.broadcast %34 : vector<1x16xf32> to vector<64x16xf32>
        %36 = arith.addf %31, %35 : vector<64x16xf32>
        %37 = arith.truncf %27 : vector<64x16xf32> to vector<64x16xbf16>
        %38 = arith.index_cast %arg15 : i32 to index
        %c0_27 = arith.constant 0 : index
        %c0_28 = arith.constant 0 : index
        %39 = vector.load %arg13[%38, %c0_27, %c0_28] : memref<8x64x16xbf16, #tpu.memory_space<vmem>>, vector<1x64x16xbf16>
        %40 = vector.shape_cast %39 : vector<1x64x16xbf16> to vector<64x16xbf16>
        %41 = vector.shape_cast %37 : vector<64x16xbf16> to vector<1x64x16xbf16>
        tpu.vector_store %arg13[%38, %c0_27, %c0_28], %41 {strides = array<i32>} : memref<8x64x16xbf16, #tpu.memory_space<vmem>>, vector<1x64x16xbf16>,
        %42 = arith.truncf %36 : vector<64x16xf32> to vector<64x16xbf16>
        %43 = arith.index_cast %arg15 : i32 to index
        %c0_29 = arith.constant 0 : index
        %c0_30 = arith.constant 0 : index
        %44 = vector.load %arg14[%43, %c0_29, %c0_30] : memref<8x64x16xbf16, #tpu.memory_space<vmem>>, vector<1x64x16xbf16>
        %45 = vector.shape_cast %44 : vector<1x64x16xbf16> to vector<64x16xbf16>
        %46 = vector.shape_cast %42 : vector<64x16xbf16> to vector<1x64x16xbf16>
        tpu.vector_store %arg14[%43, %c0_29, %c0_30], %46 {strides = array<i32>} : memref<8x64x16xbf16, #tpu.memory_space<vmem>>, vector<1x64x16xbf16>,
      }
      %c8_i32_16 = arith.constant 8 : i32
    } else {
    }
    %c0 = arith.constant 0 : index
    %c0_1 = arith.constant 0 : index
    %c0_2 = arith.constant 0 : index
    %3 = vector.load %arg2[%c0, %c0_1, %c0_2] : memref<1x64x128xf32, #tpu.memory_space<vmem>>, vector<1x64x128xf32>
    %4 = vector.shape_cast %3 : vector<1x64x128xf32> to vector<64x128xf32>
    %5 = arith.truncf %4 : vector<64x128xf32> to vector<64x128xbf16>
    %cst = arith.constant 0.000000e+00 : f32
    %6 = vector.broadcast %cst : f32 to vector<64x128xf32>
    %c0_i32_3 = arith.constant 0 : i32
    %c8_i32 = arith.constant 8 : i32
    %7 = arith.addi %c0_i32_3, %c8_i32 : i32
    %c1_i32 = arith.constant 1 : i32
    %8 = scf.for %arg15 = %c0_i32_3 to %7 step %c1_i32 iter_args(%arg16 = %6) -> (vector<64x128xf32>)  : i32 {
      %15 = arith.index_cast %arg15 : i32 to index
      %c0_10 = arith.constant 0 : index
      %c0_11 = arith.constant 0 : index
      %16 = vector.load %arg4[%15, %c0_10, %c0_11] : memref<8x128x16xbf16, #tpu.memory_space<vmem>>, vector<1x128x16xbf16>
      %17 = vector.shape_cast %16 : vector<1x128x16xbf16> to vector<128x16xbf16>
      %cst_12 = arith.constant dense<0.000000e+00> : vector<64x16xf32>
      %18 = tpu.matmul %5, %17, %cst_12 {dimension_numbers = #tpu.dot_dimension_numbers<[1], [0], [0], [1], [0, 0, 1, 1], [], []>} : vector<64x128xbf16>, vector<128x16xbf16>, vector<64x16xf32> -> vector<64x16xf32>
      %19 = arith.index_cast %arg15 : i32 to index
      %c0_13 = arith.constant 0 : index
      %c0_14 = arith.constant 0 : index
      %20 = vector.load %arg7[%19, %c0_13, %c0_14] : memref<8x1x16xf32, #tpu.memory_space<vmem>>, vector<1x1x16xf32>
      %21 = vector.shape_cast %20 : vector<1x1x16xf32> to vector<1x16xf32>
      %22 = vector.broadcast %21 : vector<1x16xf32> to vector<64x16xf32>
      %23 = arith.addf %18, %22 : vector<64x16xf32>
      %cst_15 = arith.constant 2.500000e-01 : f32
      %24 = vector.broadcast %cst_15 : f32 to vector<64x16xf32>
      %25 = arith.mulf %23, %24 : vector<64x16xf32>
      %26 = arith.truncf %25 : vector<64x16xf32> to vector<64x16xbf16>
      %27 = arith.index_cast %arg15 : i32 to index
      %c0_16 = arith.constant 0 : index
      %c0_17 = arith.constant 0 : index
      %28 = vector.load %arg13[%27, %c0_16, %c0_17] : memref<8x64x16xbf16, #tpu.memory_space<vmem>>, vector<1x64x16xbf16>
      %29 = vector.shape_cast %28 : vector<1x64x16xbf16> to vector<64x16xbf16>
      %cst_18 = arith.constant dense<0.000000e+00> : vector<64x64xf32>
      %30 = tpu.matmul %26, %29, %cst_18 {dimension_numbers = #tpu.dot_dimension_numbers<[1], [1], [0], [0], [0, 0, 1, 0], [], []>} : vector<64x16xbf16>, vector<64x16xbf16>, vector<64x64xf32> -> vector<64x64xf32>
      %cst_19 = arith.constant dense<0xFF800000> : vector<64xf32>
      %31 = vector.multi_reduction <maximumf>, %30, %cst_19 [1] : vector<64x64xf32> to vector<64xf32>
      %32 = vector.shape_cast %31 : vector<64xf32> to vector<64x1xf32>
      %33 = vector.broadcast %32 : vector<64x1xf32> to vector<64x64xf32>
      %34 = arith.subf %30, %33 : vector<64x64xf32>
      %35 = math.exp %34 : vector<64x64xf32>
      %cst_20 = arith.constant dense<0.000000e+00> : vector<64xf32>
      %36 = vector.multi_reduction <add>, %35, %cst_20 [1] : vector<64x64xf32> to vector<64xf32>
      %37 = vector.shape_cast %36 : vector<64xf32> to vector<64x1xf32>
      %38 = tpu.reciprocal %37 {approx = true} : vector<64x1xf32> -> vector<64x1xf32>
      %39 = vector.broadcast %38 : vector<64x1xf32> to vector<64x64xf32>
      %40 = arith.mulf %35, %39 : vector<64x64xf32>
      %41 = arith.truncf %40 : vector<64x64xf32> to vector<64x64xbf16>
      %42 = arith.index_cast %arg15 : i32 to index
      %c0_21 = arith.constant 0 : index
      %c0_22 = arith.constant 0 : index
      %43 = vector.load %arg14[%42, %c0_21, %c0_22] : memref<8x64x16xbf16, #tpu.memory_space<vmem>>, vector<1x64x16xbf16>
      %44 = vector.shape_cast %43 : vector<1x64x16xbf16> to vector<64x16xbf16>
      %cst_23 = arith.constant dense<0.000000e+00> : vector<64x16xf32>
      %45 = tpu.matmul %41, %44, %cst_23 {dimension_numbers = #tpu.dot_dimension_numbers<[1], [0], [0], [1], [0, 0, 1, 1], [], []>} : vector<64x64xbf16>, vector<64x16xbf16>, vector<64x16xf32> -> vector<64x16xf32>
      %46 = arith.truncf %45 : vector<64x16xf32> to vector<64x16xbf16>
      %47 = arith.index_cast %arg15 : i32 to index
      %c0_24 = arith.constant 0 : index
      %c0_25 = arith.constant 0 : index
      %48 = vector.load %arg10[%47, %c0_24, %c0_25] : memref<8x16x128xbf16, #tpu.memory_space<vmem>>, vector<1x16x128xbf16>
      %49 = vector.shape_cast %48 : vector<1x16x128xbf16> to vector<16x128xbf16>
      %cst_26 = arith.constant dense<0.000000e+00> : vector<64x128xf32>
      %50 = tpu.matmul %46, %49, %cst_26 {dimension_numbers = #tpu.dot_dimension_numbers<[1], [0], [0], [1], [0, 0, 1, 1], [], []>} : vector<64x16xbf16>, vector<16x128xbf16>, vector<64x128xf32> -> vector<64x128xf32>
      %51 = arith.addf %arg16, %50 : vector<64x128xf32>
      scf.yield %51 : vector<64x128xf32>
    }
    %c8_i32_4 = arith.constant 8 : i32
    %c0_5 = arith.constant 0 : index
    %c0_6 = arith.constant 0 : index
    %9 = vector.load %arg11[%c0_5, %c0_6] : memref<1x128xf32, #tpu.memory_space<vmem>>, vector<1x128xf32>
    %10 = vector.broadcast %9 : vector<1x128xf32> to vector<64x128xf32>
    %11 = arith.addf %8, %10 : vector<64x128xf32>
    %c0_7 = arith.constant 0 : index
    %c0_8 = arith.constant 0 : index
    %c0_9 = arith.constant 0 : index
    %12 = vector.load %arg12[%c0_7, %c0_8, %c0_9] : memref<1x64x128xf32, #tpu.memory_space<vmem>>, vector<1x64x128xf32>
    %13 = vector.shape_cast %12 : vector<1x64x128xf32> to vector<64x128xf32>
    %14 = vector.shape_cast %11 : vector<64x128xf32> to vector<1x64x128xf32>
    tpu.vector_store %arg12[%c0_7, %c0_8, %c0_9], %14 {strides = array<i32>} : memref<1x64x128xf32, #tpu.memory_space<vmem>>, vector<1x64x128xf32>,
    return
  }
  func.func @transform_0(%arg0: i32, %arg1: i32) -> (i32, i32, i32) {
    %c0_i32 = arith.constant 0 : i32
    %c0_i32_0 = arith.constant 0 : i32
    return %arg0, %arg1, %c0_i32 : i32, i32, i32
  }
  func.func @transform_1(%arg0: i32, %arg1: i32) -> (i32, i32, i32) {
    %c0_i32 = arith.constant 0 : i32
    %c0_i32_0 = arith.constant 0 : i32
    %c0_i32_1 = arith.constant 0 : i32
    return %arg0, %c0_i32, %c0_i32_0 : i32, i32, i32
  }
  func.func @transform_2(%arg0: i32, %arg1: i32) -> (i32, i32, i32) {
    %c0_i32 = arith.constant 0 : i32
    %c0_i32_0 = arith.constant 0 : i32
    %c0_i32_1 = arith.constant 0 : i32
    %c0_i32_2 = arith.constant 0 : i32
    return %c0_i32, %c0_i32_0, %c0_i32_1 : i32, i32, i32
  }
  func.func @transform_3(%arg0: i32, %arg1: i32) -> (i32, i32, i32) {
    %c0_i32 = arith.constant 0 : i32
    %c0_i32_0 = arith.constant 0 : i32
    %c0_i32_1 = arith.constant 0 : i32
    %c0_i32_2 = arith.constant 0 : i32
    return %c0_i32, %c0_i32_0, %c0_i32_1 : i32, i32, i32
  }
  func.func @transform_4(%arg0: i32, %arg1: i32) -> (i32, i32, i32) {
    %c0_i32 = arith.constant 0 : i32
    %c0_i32_0 = arith.constant 0 : i32
    %c0_i32_1 = arith.constant 0 : i32
    %c0_i32_2 = arith.constant 0 : i32
    return %c0_i32, %c0_i32_0, %c0_i32_1 : i32, i32, i32
  }
  func.func @transform_5(%arg0: i32, %arg1: i32) -> (i32, i32, i32) {
    %c0_i32 = arith.constant 0 : i32
    %c0_i32_0 = arith.constant 0 : i32
    %c0_i32_1 = arith.constant 0 : i32
    %c0_i32_2 = arith.constant 0 : i32
    return %c0_i32, %c0_i32_0, %c0_i32_1 : i32, i32, i32
  }
  func.func @transform_6(%arg0: i32, %arg1: i32) -> (i32, i32, i32) {
    %c0_i32 = arith.constant 0 : i32
    %c0_i32_0 = arith.constant 0 : i32
    %c0_i32_1 = arith.constant 0 : i32
    %c0_i32_2 = arith.constant 0 : i32
    return %c0_i32, %c0_i32_0, %c0_i32_1 : i32, i32, i32
  }
  func.func @transform_7(%arg0: i32, %arg1: i32) -> (i32, i32, i32) {
    %c0_i32 = arith.constant 0 : i32
    %c0_i32_0 = arith.constant 0 : i32
    %c0_i32_1 = arith.constant 0 : i32
    %c0_i32_2 = arith.constant 0 : i32
    return %c0_i32, %c0_i32_0, %c0_i32_1 : i32, i32, i32
  }
  func.func @transform_8(%arg0: i32, %arg1: i32) -> (i32, i32, i32) {
    %c0_i32 = arith.constant 0 : i32
    %c0_i32_0 = arith.constant 0 : i32
    %c0_i32_1 = arith.constant 0 : i32
    %c0_i32_2 = arith.constant 0 : i32
    return %c0_i32, %c0_i32_0, %c0_i32_1 : i32, i32, i32
  }
  func.func @transform_9(%arg0: i32, %arg1: i32) -> (i32, i32) {
    %c0_i32 = arith.constant 0 : i32
    %c0_i32_0 = arith.constant 0 : i32
    %c0_i32_1 = arith.constant 0 : i32
    return %c0_i32, %c0_i32_0 : i32, i32
  }
  func.func @transform_10(%arg0: i32, %arg1: i32) -> (i32, i32, i32) {
    %c0_i32 = arith.constant 0 : i32
    %c0_i32_0 = arith.constant 0 : i32
    return %arg0, %arg1, %c0_i32 : i32, i32, i32
  }
}

module attributes {stable_mosaic.version = 11 : i64} {
  func.func @_gemm_bias_kernel(%arg0: i32, %arg1: memref<64x1152xbf16, #tpu.memory_space<vmem>>, %arg2: memref<1152x128xbf16, #tpu.memory_space<vmem>>, %arg3: memref<64x1xf32, #tpu.memory_space<vmem>>, %arg4: memref<64x128xf32, #tpu.memory_space<vmem>>) attributes {dimension_semantics = [#tpu.dimension_semantics<parallel>], iteration_bounds = array<i64: 1>, scalar_prefetch = 0 : i64, scratch_operands = 0 : i64, tpu.core_type = #tpu.core_type<tc>, window_params = [{pipeline_mode = #tpu.pipeline_mode<synchronous>, transform_indices = @transform_0, window_bounds = array<i64: 64, 1152>}, {transform_indices = @transform_1, window_bounds = array<i64: 1152, 128>}, {pipeline_mode = #tpu.pipeline_mode<synchronous>, transform_indices = @transform_2, window_bounds = array<i64: 64, 1>}, {transform_indices = @transform_3, window_bounds = array<i64: 64, 128>}]} {
    %c0 = arith.constant 0 : index
    %c0_0 = arith.constant 0 : index
    %0 = vector.load %arg1[%c0, %c0_0] : memref<64x1152xbf16, #tpu.memory_space<vmem>>, vector<64x1152xbf16>
    %c0_1 = arith.constant 0 : index
    %c0_2 = arith.constant 0 : index
    %1 = vector.load %arg2[%c0_1, %c0_2] : memref<1152x128xbf16, #tpu.memory_space<vmem>>, vector<1152x128xbf16>
    %cst = arith.constant dense<0.000000e+00> : vector<64x128xf32>
    %2 = tpu.matmul %0, %1, %cst {dimension_numbers = #tpu.dot_dimension_numbers<[1], [0], [0], [1], [0, 0, 1, 1], [], []>} : vector<64x1152xbf16>, vector<1152x128xbf16>, vector<64x128xf32> -> vector<64x128xf32>
    %c0_3 = arith.constant 0 : index
    %c0_4 = arith.constant 0 : index
    %3 = vector.load %arg3[%c0_3, %c0_4] : memref<64x1xf32, #tpu.memory_space<vmem>>, vector<64x1xf32>
    %4 = vector.broadcast %3 : vector<64x1xf32> to vector<64x128xf32>
    %5 = arith.addf %2, %4 : vector<64x128xf32>
    %cst_5 = arith.constant 0.000000e+00 : f32
    %6 = vector.broadcast %cst_5 : f32 to vector<64x128xf32>
    %7 = arith.maximumf %5, %6 : vector<64x128xf32>
    %c0_6 = arith.constant 0 : index
    %c0_7 = arith.constant 0 : index
    %8 = vector.load %arg4[%c0_6, %c0_7] : memref<64x128xf32, #tpu.memory_space<vmem>>, vector<64x128xf32>
    tpu.vector_store %arg4[%c0_6, %c0_7], %7 {strides = array<i32>} : memref<64x128xf32, #tpu.memory_space<vmem>>, vector<64x128xf32>,
    return
  }
  func.func @transform_0(%arg0: i32) -> (i32, i32) {
    %c0_i32 = arith.constant 0 : i32
    %c0_i32_0 = arith.constant 0 : i32
    %c0_i32_1 = arith.constant 0 : i32
    return %c0_i32, %c0_i32_0 : i32, i32
  }
  func.func @transform_1(%arg0: i32) -> (i32, i32) {
    %c0_i32 = arith.constant 0 : i32
    %c0_i32_0 = arith.constant 0 : i32
    return %c0_i32, %arg0 : i32, i32
  }
  func.func @transform_2(%arg0: i32) -> (i32, i32) {
    %c0_i32 = arith.constant 0 : i32
    %c0_i32_0 = arith.constant 0 : i32
    %c0_i32_1 = arith.constant 0 : i32
    return %c0_i32, %c0_i32_0 : i32, i32
  }
  func.func @transform_3(%arg0: i32) -> (i32, i32) {
    %c0_i32 = arith.constant 0 : i32
    %c0_i32_0 = arith.constant 0 : i32
    return %c0_i32, %arg0 : i32, i32
  }
}

module attributes {stable_mosaic.version = 11 : i64} {
  func.func @_gemm_bias_kernel(%arg0: i32, %arg1: memref<32x576xbf16, #tpu.memory_space<vmem>>, %arg2: memref<576x128xbf16, #tpu.memory_space<vmem>>, %arg3: memref<32x1xf32, #tpu.memory_space<vmem>>, %arg4: memref<32x128xf32, #tpu.memory_space<vmem>>) attributes {dimension_semantics = [#tpu.dimension_semantics<parallel>], iteration_bounds = array<i64: 1>, scalar_prefetch = 0 : i64, scratch_operands = 0 : i64, tpu.core_type = #tpu.core_type<tc>, window_params = [{pipeline_mode = #tpu.pipeline_mode<synchronous>, transform_indices = @transform_0, window_bounds = array<i64: 32, 576>}, {transform_indices = @transform_1, window_bounds = array<i64: 576, 128>}, {pipeline_mode = #tpu.pipeline_mode<synchronous>, transform_indices = @transform_2, window_bounds = array<i64: 32, 1>}, {transform_indices = @transform_3, window_bounds = array<i64: 32, 128>}]} {
    %c0 = arith.constant 0 : index
    %c0_0 = arith.constant 0 : index
    %0 = vector.load %arg1[%c0, %c0_0] : memref<32x576xbf16, #tpu.memory_space<vmem>>, vector<32x576xbf16>
    %c0_1 = arith.constant 0 : index
    %c0_2 = arith.constant 0 : index
    %1 = vector.load %arg2[%c0_1, %c0_2] : memref<576x128xbf16, #tpu.memory_space<vmem>>, vector<576x128xbf16>
    %cst = arith.constant dense<0.000000e+00> : vector<32x128xf32>
    %2 = tpu.matmul %0, %1, %cst {dimension_numbers = #tpu.dot_dimension_numbers<[1], [0], [0], [1], [0, 0, 1, 1], [], []>} : vector<32x576xbf16>, vector<576x128xbf16>, vector<32x128xf32> -> vector<32x128xf32>
    %c0_3 = arith.constant 0 : index
    %c0_4 = arith.constant 0 : index
    %3 = vector.load %arg3[%c0_3, %c0_4] : memref<32x1xf32, #tpu.memory_space<vmem>>, vector<32x1xf32>
    %4 = vector.broadcast %3 : vector<32x1xf32> to vector<32x128xf32>
    %5 = arith.addf %2, %4 : vector<32x128xf32>
    %cst_5 = arith.constant 0.000000e+00 : f32
    %6 = vector.broadcast %cst_5 : f32 to vector<32x128xf32>
    %7 = arith.maximumf %5, %6 : vector<32x128xf32>
    %c0_6 = arith.constant 0 : index
    %c0_7 = arith.constant 0 : index
    %8 = vector.load %arg4[%c0_6, %c0_7] : memref<32x128xf32, #tpu.memory_space<vmem>>, vector<32x128xf32>
    tpu.vector_store %arg4[%c0_6, %c0_7], %7 {strides = array<i32>} : memref<32x128xf32, #tpu.memory_space<vmem>>, vector<32x128xf32>,
    return
  }
  func.func @transform_0(%arg0: i32) -> (i32, i32) {
    %c0_i32 = arith.constant 0 : i32
    %c0_i32_0 = arith.constant 0 : i32
    %c0_i32_1 = arith.constant 0 : i32
    return %c0_i32, %c0_i32_0 : i32, i32
  }
  func.func @transform_1(%arg0: i32) -> (i32, i32) {
    %c0_i32 = arith.constant 0 : i32
    %c0_i32_0 = arith.constant 0 : i32
    return %c0_i32, %arg0 : i32, i32
  }
  func.func @transform_2(%arg0: i32) -> (i32, i32) {
    %c0_i32 = arith.constant 0 : i32
    %c0_i32_0 = arith.constant 0 : i32
    %c0_i32_1 = arith.constant 0 : i32
    return %c0_i32, %c0_i32_0 : i32, i32
  }
  func.func @transform_3(%arg0: i32) -> (i32, i32) {
    %c0_i32 = arith.constant 0 : i32
    %c0_i32_0 = arith.constant 0 : i32
    return %c0_i32, %arg0 : i32, i32
  }
}

module attributes {stable_mosaic.version = 11 : i64} {
  func.func @_film_resize_kernel(%arg0: i32, %arg1: memref<1x32x2x2xf32, #tpu.memory_space<vmem>>, %arg2: memref<32x2xf32, #tpu.memory_space<vmem>>, %arg3: memref<1x2xf32, #tpu.memory_space<vmem>>, %arg4: memref<1x1x32x32xf32, #tpu.memory_space<vmem>>, %arg5: memref<16x32xf32, #tpu.memory_space<vmem>>, %arg6: memref<32x16xf32, #tpu.memory_space<vmem>>, %arg7: memref<1x1x16x16xf32, #tpu.memory_space<vmem>>) attributes {dimension_semantics = [#tpu.dimension_semantics<parallel>], iteration_bounds = array<i64: 2>, scalar_prefetch = 0 : i64, scratch_operands = 0 : i64, tpu.core_type = #tpu.core_type<tc>, window_params = [{transform_indices = @transform_0, window_bounds = array<i64: 1, 32, 2, 2>}, {pipeline_mode = #tpu.pipeline_mode<synchronous>, transform_indices = @transform_1, window_bounds = array<i64: 32, 2>}, {pipeline_mode = #tpu.pipeline_mode<synchronous>, transform_indices = @transform_2, window_bounds = array<i64: 1, 2>}, {transform_indices = @transform_3, window_bounds = array<i64: 1, 1, 32, 32>}, {pipeline_mode = #tpu.pipeline_mode<synchronous>, transform_indices = @transform_4, window_bounds = array<i64: 16, 32>}, {pipeline_mode = #tpu.pipeline_mode<synchronous>, transform_indices = @transform_5, window_bounds = array<i64: 32, 16>}, {transform_indices = @transform_6, window_bounds = array<i64: 1, 1, 16, 16>}]} {
    %c0 = arith.constant 0 : index
    %c0_0 = arith.constant 0 : index
    %c0_1 = arith.constant 0 : index
    %c0_2 = arith.constant 0 : index
    %0 = vector.load %arg1[%c0, %c0_0, %c0_1, %c0_2] : memref<1x32x2x2xf32, #tpu.memory_space<vmem>>, vector<1x32x2x2xf32>
    %cst = arith.constant dense<0.000000e+00> : vector<1x32x2xf32>
    %1 = vector.multi_reduction <add>, %0, %cst [3] : vector<1x32x2x2xf32> to vector<1x32x2xf32>
    %cst_3 = arith.constant dense<0.000000e+00> : vector<1x32xf32>
    %2 = vector.multi_reduction <add>, %1, %cst_3 [2] : vector<1x32x2xf32> to vector<1x32xf32>
    %cst_4 = arith.constant 2.500000e-01 : f32
    %3 = vector.broadcast %cst_4 : f32 to vector<1x32xf32>
    %4 = arith.mulf %2, %3 : vector<1x32xf32>
    %c0_5 = arith.constant 0 : index
    %c0_6 = arith.constant 0 : index
    %5 = vector.load %arg2[%c0_5, %c0_6] : memref<32x2xf32, #tpu.memory_space<vmem>>, vector<32x2xf32>
    %cst_7 = arith.constant dense<0.000000e+00> : vector<1x2xf32>
    %6 = tpu.matmul %4, %5, %cst_7 {dimension_numbers = #tpu.dot_dimension_numbers<[1], [0], [0], [1], [0, 0, 1, 1], [], []>} : vector<1x32xf32>, vector<32x2xf32>, vector<1x2xf32> -> vector<1x2xf32>
    %c0_8 = arith.constant 0 : index
    %c0_9 = arith.constant 0 : index
    %7 = vector.load %arg3[%c0_8, %c0_9] : memref<1x2xf32, #tpu.memory_space<vmem>>, vector<1x2xf32>
    %8 = arith.addf %6, %7 : vector<1x2xf32>
    %9 = vector.extract_strided_slice %8 {offsets = [0, 0], sizes = [1, 1], strides = [1, 1]} : vector<1x2xf32> to vector<1x1xf32>
    %10 = vector.extract_strided_slice %8 {offsets = [0, 1], sizes = [1, 1], strides = [1, 1]} : vector<1x2xf32> to vector<1x1xf32>
    %c0_10 = arith.constant 0 : index
    %c0_11 = arith.constant 0 : index
    %c0_12 = arith.constant 0 : index
    %c0_13 = arith.constant 0 : index
    %11 = vector.load %arg4[%c0_10, %c0_11, %c0_12, %c0_13] : memref<1x1x32x32xf32, #tpu.memory_space<vmem>>, vector<1x1x32x32xf32>
    %12 = vector.shape_cast %11 : vector<1x1x32x32xf32> to vector<32x32xf32>
    %13 = vector.broadcast %9 : vector<1x1xf32> to vector<32x32xf32>
    %14 = arith.mulf %12, %13 : vector<32x32xf32>
    %15 = vector.broadcast %10 : vector<1x1xf32> to vector<32x32xf32>
    %16 = arith.addf %14, %15 : vector<32x32xf32>
    %c0_14 = arith.constant 0 : index
    %c0_15 = arith.constant 0 : index
    %17 = vector.load %arg5[%c0_14, %c0_15] : memref<16x32xf32, #tpu.memory_space<vmem>>, vector<16x32xf32>
    %cst_16 = arith.constant dense<0.000000e+00> : vector<16x32xf32>
    %18 = tpu.matmul %17, %16, %cst_16 {dimension_numbers = #tpu.dot_dimension_numbers<[1], [0], [0], [1], [0, 0, 1, 1], [], []>} : vector<16x32xf32>, vector<32x32xf32>, vector<16x32xf32> -> vector<16x32xf32>
    %c0_17 = arith.constant 0 : index
    %c0_18 = arith.constant 0 : index
    %19 = vector.load %arg6[%c0_17, %c0_18] : memref<32x16xf32, #tpu.memory_space<vmem>>, vector<32x16xf32>
    %cst_19 = arith.constant dense<0.000000e+00> : vector<16x16xf32>
    %20 = tpu.matmul %18, %19, %cst_19 {dimension_numbers = #tpu.dot_dimension_numbers<[1], [0], [0], [1], [0, 0, 1, 1], [], []>} : vector<16x32xf32>, vector<32x16xf32>, vector<16x16xf32> -> vector<16x16xf32>
    %c0_20 = arith.constant 0 : index
    %c0_21 = arith.constant 0 : index
    %c0_22 = arith.constant 0 : index
    %c0_23 = arith.constant 0 : index
    %21 = vector.load %arg7[%c0_20, %c0_21, %c0_22, %c0_23] : memref<1x1x16x16xf32, #tpu.memory_space<vmem>>, vector<1x1x16x16xf32>
    %22 = vector.shape_cast %21 : vector<1x1x16x16xf32> to vector<16x16xf32>
    %23 = vector.shape_cast %20 : vector<16x16xf32> to vector<1x1x16x16xf32>
    tpu.vector_store %arg7[%c0_20, %c0_21, %c0_22, %c0_23], %23 {strides = array<i32>} : memref<1x1x16x16xf32, #tpu.memory_space<vmem>>, vector<1x1x16x16xf32>,
    return
  }
  func.func @transform_0(%arg0: i32) -> (i32, i32, i32, i32) {
    %c0_i32 = arith.constant 0 : i32
    %c0_i32_0 = arith.constant 0 : i32
    %c0_i32_1 = arith.constant 0 : i32
    %c0_i32_2 = arith.constant 0 : i32
    return %arg0, %c0_i32, %c0_i32_0, %c0_i32_1 : i32, i32, i32, i32
  }
  func.func @transform_1(%arg0: i32) -> (i32, i32) {
    %c0_i32 = arith.constant 0 : i32
    %c0_i32_0 = arith.constant 0 : i32
    %c0_i32_1 = arith.constant 0 : i32
    return %c0_i32, %c0_i32_0 : i32, i32
  }
  func.func @transform_2(%arg0: i32) -> (i32, i32) {
    %c0_i32 = arith.constant 0 : i32
    %c0_i32_0 = arith.constant 0 : i32
    %c0_i32_1 = arith.constant 0 : i32
    return %c0_i32, %c0_i32_0 : i32, i32
  }
  func.func @transform_3(%arg0: i32) -> (i32, i32, i32, i32) {
    %c0_i32 = arith.constant 0 : i32
    %c0_i32_0 = arith.constant 0 : i32
    %c0_i32_1 = arith.constant 0 : i32
    %c0_i32_2 = arith.constant 0 : i32
    return %arg0, %c0_i32, %c0_i32_0, %c0_i32_1 : i32, i32, i32, i32
  }
  func.func @transform_4(%arg0: i32) -> (i32, i32) {
    %c0_i32 = arith.constant 0 : i32
    %c0_i32_0 = arith.constant 0 : i32
    %c0_i32_1 = arith.constant 0 : i32
    return %c0_i32, %c0_i32_0 : i32, i32
  }
  func.func @transform_5(%arg0: i32) -> (i32, i32) {
    %c0_i32 = arith.constant 0 : i32
    %c0_i32_0 = arith.constant 0 : i32
    %c0_i32_1 = arith.constant 0 : i32
    return %c0_i32, %c0_i32_0 : i32, i32
  }
  func.func @transform_6(%arg0: i32) -> (i32, i32, i32, i32) {
    %c0_i32 = arith.constant 0 : i32
    %c0_i32_0 = arith.constant 0 : i32
    %c0_i32_1 = arith.constant 0 : i32
    %c0_i32_2 = arith.constant 0 : i32
    return %arg0, %c0_i32, %c0_i32_0, %c0_i32_1 : i32, i32, i32, i32
  }
}

module attributes {stable_mosaic.version = 11 : i64} {
  func.func @_double_stencil_kernel(%arg0: i32, %arg1: memref<1x1x20x20xf32, #tpu.memory_space<vmem>>, %arg2: memref<9xf32, #tpu.memory_space<smem>>, %arg3: memref<1xf32, #tpu.memory_space<smem>>, %arg4: memref<9xf32, #tpu.memory_space<smem>>, %arg5: memref<1xf32, #tpu.memory_space<smem>>, %arg6: memref<1x1x16x16xf32, #tpu.memory_space<vmem>>) attributes {dimension_semantics = [#tpu.dimension_semantics<parallel>], iteration_bounds = array<i64: 2>, scalar_prefetch = 0 : i64, scratch_operands = 0 : i64, tpu.core_type = #tpu.core_type<tc>, window_params = [{transform_indices = @transform_0, window_bounds = array<i64: 1, 1, 20, 20>}, {transform_indices = @transform_1, window_bounds = array<i64: 9>}, {transform_indices = @transform_2, window_bounds = array<i64: 1>}, {transform_indices = @transform_3, window_bounds = array<i64: 9>}, {transform_indices = @transform_4, window_bounds = array<i64: 1>}, {transform_indices = @transform_5, window_bounds = array<i64: 1, 1, 16, 16>}]} {
    %c0 = arith.constant 0 : index
    %c0_0 = arith.constant 0 : index
    %c0_1 = arith.constant 0 : index
    %c0_2 = arith.constant 0 : index
    %0 = vector.load %arg1[%c0, %c0_0, %c0_1, %c0_2] : memref<1x1x20x20xf32, #tpu.memory_space<vmem>>, vector<1x1x20x20xf32>
    %1 = vector.shape_cast %0 : vector<1x1x20x20xf32> to vector<20x20xf32>
    %c0_3 = arith.constant 0 : index
    %2 = memref.load %arg3[%c0_3] : memref<1xf32, #tpu.memory_space<smem>>
    %3 = vector.broadcast %2 : f32 to vector<18x18xf32>
    %c0_4 = arith.constant 0 : index
    %4 = memref.load %arg2[%c0_4] : memref<9xf32, #tpu.memory_space<smem>>
    %5 = vector.extract_strided_slice %1 {offsets = [0, 0], sizes = [18, 18], strides = [1, 1]} : vector<20x20xf32> to vector<18x18xf32>
    %6 = vector.broadcast %4 : f32 to vector<18x18xf32>
    %7 = arith.mulf %6, %5 : vector<18x18xf32>
    %8 = arith.addf %3, %7 : vector<18x18xf32>
    %c1 = arith.constant 1 : index
    %9 = memref.load %arg2[%c1] : memref<9xf32, #tpu.memory_space<smem>>
    %10 = vector.extract_strided_slice %1 {offsets = [0, 1], sizes = [18, 18], strides = [1, 1]} : vector<20x20xf32> to vector<18x18xf32>
    %11 = vector.broadcast %9 : f32 to vector<18x18xf32>
    %12 = arith.mulf %11, %10 : vector<18x18xf32>
    %13 = arith.addf %8, %12 : vector<18x18xf32>
    %c2 = arith.constant 2 : index
    %14 = memref.load %arg2[%c2] : memref<9xf32, #tpu.memory_space<smem>>
    %15 = vector.extract_strided_slice %1 {offsets = [0, 2], sizes = [18, 18], strides = [1, 1]} : vector<20x20xf32> to vector<18x18xf32>
    %16 = vector.broadcast %14 : f32 to vector<18x18xf32>
    %17 = arith.mulf %16, %15 : vector<18x18xf32>
    %18 = arith.addf %13, %17 : vector<18x18xf32>
    %c3 = arith.constant 3 : index
    %19 = memref.load %arg2[%c3] : memref<9xf32, #tpu.memory_space<smem>>
    %20 = vector.extract_strided_slice %1 {offsets = [1, 0], sizes = [18, 18], strides = [1, 1]} : vector<20x20xf32> to vector<18x18xf32>
    %21 = vector.broadcast %19 : f32 to vector<18x18xf32>
    %22 = arith.mulf %21, %20 : vector<18x18xf32>
    %23 = arith.addf %18, %22 : vector<18x18xf32>
    %c4 = arith.constant 4 : index
    %24 = memref.load %arg2[%c4] : memref<9xf32, #tpu.memory_space<smem>>
    %25 = vector.extract_strided_slice %1 {offsets = [1, 1], sizes = [18, 18], strides = [1, 1]} : vector<20x20xf32> to vector<18x18xf32>
    %26 = vector.broadcast %24 : f32 to vector<18x18xf32>
    %27 = arith.mulf %26, %25 : vector<18x18xf32>
    %28 = arith.addf %23, %27 : vector<18x18xf32>
    %c5 = arith.constant 5 : index
    %29 = memref.load %arg2[%c5] : memref<9xf32, #tpu.memory_space<smem>>
    %30 = vector.extract_strided_slice %1 {offsets = [1, 2], sizes = [18, 18], strides = [1, 1]} : vector<20x20xf32> to vector<18x18xf32>
    %31 = vector.broadcast %29 : f32 to vector<18x18xf32>
    %32 = arith.mulf %31, %30 : vector<18x18xf32>
    %33 = arith.addf %28, %32 : vector<18x18xf32>
    %c6 = arith.constant 6 : index
    %34 = memref.load %arg2[%c6] : memref<9xf32, #tpu.memory_space<smem>>
    %35 = vector.extract_strided_slice %1 {offsets = [2, 0], sizes = [18, 18], strides = [1, 1]} : vector<20x20xf32> to vector<18x18xf32>
    %36 = vector.broadcast %34 : f32 to vector<18x18xf32>
    %37 = arith.mulf %36, %35 : vector<18x18xf32>
    %38 = arith.addf %33, %37 : vector<18x18xf32>
    %c7 = arith.constant 7 : index
    %39 = memref.load %arg2[%c7] : memref<9xf32, #tpu.memory_space<smem>>
    %40 = vector.extract_strided_slice %1 {offsets = [2, 1], sizes = [18, 18], strides = [1, 1]} : vector<20x20xf32> to vector<18x18xf32>
    %41 = vector.broadcast %39 : f32 to vector<18x18xf32>
    %42 = arith.mulf %41, %40 : vector<18x18xf32>
    %43 = arith.addf %38, %42 : vector<18x18xf32>
    %c8 = arith.constant 8 : index
    %44 = memref.load %arg2[%c8] : memref<9xf32, #tpu.memory_space<smem>>
    %45 = vector.extract_strided_slice %1 {offsets = [2, 2], sizes = [18, 18], strides = [1, 1]} : vector<20x20xf32> to vector<18x18xf32>
    %46 = vector.broadcast %44 : f32 to vector<18x18xf32>
    %47 = arith.mulf %46, %45 : vector<18x18xf32>
    %48 = arith.addf %43, %47 : vector<18x18xf32>
    %cst = arith.constant 0.000000e+00 : f32
    %49 = vector.broadcast %cst : f32 to vector<18x18xf32>
    %50 = arith.maximumf %48, %49 : vector<18x18xf32>
    %51 = tpu.iota {dimensions = array<i32: 0>} : vector<18x18xi32>
    %52 = tpu.iota {dimensions = array<i32: 1>} : vector<18x18xi32>
    %c1_i32 = arith.constant 1 : i32
    %53 = vector.broadcast %c1_i32 : i32 to vector<18x18xi32>
    %54 = arith.cmpi sge, %51, %53 : vector<18x18xi32>
    %c16_i32 = arith.constant 16 : i32
    %55 = vector.broadcast %c16_i32 : i32 to vector<18x18xi32>
    %56 = arith.cmpi sle, %51, %55 : vector<18x18xi32>
    %57 = arith.andi %54, %56 : vector<18x18xi1>
    %c1_i32_5 = arith.constant 1 : i32
    %58 = vector.broadcast %c1_i32_5 : i32 to vector<18x18xi32>
    %59 = arith.cmpi sge, %52, %58 : vector<18x18xi32>
    %60 = arith.andi %57, %59 : vector<18x18xi1>
    %c16_i32_6 = arith.constant 16 : i32
    %61 = vector.broadcast %c16_i32_6 : i32 to vector<18x18xi32>
    %62 = arith.cmpi sle, %52, %61 : vector<18x18xi32>
    %63 = arith.andi %60, %62 : vector<18x18xi1>
    %cst_7 = arith.constant 0.000000e+00 : f32
    %64 = vector.broadcast %cst_7 : f32 to vector<18x18xf32>
    %65 = arith.select %63, %50, %64 : vector<18x18xi1>, vector<18x18xf32>
    %c0_8 = arith.constant 0 : index
    %66 = memref.load %arg5[%c0_8] : memref<1xf32, #tpu.memory_space<smem>>
    %67 = vector.broadcast %66 : f32 to vector<16x16xf32>
    %c0_9 = arith.constant 0 : index
    %68 = memref.load %arg4[%c0_9] : memref<9xf32, #tpu.memory_space<smem>>
    %69 = vector.extract_strided_slice %65 {offsets = [0, 0], sizes = [16, 16], strides = [1, 1]} : vector<18x18xf32> to vector<16x16xf32>
    %70 = vector.broadcast %68 : f32 to vector<16x16xf32>
    %71 = arith.mulf %70, %69 : vector<16x16xf32>
    %72 = arith.addf %67, %71 : vector<16x16xf32>
    %c1_10 = arith.constant 1 : index
    %73 = memref.load %arg4[%c1_10] : memref<9xf32, #tpu.memory_space<smem>>
    %74 = vector.extract_strided_slice %65 {offsets = [0, 1], sizes = [16, 16], strides = [1, 1]} : vector<18x18xf32> to vector<16x16xf32>
    %75 = vector.broadcast %73 : f32 to vector<16x16xf32>
    %76 = arith.mulf %75, %74 : vector<16x16xf32>
    %77 = arith.addf %72, %76 : vector<16x16xf32>
    %c2_11 = arith.constant 2 : index
    %78 = memref.load %arg4[%c2_11] : memref<9xf32, #tpu.memory_space<smem>>
    %79 = vector.extract_strided_slice %65 {offsets = [0, 2], sizes = [16, 16], strides = [1, 1]} : vector<18x18xf32> to vector<16x16xf32>
    %80 = vector.broadcast %78 : f32 to vector<16x16xf32>
    %81 = arith.mulf %80, %79 : vector<16x16xf32>
    %82 = arith.addf %77, %81 : vector<16x16xf32>
    %c3_12 = arith.constant 3 : index
    %83 = memref.load %arg4[%c3_12] : memref<9xf32, #tpu.memory_space<smem>>
    %84 = vector.extract_strided_slice %65 {offsets = [1, 0], sizes = [16, 16], strides = [1, 1]} : vector<18x18xf32> to vector<16x16xf32>
    %85 = vector.broadcast %83 : f32 to vector<16x16xf32>
    %86 = arith.mulf %85, %84 : vector<16x16xf32>
    %87 = arith.addf %82, %86 : vector<16x16xf32>
    %c4_13 = arith.constant 4 : index
    %88 = memref.load %arg4[%c4_13] : memref<9xf32, #tpu.memory_space<smem>>
    %89 = vector.extract_strided_slice %65 {offsets = [1, 1], sizes = [16, 16], strides = [1, 1]} : vector<18x18xf32> to vector<16x16xf32>
    %90 = vector.broadcast %88 : f32 to vector<16x16xf32>
    %91 = arith.mulf %90, %89 : vector<16x16xf32>
    %92 = arith.addf %87, %91 : vector<16x16xf32>
    %c5_14 = arith.constant 5 : index
    %93 = memref.load %arg4[%c5_14] : memref<9xf32, #tpu.memory_space<smem>>
    %94 = vector.extract_strided_slice %65 {offsets = [1, 2], sizes = [16, 16], strides = [1, 1]} : vector<18x18xf32> to vector<16x16xf32>
    %95 = vector.broadcast %93 : f32 to vector<16x16xf32>
    %96 = arith.mulf %95, %94 : vector<16x16xf32>
    %97 = arith.addf %92, %96 : vector<16x16xf32>
    %c6_15 = arith.constant 6 : index
    %98 = memref.load %arg4[%c6_15] : memref<9xf32, #tpu.memory_space<smem>>
    %99 = vector.extract_strided_slice %65 {offsets = [2, 0], sizes = [16, 16], strides = [1, 1]} : vector<18x18xf32> to vector<16x16xf32>
    %100 = vector.broadcast %98 : f32 to vector<16x16xf32>
    %101 = arith.mulf %100, %99 : vector<16x16xf32>
    %102 = arith.addf %97, %101 : vector<16x16xf32>
    %c7_16 = arith.constant 7 : index
    %103 = memref.load %arg4[%c7_16] : memref<9xf32, #tpu.memory_space<smem>>
    %104 = vector.extract_strided_slice %65 {offsets = [2, 1], sizes = [16, 16], strides = [1, 1]} : vector<18x18xf32> to vector<16x16xf32>
    %105 = vector.broadcast %103 : f32 to vector<16x16xf32>
    %106 = arith.mulf %105, %104 : vector<16x16xf32>
    %107 = arith.addf %102, %106 : vector<16x16xf32>
    %c8_17 = arith.constant 8 : index
    %108 = memref.load %arg4[%c8_17] : memref<9xf32, #tpu.memory_space<smem>>
    %109 = vector.extract_strided_slice %65 {offsets = [2, 2], sizes = [16, 16], strides = [1, 1]} : vector<18x18xf32> to vector<16x16xf32>
    %110 = vector.broadcast %108 : f32 to vector<16x16xf32>
    %111 = arith.mulf %110, %109 : vector<16x16xf32>
    %112 = arith.addf %107, %111 : vector<16x16xf32>
    %c0_18 = arith.constant 0 : index
    %c0_19 = arith.constant 0 : index
    %c0_20 = arith.constant 0 : index
    %c0_21 = arith.constant 0 : index
    %113 = vector.load %arg6[%c0_18, %c0_19, %c0_20, %c0_21] : memref<1x1x16x16xf32, #tpu.memory_space<vmem>>, vector<1x1x16x16xf32>
    %114 = vector.shape_cast %113 : vector<1x1x16x16xf32> to vector<16x16xf32>
    %115 = vector.shape_cast %112 : vector<16x16xf32> to vector<1x1x16x16xf32>
    tpu.vector_store %arg6[%c0_18, %c0_19, %c0_20, %c0_21], %115 {strides = array<i32>} : memref<1x1x16x16xf32, #tpu.memory_space<vmem>>, vector<1x1x16x16xf32>,
    return
  }
  func.func @transform_0(%arg0: i32) -> (i32, i32, i32, i32) {
    %c0_i32 = arith.constant 0 : i32
    %c0_i32_0 = arith.constant 0 : i32
    %c0_i32_1 = arith.constant 0 : i32
    %c0_i32_2 = arith.constant 0 : i32
    return %arg0, %c0_i32, %c0_i32_0, %c0_i32_1 : i32, i32, i32, i32
  }
  func.func @transform_1(%arg0: i32) -> i32 {
    %c0_i32 = arith.constant 0 : i32
    %c0_i32_0 = arith.constant 0 : i32
    return %c0_i32 : i32
  }
  func.func @transform_2(%arg0: i32) -> i32 {
    %c0_i32 = arith.constant 0 : i32
    %c0_i32_0 = arith.constant 0 : i32
    return %c0_i32 : i32
  }
  func.func @transform_3(%arg0: i32) -> i32 {
    %c0_i32 = arith.constant 0 : i32
    %c0_i32_0 = arith.constant 0 : i32
    return %c0_i32 : i32
  }
  func.func @transform_4(%arg0: i32) -> i32 {
    %c0_i32 = arith.constant 0 : i32
    %c0_i32_0 = arith.constant 0 : i32
    return %c0_i32 : i32
  }
  func.func @transform_5(%arg0: i32) -> (i32, i32, i32, i32) {
    %c0_i32 = arith.constant 0 : i32
    %c0_i32_0 = arith.constant 0 : i32
    %c0_i32_1 = arith.constant 0 : i32
    %c0_i32_2 = arith.constant 0 : i32
    return %arg0, %c0_i32, %c0_i32_0, %c0_i32_1 : i32, i32, i32, i32
  }
}

module attributes {stable_mosaic.version = 11 : i64} {
  func.func @_resize_add_kernel(%arg0: i32, %arg1: memref<1x1x16x16xf32, #tpu.memory_space<vmem>>, %arg2: memref<32x16xf32, #tpu.memory_space<vmem>>, %arg3: memref<16x32xf32, #tpu.memory_space<vmem>>, %arg4: memref<1x1x32x32xf32, #tpu.memory_space<vmem>>, %arg5: memref<1x32x32xf32, #tpu.memory_space<vmem>>) attributes {dimension_semantics = [#tpu.dimension_semantics<parallel>], iteration_bounds = array<i64: 2>, scalar_prefetch = 0 : i64, scratch_operands = 0 : i64, tpu.core_type = #tpu.core_type<tc>, window_params = [{transform_indices = @transform_0, window_bounds = array<i64: 1, 1, 16, 16>}, {pipeline_mode = #tpu.pipeline_mode<synchronous>, transform_indices = @transform_1, window_bounds = array<i64: 32, 16>}, {pipeline_mode = #tpu.pipeline_mode<synchronous>, transform_indices = @transform_2, window_bounds = array<i64: 16, 32>}, {transform_indices = @transform_3, window_bounds = array<i64: 1, 1, 32, 32>}, {transform_indices = @transform_4, window_bounds = array<i64: 1, 32, 32>}]} {
    %c0 = arith.constant 0 : index
    %c0_0 = arith.constant 0 : index
    %c0_1 = arith.constant 0 : index
    %c0_2 = arith.constant 0 : index
    %0 = vector.load %arg1[%c0, %c0_0, %c0_1, %c0_2] : memref<1x1x16x16xf32, #tpu.memory_space<vmem>>, vector<1x1x16x16xf32>
    %1 = vector.shape_cast %0 : vector<1x1x16x16xf32> to vector<16x16xf32>
    %c0_3 = arith.constant 0 : index
    %c0_4 = arith.constant 0 : index
    %2 = vector.load %arg2[%c0_3, %c0_4] : memref<32x16xf32, #tpu.memory_space<vmem>>, vector<32x16xf32>
    %cst = arith.constant dense<0.000000e+00> : vector<32x16xf32>
    %3 = tpu.matmul %2, %1, %cst {dimension_numbers = #tpu.dot_dimension_numbers<[1], [0], [0], [1], [0, 0, 1, 1], [], []>} : vector<32x16xf32>, vector<16x16xf32>, vector<32x16xf32> -> vector<32x16xf32>
    %c0_5 = arith.constant 0 : index
    %c0_6 = arith.constant 0 : index
    %4 = vector.load %arg3[%c0_5, %c0_6] : memref<16x32xf32, #tpu.memory_space<vmem>>, vector<16x32xf32>
    %cst_7 = arith.constant dense<0.000000e+00> : vector<32x32xf32>
    %5 = tpu.matmul %3, %4, %cst_7 {dimension_numbers = #tpu.dot_dimension_numbers<[1], [0], [0], [1], [0, 0, 1, 1], [], []>} : vector<32x16xf32>, vector<16x32xf32>, vector<32x32xf32> -> vector<32x32xf32>
    %c0_8 = arith.constant 0 : index
    %c0_9 = arith.constant 0 : index
    %c0_10 = arith.constant 0 : index
    %c0_11 = arith.constant 0 : index
    %6 = vector.load %arg4[%c0_8, %c0_9, %c0_10, %c0_11] : memref<1x1x32x32xf32, #tpu.memory_space<vmem>>, vector<1x1x32x32xf32>
    %7 = vector.shape_cast %6 : vector<1x1x32x32xf32> to vector<32x32xf32>
    %8 = arith.addf %5, %7 : vector<32x32xf32>
    %c0_12 = arith.constant 0 : index
    %c0_13 = arith.constant 0 : index
    %c0_14 = arith.constant 0 : index
    %9 = vector.load %arg5[%c0_12, %c0_13, %c0_14] : memref<1x32x32xf32, #tpu.memory_space<vmem>>, vector<1x32x32xf32>
    %10 = vector.shape_cast %9 : vector<1x32x32xf32> to vector<32x32xf32>
    %11 = vector.shape_cast %8 : vector<32x32xf32> to vector<1x32x32xf32>
    tpu.vector_store %arg5[%c0_12, %c0_13, %c0_14], %11 {strides = array<i32>} : memref<1x32x32xf32, #tpu.memory_space<vmem>>, vector<1x32x32xf32>,
    return
  }
  func.func @transform_0(%arg0: i32) -> (i32, i32, i32, i32) {
    %c0_i32 = arith.constant 0 : i32
    %c0_i32_0 = arith.constant 0 : i32
    %c0_i32_1 = arith.constant 0 : i32
    %c0_i32_2 = arith.constant 0 : i32
    return %arg0, %c0_i32, %c0_i32_0, %c0_i32_1 : i32, i32, i32, i32
  }
  func.func @transform_1(%arg0: i32) -> (i32, i32) {
    %c0_i32 = arith.constant 0 : i32
    %c0_i32_0 = arith.constant 0 : i32
    %c0_i32_1 = arith.constant 0 : i32
    return %c0_i32, %c0_i32_0 : i32, i32
  }
  func.func @transform_2(%arg0: i32) -> (i32, i32) {
    %c0_i32 = arith.constant 0 : i32
    %c0_i32_0 = arith.constant 0 : i32
    %c0_i32_1 = arith.constant 0 : i32
    return %c0_i32, %c0_i32_0 : i32, i32
  }
  func.func @transform_3(%arg0: i32) -> (i32, i32, i32, i32) {
    %c0_i32 = arith.constant 0 : i32
    %c0_i32_0 = arith.constant 0 : i32
    %c0_i32_1 = arith.constant 0 : i32
    %c0_i32_2 = arith.constant 0 : i32
    return %arg0, %c0_i32, %c0_i32_0, %c0_i32_1 : i32, i32, i32, i32
  }
  func.func @transform_4(%arg0: i32) -> (i32, i32, i32) {
    %c0_i32 = arith.constant 0 : i32
    %c0_i32_0 = arith.constant 0 : i32
    %c0_i32_1 = arith.constant 0 : i32
    return %arg0, %c0_i32, %c0_i32_0 : i32, i32, i32
  }
}

</mosaic_0001>

<llo_original>
// kernel: ppsnet_refinement_forward.6
$region0: #{ppsnet_refinement_forward.6}
  #allocation0 [shape = 'u32[]', space=smem, size = 0x4, offset = 0x4, fixed_abs, tag = 'smem constant byte address 0x4 - core index']
  #allocation1 [shape = 'u32[144,128]{1,0:T(1,128)}', space=vmem, size = 0x12000, scoped, tag = 'internal scratch']
  #allocation2 [shape = 'bf16[8,64,16]{2,1,0:T(16,128)(2,1)}', space=vmem, size = 0x20000, scoped, tag = 'scratch operand']
  #allocation3 [shape = 'bf16[8,64,16]{2,1,0:T(16,128)(2,1)}', space=vmem, size = 0x20000, scoped, tag = 'scratch operand']
  %s0 = inlined_call_operand.vmem [shape: f32[2,64,128], index: 0, kind: input, shape index: {}]
  %s1 = inlined_call_operand.vmem [shape: f32[2,64,128], index: 1, kind: input, shape index: {}]
  %s2 = inlined_call_operand.vmem [shape: bf16[8,128,16], index: 2, kind: input, shape index: {}]
  %s3 = inlined_call_operand.vmem [shape: bf16[8,128,16], index: 3, kind: input, shape index: {}]
  %s4 = inlined_call_operand.vmem [shape: bf16[8,128,16], index: 4, kind: input, shape index: {}]
  %s5 = inlined_call_operand.vmem [shape: f32[8,1,16], index: 5, kind: input, shape index: {}]
  %s6 = inlined_call_operand.vmem [shape: f32[8,1,16], index: 6, kind: input, shape index: {}]
  %s7 = inlined_call_operand.vmem [shape: f32[8,1,16], index: 7, kind: input, shape index: {}]
  %s8 = inlined_call_operand.vmem [shape: bf16[8,16,128], index: 8, kind: input, shape index: {}]
  %s9 = inlined_call_operand.vmem [shape: f32[1,128], index: 9, kind: input, shape index: {}]
  %s10 = inlined_call_operand.vmem [shape: f32[2,64,128], index: 10, kind: output, shape index: {}]
  %s11 = sld [smem:[#allocation0]]
  $region91: #{ppsnet_refinement_forward.6} parent=0
    _
  %s13 = ssub.s32 1, %s11
  %s14 = scalar_select 0, %s13, %s11
  loop: start=0, step=1, limit=4
  $region2: #{ppsnet_refinement_forward.6} parent=0 // loop_pre_header
    _
  $region3: #{ppsnet_refinement_forward.6} parent=0 // loop_header
    %s16 = sphi 0, %s20
    %p17 = scmp.ge.s32.totalorder %s16, 4
    %s23 = sphi 0, %s35
    %s24 = sphi 0, %s31
    %s25 = sphi 0, %s23
    %s26 = sphi 0, %s24
    %s27 = sphi 0, %s25
    %s28 = sphi 0, %s26
    %s40 = sphi 0, %s42
    %s43 = sphi 0, %s40
    %s44 = sphi 0, %s43
    %s60 = sphi 0, %s44
    %s66 = sphi 0, %s68
    %s69 = sphi 0, %s66
    %s70 = sphi 0, %s69
    %s86 = sphi 0, %s70
    %s90 = sphi 0, %s90
    %s92 = sphi 0, %s90
    %s93 = sphi 0, %s92
    %s107 = sphi 0, %s93
    %s111 = sphi 0, %s111
    %s113 = sphi 0, %s111
    %s114 = sphi 0, %s113
    %s128 = sphi 0, %s114
    %s132 = sphi 0, %s132
    %s134 = sphi 0, %s132
    %s135 = sphi 0, %s134
    %s149 = sphi 0, %s135
    %s153 = sphi 0, %s153
    %s155 = sphi 0, %s153
    %s156 = sphi 0, %s155
    %s170 = sphi 0, %s156
    %s174 = sphi 0, %s174
    %s176 = sphi 0, %s174
    %s177 = sphi 0, %s176
    %s191 = sphi 0, %s177
    %s195 = sphi 0, %s195
    %s197 = sphi 0, %s195
    %s198 = sphi 0, %s197
    %s212 = sphi 0, %s198
    %s216 = sphi 0, %s216
    %s218 = sphi 0, %s216
    %s219 = sphi 0, %s218
    %s233 = sphi 0, %s219
    %s237 = sphi 0, %s237
    %s239 = sphi 0, %s237
    %s240 = sphi 0, %s239
    %s254 = sphi 0, %s240
    %s262 = sphi 0, %s264
    %s265 = sphi 0, %s262
    %s266 = sphi 0, %s265
    %s282 = sphi 0, %s266
  $region4: #{ppsnet_refinement_forward.6} parent=0 // loop_header_branch
    %19 = sbr.rel (%p17) target = $region8
  $region5: #{ppsnet_refinement_forward.6} parent=0 // loop_body
    %s21 = ssub.s32 %s16, 1
    %s22 = ssub.s32 %s16, 2
    %s29 = sadd.s32 1, %s24
    %p30 = scmp.ge.s32.totalorder %s29, 1
    %s31 = scalar_select %p30, 0, %s29
    %s32 = sadd.s32 1, %s23
    %s33 = scalar_select %p30, %s32, %s23
    %p34 = scmp.ge.s32.totalorder %s33, 2
    %s35 = scalar_select %p34, 0, %s33
    %s36 = ssub.s32 %s23, %s35
    %s37 = ssub.s32 %s24, %s31
    %s38 = sor.u32 %s36, %s37
    %p39 = scmp.eq.s32.totalorder %s38, 0
    %s41 = sadd.s32 %s40, 1
    %s42 = scalar_select %p39, %s40, %s41
    %p45 = pneg %p39
    %p46 = scmp.eq.s32.totalorder %s16, 1
    %p47 = por %p45, %p46
    %p48 = scmp.ne.s32.totalorder %s40, %s43
    %p49 = scmp.eq.s32.totalorder %s16, 0
    %p50 = por %p48, %p49
    %p51 = scmp.ne.s32.totalorder %s40, %s43
    %p52 = scmp.eq.s32.totalorder %s21, 1
    %p53 = por %p51, %p52
    %p54 = scmp.ne.s32.totalorder %s43, %s44
    %p55 = scmp.eq.s32.totalorder %s21, 0
    %p56 = por %p54, %p55
    %p57 = scmp.ne.s32.totalorder %s43, %s44
    %p58 = scmp.eq.s32.totalorder %s22, 1
    %p59 = por %p57, %p58
    %p61 = scmp.ne.s32.totalorder %s44, %s60
    %p62 = scmp.eq.s32.totalorder %s22, 0
    %p63 = por %p61, %p62
    %s64 = ssub.s32 %s23, %s35
    %p65 = scmp.eq.s32.totalorder %s64, 0
    %s67 = sadd.s32 %s66, 1
    %s68 = scalar_select %p65, %s66, %s67
    %p71 = pneg %p65
    %p72 = scmp.eq.s32.totalorder %s16, 1
    %p73 = por %p71, %p72
    %p74 = scmp.ne.s32.totalorder %s66, %s69
    %p75 = scmp.eq.s32.totalorder %s16, 0
    %p76 = por %p74, %p75
    %p77 = scmp.ne.s32.totalorder %s66, %s69
    %p78 = scmp.eq.s32.totalorder %s21, 1
    %p79 = por %p77, %p78
    %p80 = scmp.ne.s32.totalorder %s69, %s70
    %p81 = scmp.eq.s32.totalorder %s21, 0
    %p82 = por %p80, %p81
    %p83 = scmp.ne.s32.totalorder %s69, %s70
    %p84 = scmp.eq.s32.totalorder %s22, 1
    %p85 = por %p83, %p84
    %p87 = scmp.ne.s32.totalorder %s70, %s86
    %p88 = scmp.eq.s32.totalorder %s22, 0
    %p89 = por %p87, %p88
    %s91 = sadd.s32 %s90, 1
    %p94 = scmp.eq.s32.totalorder %s16, 1
    %p95 = scmp.ne.s32.totalorder %s90, %s92
    %p96 = scmp.eq.s32.totalorder %s16, 0
    %p97 = por %p95, %p96
    %p98 = scmp.ne.s32.totalorder %s90, %s92
    %p99 = scmp.eq.s32.totalorder %s21, 1
    %p100 = por %p98, %p99
    %p101 = scmp.ne.s32.totalorder %s92, %s93
    %p102 = scmp.eq.s32.totalorder %s21, 0
    %p103 = por %p101, %p102
    %p104 = scmp.ne.s32.totalorder %s92, %s93
    %p105 = scmp.eq.s32.totalorder %s22, 1
    %p106 = por %p104, %p105
    %p108 = scmp.ne.s32.totalorder %s93, %s107
    %p109 = scmp.eq.s32.totalorder %s22, 0
    %p110 = por %p108, %p109
    %s112 = sadd.s32 %s111, 1
    %p115 = scmp.eq.s32.totalorder %s16, 1
    %p116 = scmp.ne.s32.totalorder %s111, %s113
    %p117 = scmp.eq.s32.totalorder %s16, 0
    %p118 = por %p116, %p117
    %p119 = scmp.ne.s32.totalorder %s111, %s113
    %p120 = scmp.eq.s32.totalorder %s21, 1
    %p121 = por %p119, %p120
    %p122 = scmp.ne.s32.totalorder %s113, %s114
    %p123 = scmp.eq.s32.totalorder %s21, 0
    %p124 = por %p122, %p123
    %p125 = scmp.ne.s32.totalorder %s113, %s114
    %p126 = scmp.eq.s32.totalorder %s22, 1
    %p127 = por %p125, %p126
    %p129 = scmp.ne.s32.totalorder %s114, %s128
    %p130 = scmp.eq.s32.totalorder %s22, 0
    %p131 = por %p129, %p130
    %s133 = sadd.s32 %s132, 1
    %p136 = scmp.eq.s32.totalorder %s16, 1
    %p137 = scmp.ne.s32.totalorder %s132, %s134
    %p138 = scmp.eq.s32.totalorder %s16, 0
    %p139 = por %p137, %p138
    %p140 = scmp.ne.s32.totalorder %s132, %s134
    %p141 = scmp.eq.s32.totalorder %s21, 1
    %p142 = por %p140, %p141
    %p143 = scmp.ne.s32.totalorder %s134, %s135
    %p144 = scmp.eq.s32.totalorder %s21, 0
    %p145 = por %p143, %p144
    %p146 = scmp.ne.s32.totalorder %s134, %s135
    %p147 = scmp.eq.s32.totalorder %s22, 1
    %p148 = por %p146, %p147
    %p150 = scmp.ne.s32.totalorder %s135, %s149
    %p151 = scmp.eq.s32.totalorder %s22, 0
    %p152 = por %p150, %p151
    %s154 = sadd.s32 %s153, 1
    %p157 = scmp.eq.s32.totalorder %s16, 1
    %p158 = scmp.ne.s32.totalorder %s153, %s155
    %p159 = scmp.eq.s32.totalorder %s16, 0
    %p160 = por %p158, %p159
    %p161 = scmp.ne.s32.totalorder %s153, %s155
    %p162 = scmp.eq.s32.totalorder %s21, 1
    %p163 = por %p161, %p162
    %p164 = scmp.ne.s32.totalorder %s155, %s156
    %p165 = scmp.eq.s32.totalorder %s21, 0
    %p166 = por %p164, %p165
    %p167 = scmp.ne.s32.totalorder %s155, %s156
    %p168 = scmp.eq.s32.totalorder %s22, 1
    %p169 = por %p167, %p168
    %p171 = scmp.ne.s32.totalorder %s156, %s170
    %p172 = scmp.eq.s32.totalorder %s22, 0
    %p173 = por %p171, %p172
    %s175 = sadd.s32 %s174, 1
    %p178 = scmp.eq.s32.totalorder %s16, 1
    %p179 = scmp.ne.s32.totalorder %s174, %s176
    %p180 = scmp.eq.s32.totalorder %s16, 0
    %p181 = por %p179, %p180
    %p182 = scmp.ne.s32.totalorder %s174, %s176
    %p183 = scmp.eq.s32.totalorder %s21, 1
    %p184 = por %p182, %p183
    %p185 = scmp.ne.s32.totalorder %s176, %s177
    %p186 = scmp.eq.s32.totalorder %s21, 0
    %p187 = por %p185, %p186
    %p188 = scmp.ne.s32.totalorder %s176, %s177
    %p189 = scmp.eq.s32.totalorder %s22, 1
    %p190 = por %p188, %p189
    %p192 = scmp.ne.s32.totalorder %s177, %s191
    %p193 = scmp.eq.s32.totalorder %s22, 0
    %p194 = por %p192, %p193
    %s196 = sadd.s32 %s195, 1
    %p199 = scmp.eq.s32.totalorder %s16, 1
    %p200 = scmp.ne.s32.totalorder %s195, %s197
    %p201 = scmp.eq.s32.totalorder %s16, 0
    %p202 = por %p200, %p201
    %p203 = scmp.ne.s32.totalorder %s195, %s197
    %p204 = scmp.eq.s32.totalorder %s21, 1
    %p205 = por %p203, %p204
    %p206 = scmp.ne.s32.totalorder %s197, %s198
    %p207 = scmp.eq.s32.totalorder %s21, 0
    %p208 = por %p206, %p207
    %p209 = scmp.ne.s32.totalorder %s197, %s198
    %p210 = scmp.eq.s32.totalorder %s22, 1
    %p211 = por %p209, %p210
    %p213 = scmp.ne.s32.totalorder %s198, %s212
    %p214 = scmp.eq.s32.totalorder %s22, 0
    %p215 = por %p213, %p214
    %s217 = sadd.s32 %s216, 1
    %p220 = scmp.eq.s32.totalorder %s16, 1
    %p221 = scmp.ne.s32.totalorder %s216, %s218
    %p222 = scmp.eq.s32.totalorder %s16, 0
    %p223 = por %p221, %p222
    %p224 = scmp.ne.s32.totalorder %s216, %s218
    %p225 = scmp.eq.s32.totalorder %s21, 1
    %p226 = por %p224, %p225
    %p227 = scmp.ne.s32.totalorder %s218, %s219
    %p228 = scmp.eq.s32.totalorder %s21, 0
    %p229 = por %p227, %p228
    %p230 = scmp.ne.s32.totalorder %s218, %s219
    %p231 = scmp.eq.s32.totalorder %s22, 1
    %p232 = por %p230, %p231
    %p234 = scmp.ne.s32.totalorder %s219, %s233
    %p235 = scmp.eq.s32.totalorder %s22, 0
    %p236 = por %p234, %p235
    %s238 = sadd.s32 %s237, 1
    %p241 = scmp.eq.s32.totalorder %s16, 1
    %p242 = scmp.ne.s32.totalorder %s237, %s239
    %p243 = scmp.eq.s32.totalorder %s16, 0
    %p244 = por %p242, %p243
    %p245 = scmp.ne.s32.totalorder %s237, %s239
    %p246 = scmp.eq.s32.totalorder %s21, 1
    %p247 = por %p245, %p246
    %p248 = scmp.ne.s32.totalorder %s239, %s240
    %p249 = scmp.eq.s32.totalorder %s21, 0
    %p250 = por %p248, %p249
    %p251 = scmp.ne.s32.totalorder %s239, %s240
    %p252 = scmp.eq.s32.totalorder %s22, 1
    %p253 = por %p251, %p252
    %p255 = scmp.ne.s32.totalorder %s240, %s254
    %p256 = scmp.eq.s32.totalorder %s22, 0
    %p257 = por %p255, %p256
    %s258 = ssub.s32 %s23, %s35
    %s259 = ssub.s32 %s24, %s31
    %s260 = sor.u32 %s258, %s259
    %p261 = scmp.eq.s32.totalorder %s260, 0
    %s263 = sadd.s32 %s262, 1
    %s264 = scalar_select %p261, %s262, %s263
    %p267 = pneg %p261
    %p268 = scmp.eq.s32.totalorder %s16, 1
    %p269 = por %p267, %p268
    %p270 = scmp.ne.s32.totalorder %s262, %s265
    %p271 = scmp.eq.s32.totalorder %s16, 0
    %p272 = por %p270, %p271
    %p273 = scmp.ne.s32.totalorder %s262, %s265
    %p274 = scmp.eq.s32.totalorder %s21, 1
    %p275 = por %p273, %p274
    %p276 = scmp.ne.s32.totalorder %s265, %s266
    %p277 = scmp.eq.s32.totalorder %s21, 0
    %p278 = por %p276, %p277
    %p279 = scmp.ne.s32.totalorder %s265, %s266
    %p280 = scmp.eq.s32.totalorder %s22, 1
    %p281 = por %p279, %p280
    %p283 = scmp.ne.s32.totalorder %s266, %s282
    %p284 = scmp.eq.s32.totalorder %s22, 0
    %p285 = por %p283, %p284
    %p286 = scmp.le.s32.totalorder 1, %s16
    %p287 = scmp.lt.s32.totalorder %s16, 3
    %p288 = pnand %p286, %p287
    %p289 = pneg %p288
    // Predicated region
    $region9: #{ppsnet_refinement_forward.6} parent=5 // pred_check
      _
    $region10: #{ppsnet_refinement_forward.6} parent=5 // pred_check_branch
      %291 = sbr.rel (%p288) target = $region12
    $region11: #{ppsnet_refinement_forward.6} parent=5 // pred_region
      %s292 = ssub.s32 %s16, 1
      // Predicated region
      $region13: #{ppsnet_refinement_forward.6} parent=11 // pred_check
        %p293 = pneg %p103
      $region14: #{ppsnet_refinement_forward.6} parent=11 // pred_check_branch
        %295 = sbr.rel (%p293) target = $region16
      $region15: #{ppsnet_refinement_forward.6} parent=11 // pred_region
        _
      $region16: #{ppsnet_refinement_forward.6} parent=11 // pred_fallthru
        _
      // Predicated region
      $region17: #{ppsnet_refinement_forward.6} parent=11 // pred_check
        %p296 = pneg %p124
      $region18: #{ppsnet_refinement_forward.6} parent=11 // pred_check_branch
        %298 = sbr.rel (%p296) target = $region20
      $region19: #{ppsnet_refinement_forward.6} parent=11 // pred_region
        _
      $region20: #{ppsnet_refinement_forward.6} parent=11 // pred_fallthru
        _
      // Predicated region
      $region21: #{ppsnet_refinement_forward.6} parent=11 // pred_check
        %p299 = pneg %p145
      $region22: #{ppsnet_refinement_forward.6} parent=11 // pred_check_branch
        %301 = sbr.rel (%p299) target = $region24
      $region23: #{ppsnet_refinement_forward.6} parent=11 // pred_region
        _
      $region24: #{ppsnet_refinement_forward.6} parent=11 // pred_fallthru
        _
      // Predicated region
      $region25: #{ppsnet_refinement_forward.6} parent=11 // pred_check
        %p302 = pneg %p166
      $region26: #{ppsnet_refinement_forward.6} parent=11 // pred_check_branch
        %304 = sbr.rel (%p302) target = $region28
      $region27: #{ppsnet_refinement_forward.6} parent=11 // pred_region
        _
      $region28: #{ppsnet_refinement_forward.6} parent=11 // pred_fallthru
        _
      // Predicated region
      $region29: #{ppsnet_refinement_forward.6} parent=11 // pred_check
        %p305 = pneg %p187
      $region30: #{ppsnet_refinement_forward.6} parent=11 // pred_check_branch
        %307 = sbr.rel (%p305) target = $region32
      $region31: #{ppsnet_refinement_forward.6} parent=11 // pred_region
        _
      $region32: #{ppsnet_refinement_forward.6} parent=11 // pred_fallthru
        _
      // Predicated region
      $region33: #{ppsnet_refinement_forward.6} parent=11 // pred_check
        %p308 = pneg %p208
      $region34: #{ppsnet_refinement_forward.6} parent=11 // pred_check_branch
        %310 = sbr.rel (%p308) target = $region36
      $region35: #{ppsnet_refinement_forward.6} parent=11 // pred_region
        _
      $region36: #{ppsnet_refinement_forward.6} parent=11 // pred_fallthru
        _
      // Predicated region
      $region37: #{ppsnet_refinement_forward.6} parent=11 // pred_check
        %p311 = pneg %p229
      $region38: #{ppsnet_refinement_forward.6} parent=11 // pred_check_branch
        %313 = sbr.rel (%p311) target = $region40
      $region39: #{ppsnet_refinement_forward.6} parent=11 // pred_region
        _
      $region40: #{ppsnet_refinement_forward.6} parent=11 // pred_fallthru
        _
      // Predicated region
      $region41: #{ppsnet_refinement_forward.6} parent=11 // pred_check
        %p314 = pneg %p250
      $region42: #{ppsnet_refinement_forward.6} parent=11 // pred_check_branch
        %316 = sbr.rel (%p314) target = $region44
      $region43: #{ppsnet_refinement_forward.6} parent=11 // pred_region
        _
      $region44: #{ppsnet_refinement_forward.6} parent=11 // pred_fallthru
        _
    $region12: #{ppsnet_refinement_forward.6} parent=5 // pred_fallthru
      _
    %p317 = scmp.lt.s32.totalorder %s16, 2
    // Predicated region
    $region45: #{ppsnet_refinement_forward.6} parent=5 // pred_check
      %p318 = pneg %p317
    $region46: #{ppsnet_refinement_forward.6} parent=5 // pred_check_branch
      %320 = sbr.rel (%p318) target = $region48
    $region47: #{ppsnet_refinement_forward.6} parent=5 // pred_region
      // Predicated region
      $region49: #{ppsnet_refinement_forward.6} parent=47 // pred_check
        %p321 = pneg %p50
      $region50: #{ppsnet_refinement_forward.6} parent=47 // pred_check_branch
        %323 = sbr.rel (%p321) target = $region52
      $region51: #{ppsnet_refinement_forward.6} parent=47 // pred_region
        %s324 = smul.u32 8, %s24
        %p325 = scmp.lt.s32.totalorder %s23, 1
        %s326 = scalar_select %p325, %s23, 1
        %p327 = scmp.lt.s32.totalorder %s324, 7
        %s328 = scalar_select %p327, %s324, 7
        %s329 = smul.addr %s326, 8
        %s330 = sadd.s32 %s328, %s329
        %s331 = smul.addr %s330, 8
        %s332 = scalar_lea.vmem %s0, %s331
        %s333 = smul.u32 8, %s24
      $region52: #{ppsnet_refinement_forward.6} parent=47 // pred_fallthru
        _
      // Predicated region
      $region53: #{ppsnet_refinement_forward.6} parent=47 // pred_check
        %p334 = pneg %p76
      $region54: #{ppsnet_refinement_forward.6} parent=47 // pred_check_branch
        %336 = sbr.rel (%p334) target = $region56
      $region55: #{ppsnet_refinement_forward.6} parent=47 // pred_region
        %p337 = scmp.lt.s32.totalorder %s23, 1
        %s338 = scalar_select %p337, %s23, 1
        %s339 = smul.addr %s338, 8
        %s340 = smul.addr %s339, 8
        %s341 = scalar_lea.vmem %s1, %s340
      $region56: #{ppsnet_refinement_forward.6} parent=47 // pred_fallthru
        _
    $region48: #{ppsnet_refinement_forward.6} parent=5 // pred_fallthru
      _
    %p342 = scmp.le.s32.totalorder 1, %s16
    %p343 = scmp.lt.s32.totalorder %s16, 3
    %p344 = pnand %p342, %p343
    %p345 = pneg %p344
    // Predicated region
    $region57: #{ppsnet_refinement_forward.6} parent=5 // pred_check
      _
    $region58: #{ppsnet_refinement_forward.6} parent=5 // pred_check_branch
      %347 = sbr.rel (%p344) target = $region60
    $region59: #{ppsnet_refinement_forward.6} parent=5 // pred_region
      %s348 = ssub.s32 %s16, 1
      %s349 = smul.u32 8, %s26
      %p350 = scmp.lt.s32.totalorder %s25, 1
      %s351 = scalar_select %p350, %s25, 1
      %p352 = scmp.lt.s32.totalorder %s349, 7
      %s353 = scalar_select %p352, %s349, 7
      %s354 = smul.addr %s351, 8
      %s355 = sadd.s32 %s353, %s354
      %s356 = smul.addr %s355, 8
      %s357 = scalar_lea.vmem %s0, %s356
      %p358 = pneg %p56
      %p359 = pneg %p53
      %p360 = scmp.lt.s32.totalorder %s25, 1
      %s361 = scalar_select %p360, %s25, 1
      %s362 = smul.addr %s361, 8
      %s363 = smul.addr %s362, 8
      %s364 = scalar_lea.vmem %s1, %s363
      %p365 = pneg %p82
      %p366 = pneg %p79
      %p367 = pneg %p103
      %p368 = pneg %p100
      %p369 = pneg %p124
      %p370 = pneg %p121
      %p371 = pneg %p145
      %p372 = pneg %p142
      %p373 = pneg %p166
      %p374 = pneg %p163
      %p375 = pneg %p187
      %p376 = pneg %p184
      %p377 = pneg %p208
      %p378 = pneg %p205
      %p379 = pneg %p229
      %p380 = pneg %p226
      %p381 = pneg %p250
      %p382 = pneg %p247
      %p383 = pneg %p278
      %p384 = pneg %p275
      %s385 = smul.u32 8, %s26
      %p386 = scmp.lt.s32.totalorder %s25, 1
      %s387 = scalar_select %p386, %s25, 1
      %p388 = scmp.lt.s32.totalorder %s385, 7
      %s389 = scalar_select %p388, %s385, 7
      %s390 = smul.addr %s387, 8
      %s391 = sadd.s32 %s389, %s390
      %s392 = smul.addr %s391, 8
      %s393 = scalar_lea.vmem %s10, %s392
      %s394 = smul.u32 8, %s26
      %p395 = scmp.lt.s32.totalorder %s25, 1
      %s396 = scalar_select %p395, %s25, 1
      %p397 = scmp.lt.s32.totalorder %s394, 7
      %s398 = scalar_select %p397, %s394, 7
      %s399 = smul.addr %s396, 8
      %s400 = sadd.s32 %s398, %s399
      %s401 = smul.addr %s400, 8
      %s402 = scalar_lea.vmem %s0, %s401
      %s403 = smul.u32 8, %s26
      %p404 = scmp.lt.s32.totalorder %s25, 1
      %s405 = scalar_select %p404, %s25, 1
      %s406 = smul.addr %s405, 8
      %s407 = smul.addr %s406, 8
      %s408 = scalar_lea.vmem %s1, %s407
      %s409 = smul.u32 8, %s26
      %p410 = scmp.lt.s32.totalorder %s25, 1
      %s411 = scalar_select %p410, %s25, 1
      %p412 = scmp.lt.s32.totalorder %s409, 7
      %s413 = scalar_select %p412, %s409, 7
      %s414 = smul.addr %s411, 8
      %s415 = sadd.s32 %s413, %s414
      %s416 = smul.addr %s415, 8
      %s417 = scalar_lea.vmem %s10, %s416
      %s418 = smul.u32 8, %s26
      %p420 = scmp.eq.s32.totalorder %s26, 0
      // Predicated region
      $region61: #{ppsnet_refinement_forward.6} parent=59 // pred_check
        %p421 = pneg %p420
      $region62: #{ppsnet_refinement_forward.6} parent=59 // pred_check_branch
        %423 = sbr.rel (%p421) target = $region64
      $region63: #{ppsnet_refinement_forward.6} parent=59 // pred_region
        %v424 = vld [vmem:[%s408] sm:$0xff]
        %v425 = vld [vmem:[%s408 + $0x8] sm:$0xff]
        %v426 = vld [vmem:[%s408 + $0x10] sm:$0xff]
        %v427 = vld [vmem:[%s408 + $0x18] sm:$0xff]
        %v428 = vld [vmem:[%s408 + $0x20] sm:$0xff]
        %v429 = vld [vmem:[%s408 + $0x28] sm:$0xff]
        %v430 = vld [vmem:[%s408 + $0x30] sm:$0xff]
        %v431 = vld [vmem:[%s408 + $0x38] sm:$0xff]
        %v432 = vpack.c.bf16 %v425, %v424
        %v433 = vpack.c.bf16 %v427, %v426
        %v434 = vpack.c.bf16 %v429, %v428
        %v435 = vpack.c.bf16 %v431, %v430
        loop: start=0, step=1, limit=8
        $region65: #{ppsnet_refinement_forward.6} parent=63 // loop_pre_header
          _
        $region66: #{ppsnet_refinement_forward.6} parent=63 // loop_header
          %s437 = sphi 0, %s441
          %p438 = scmp.ge.s32.totalorder %s437, 8
        $region67: #{ppsnet_refinement_forward.6} parent=63 // loop_header_branch
          %440 = sbr.rel (%p438) target = $region71
        $region68: #{ppsnet_refinement_forward.6} parent=63 // loop_body
          %s442 = smul.u32 %s437, 16
          %s443 = smul.addr %s442, 4
          %s444 = scalar_lea.vmem %s3, %s443
          %v445 = vld [vmem:[%s444] sm:$0xf]
          %v446 = vld [vmem:[%s444 + $0x4] sm:$0xf]
          %v447 = vld [vmem:[%s444 + $0x8] sm:$0xf]
          %v448 = vld [vmem:[%s444 + $0xc] sm:$0xf]
          %v449 = vld [vmem:[%s444 + $0x10] sm:$0xf]
          %v450 = vld [vmem:[%s444 + $0x14] sm:$0xf]
          %v451 = vld [vmem:[%s444 + $0x18] sm:$0xf]
          %v452 = vld [vmem:[%s444 + $0x1c] sm:$0xf]
          %v453 = vld [vmem:[%s444 + $0x20] sm:$0xf]
          %v454 = vld [vmem:[%s444 + $0x24] sm:$0xf]
          %v455 = vld [vmem:[%s444 + $0x28] sm:$0xf]
          %v456 = vld [vmem:[%s444 + $0x2c] sm:$0xf]
          %v457 = vld [vmem:[%s444 + $0x30] sm:$0xf]
          %v458 = vld [vmem:[%s444 + $0x34] sm:$0xf]
          %v459 = vld [vmem:[%s444 + $0x38] sm:$0xf]
          %v460 = vld [vmem:[%s444 + $0x3c] sm:$0xf]
          %s461 = scalar_lea.vmem %s6, %s437
          %v462 = vld [vmem:[%s461] sm:$0x1]
          %v464 = vlaneseq
          %v465 = vshrl.u32 %v464, 7
          %v466 = vsub.s32 0, %v465
          %v467 = vrot.slane %v462, %v466
          %v485 = vunpack.c.l.b16 %v445
          %v486 = vunpack.c.l.b16 %v446
          %v487 = vunpack.c.l.b16 %v447
          %v488 = vunpack.c.l.b16 %v448
          %v489 = vunpack.c.l.b16 %v449
          %v490 = vunpack.c.l.b16 %v450
          %v491 = vunpack.c.l.b16 %v451
          %v492 = vunpack.c.l.b16 %v452
          %v493 = vunpack.c.l.b16 %v453
          %v494 = vunpack.c.l.b16 %v454
          %v495 = vunpack.c.l.b16 %v455
          %v496 = vunpack.c.l.b16 %v456
          %v497 = vunpack.c.l.b16 %v457
          %v498 = vunpack.c.l.b16 %v458
          %v499 = vunpack.c.l.b16 %v459
          %v500 = vunpack.c.l.b16 %v460
          %v501 = vpack.c.b16 %v486, %v485
          %v502 = vpack.c.b16 %v488, %v487
          %v503 = vpack.c.b16 %v490, %v489
          %v504 = vpack.c.b16 %v492, %v491
          %v505 = vpack.c.b16 %v494, %v493
          %v506 = vpack.c.b16 %v496, %v495
          %v507 = vpack.c.b16 %v498, %v497
          %v508 = vpack.c.b16 %v500, %v499
          %517 = vmatprep.subr.bf16.mxu0 0
          %518 = vmatpush1.bf16.msra.mxu0 %v501
          %519 = vmatprep.subr.bf16.mxu0 0
          %520 = vmatpush1.bf16.msra.mxu0 %v502
          %521 = vmatprep.subr.bf16.mxu0 0
          %522 = vmatpush1.bf16.msra.mxu0 %v503
          %523 = vmatprep.subr.bf16.mxu0 0
          %524 = vmatpush1.bf16.msra.mxu0 %v504
          %525 = vmatprep.subr.bf16.mxu0 0
          %526 = vmatpush1.bf16.msra.mxu0 %v505
          %527 = vmatprep.subr.bf16.mxu0 0
          %528 = vmatpush1.bf16.msra.mxu0 %v506
          %529 = vmatprep.subr.bf16.mxu0 0
          %530 = vmatpush1.bf16.msra.mxu0 %v507
          %531 = vmatprep.subr.bf16.mxu0 0
          %532 = vmatpush1.bf16.msra.mxu0 %v508
          %533 = vmatprep.subr.bf16.mxu0 0
          %534 = vmatpush1.bf16.msra.mxu0 0
          %535 = vmatprep.subr.bf16.mxu0 0
          %536 = vmatpush1.bf16.msra.mxu0 0
          %537 = vmatprep.subr.bf16.mxu0 0
          %538 = vmatpush1.bf16.msra.mxu0 0
          %539 = vmatprep.subr.bf16.mxu0 0
          %540 = vmatpush1.bf16.msra.mxu0 0
          %541 = vmatprep.subr.bf16.mxu0 0
          %542 = vmatpush1.bf16.msra.mxu0 0
          %543 = vmatprep.subr.bf16.mxu0 0
          %544 = vmatpush1.bf16.msra.mxu0 0
          %545 = vmatprep.subr.bf16.mxu0 0
          %546 = vmatpush1.bf16.msra.mxu0 0
          %547 = vmatprep.subr.bf16.mxu0 0
          %548 = vmatpush1.bf16.msra.mxu0 0
          %549 = vmatprep.mubr.bf16.mxu0 0
          %550 = vmatmul.mubr.bf16.gmra.mrb[0].mxu0 %v432
          %v551 = vpop.f32.mrb[0].mxu0
          %v552 = vadd.f32 %v467, %v551
          %v553 = vpop.f32.mrb[0].mxu0
          %v554 = vpop.f32.mrb[0].mxu0
          %v555 = vadd.f32 %v467, %v554
          %v556 = vpop.f32.mrb[0].mxu0
          %557 = vmatprep.mubr.bf16.mxu0 0
          %558 = vmatmul.mubr.bf16.gmra.mrb[0].mxu0 %v433
          %v559 = vpop.f32.mrb[0].mxu0
          %v560 = vadd.f32 %v467, %v559
          %v561 = vpop.f32.mrb[0].mxu0
          %v562 = vpop.f32.mrb[0].mxu0
          %v563 = vadd.f32 %v467, %v562
          %v564 = vpop.f32.mrb[0].mxu0
          %565 = vmatprep.mubr.bf16.mxu0 0
          %566 = vmatmul.mubr.bf16.gmra.mrb[0].mxu0 %v434
          %v567 = vpop.f32.mrb[0].mxu0
          %v568 = vadd.f32 %v467, %v567
          %v569 = vpop.f32.mrb[0].mxu0
          %v570 = vpop.f32.mrb[0].mxu0
          %v571 = vadd.f32 %v467, %v570
          %v572 = vpop.f32.mrb[0].mxu0
          %573 = vmatprep.mubr.bf16.mxu0 0
          %574 = vmatmul.mubr.bf16.gmra.mrb[0].mxu0 %v435
          %v575 = vpop.f32.mrb[0].mxu0
          %v576 = vadd.f32 %v467, %v575
          %v577 = vpop.f32.mrb[0].mxu0
          %v578 = vpop.f32.mrb[0].mxu0
          %v579 = vadd.f32 %v467, %v578
          %v580 = vpop.f32.mrb[0].mxu0
          %581 = vdwg.mxu0
          %s582 = smul.addr %s442, 4
          %s583 = scalar_lea.vmem %s4, %s582
          %v584 = vld [vmem:[%s583] sm:$0xf]
          %v585 = vld [vmem:[%s583 + $0x4] sm:$0xf]
          %v586 = vld [vmem:[%s583 + $0x8] sm:$0xf]
          %v587 = vld [vmem:[%s583 + $0xc] sm:$0xf]
          %v588 = vld [vmem:[%s583 + $0x10] sm:$0xf]
          %v589 = vld [vmem:[%s583 + $0x14] sm:$0xf]
          %v590 = vld [vmem:[%s583 + $0x18] sm:$0xf]
          %v591 = vld [vmem:[%s583 + $0x1c] sm:$0xf]
          %v592 = vld [vmem:[%s583 + $0x20] sm:$0xf]
          %v593 = vld [vmem:[%s583 + $0x24] sm:$0xf]
          %v594 = vld [vmem:[%s583 + $0x28] sm:$0xf]
          %v595 = vld [vmem:[%s583 + $0x2c] sm:$0xf]
          %v596 = vld [vmem:[%s583 + $0x30] sm:$0xf]
          %v597 = vld [vmem:[%s583 + $0x34] sm:$0xf]
          %v598 = vld [vmem:[%s583 + $0x38] sm:$0xf]
          %v599 = vld [vmem:[%s583 + $0x3c] sm:$0xf]
          %s600 = scalar_lea.vmem %s7, %s437
          %v601 = vld [vmem:[%s600] sm:$0x1]
          %v603 = vlaneseq
          %v604 = vshrl.u32 %v603, 7
          %v605 = vsub.s32 0, %v604
          %v606 = vrot.slane %v601, %v605
          %v624 = vunpack.c.l.b16 %v584
          %v625 = vunpack.c.l.b16 %v585
          %v626 = vunpack.c.l.b16 %v586
          %v627 = vunpack.c.l.b16 %v587
          %v628 = vunpack.c.l.b16 %v588
          %v629 = vunpack.c.l.b16 %v589
          %v630 = vunpack.c.l.b16 %v590
          %v631 = vunpack.c.l.b16 %v591
          %v632 = vunpack.c.l.b16 %v592
          %v633 = vunpack.c.l.b16 %v593
          %v634 = vunpack.c.l.b16 %v594
          %v635 = vunpack.c.l.b16 %v595
          %v636 = vunpack.c.l.b16 %v596
          %v637 = vunpack.c.l.b16 %v597
          %v638 = vunpack.c.l.b16 %v598
          %v639 = vunpack.c.l.b16 %v599
          %v640 = vpack.c.b16 %v625, %v624
          %v641 = vpack.c.b16 %v627, %v626
          %v642 = vpack.c.b16 %v629, %v628
          %v643 = vpack.c.b16 %v631, %v630
          %v644 = vpack.c.b16 %v633, %v632
          %v645 = vpack.c.b16 %v635, %v634
          %v646 = vpack.c.b16 %v637, %v636
          %v647 = vpack.c.b16 %v639, %v638
          %656 = vmatprep.subr.bf16.mxu0 0
          %657 = vmatpush1.bf16.msra.mxu0 %v640
          %658 = vmatprep.subr.bf16.mxu0 0
          %659 = vmatpush1.bf16.msra.mxu0 %v641
          %660 = vmatprep.subr.bf16.mxu0 0
          %661 = vmatpush1.bf16.msra.mxu0 %v642
          %662 = vmatprep.subr.bf16.mxu0 0
          %663 = vmatpush1.bf16.msra.mxu0 %v643
          %664 = vmatprep.subr.bf16.mxu0 0
          %665 = vmatpush1.bf16.msra.mxu0 %v644
          %666 = vmatprep.subr.bf16.mxu0 0
          %667 = vmatpush1.bf16.msra.mxu0 %v645
          %668 = vmatprep.subr.bf16.mxu0 0
          %669 = vmatpush1.bf16.msra.mxu0 %v646
          %670 = vmatprep.subr.bf16.mxu0 0
          %671 = vmatpush1.bf16.msra.mxu0 %v647
          %672 = vmatprep.subr.bf16.mxu0 0
          %673 = vmatpush1.bf16.msra.mxu0 0
          %674 = vmatprep.subr.bf16.mxu0 0
          %675 = vmatpush1.bf16.msra.mxu0 0
          %676 = vmatprep.subr.bf16.mxu0 0
          %677 = vmatpush1.bf16.msra.mxu0 0
          %678 = vmatprep.subr.bf16.mxu0 0
          %679 = vmatpush1.bf16.msra.mxu0 0
          %680 = vmatprep.subr.bf16.mxu0 0
          %681 = vmatpush1.bf16.msra.mxu0 0
          %682 = vmatprep.subr.bf16.mxu0 0
          %683 = vmatpush1.bf16.msra.mxu0 0
          %684 = vmatprep.subr.bf16.mxu0 0
          %685 = vmatpush1.bf16.msra.mxu0 0
          %686 = vmatprep.subr.bf16.mxu0 0
          %687 = vmatpush1.bf16.msra.mxu0 0
          %688 = vmatprep.mubr.bf16.mxu0 0
          %689 = vmatmul.mubr.bf16.gmra.mrb[0].mxu0 %v432
          %v690 = vpop.f32.mrb[0].mxu0
          %v691 = vadd.f32 %v606, %v690
          %v692 = vpop.f32.mrb[0].mxu0
          %v693 = vpop.f32.mrb[0].mxu0
          %v694 = vadd.f32 %v606, %v693
          %v695 = vpop.f32.mrb[0].mxu0
          %696 = vmatprep.mubr.bf16.mxu0 0
          %697 = vmatmul.mubr.bf16.gmra.mrb[0].mxu0 %v433
          %v698 = vpop.f32.mrb[0].mxu0
          %v699 = vadd.f32 %v606, %v698
          %v700 = vpop.f32.mrb[0].mxu0
          %v701 = vpop.f32.mrb[0].mxu0
          %v702 = vadd.f32 %v606, %v701
          %v703 = vpop.f32.mrb[0].mxu0
          %704 = vmatprep.mubr.bf16.mxu0 0
          %705 = vmatmul.mubr.bf16.gmra.mrb[0].mxu0 %v434
          %v706 = vpop.f32.mrb[0].mxu0
          %v707 = vadd.f32 %v606, %v706
          %v708 = vpop.f32.mrb[0].mxu0
          %v709 = vpop.f32.mrb[0].mxu0
          %v710 = vadd.f32 %v606, %v709
          %v711 = vpop.f32.mrb[0].mxu0
          %712 = vmatprep.mubr.bf16.mxu0 0
          %713 = vmatmul.mubr.bf16.gmra.mrb[0].mxu0 %v435
          %v714 = vpop.f32.mrb[0].mxu0
          %v715 = vadd.f32 %v606, %v714
          %v716 = vpop.f32.mrb[0].mxu0
          %v717 = vpop.f32.mrb[0].mxu0
          %v718 = vadd.f32 %v606, %v717
          %v719 = vpop.f32.mrb[0].mxu0
          %720 = vdwg.mxu0
          %v721 = vpack.c.bf16 %v555, %v552
          %v722 = vpack.c.bf16 %v563, %v560
          %v723 = vpack.c.bf16 %v571, %v568
          %v724 = vpack.c.bf16 %v579, %v576
          %s725 = smul.u32 %s437, 4
          %s726 = smul.addr %s725, 8
          %s727 = scalar_lea.vmem [#allocation2], %s726
          %vm728 = vcmask 130048
          %729 = vst.msk [vmem:[%s727] sm:$0xff] %vm728, %v721
          %730 = vst.msk [vmem:[%s727 + $0x8] sm:$0xff] %vm728, %v722
          %731 = vst.msk [vmem:[%s727 + $0x10] sm:$0xff] %vm728, %v723
          %732 = vst.msk [vmem:[%s727 + $0x18] sm:$0xff] %vm728, %v724
          %v733 = vpack.c.bf16 %v694, %v691
          %v734 = vpack.c.bf16 %v702, %v699
          %v735 = vpack.c.bf16 %v710, %v707
          %v736 = vpack.c.bf16 %v718, %v715
          %s737 = smul.addr %s725, 8
          %s738 = scalar_lea.vmem [#allocation3], %s737
          %739 = vst.msk [vmem:[%s738] sm:$0xff] %vm728, %v733
          %740 = vst.msk [vmem:[%s738 + $0x8] sm:$0xff] %vm728, %v734
          %741 = vst.msk [vmem:[%s738 + $0x10] sm:$0xff] %vm728, %v735
          %742 = vst.msk [vmem:[%s738 + $0x18] sm:$0xff] %vm728, %v736
        $region69: #{ppsnet_refinement_forward.6} parent=63 // loop_footer
          %s441 = sadd.s32 1, %s437
        $region70: #{ppsnet_refinement_forward.6} parent=63 // loop_footer_branch
          %436 = sbr.rel target = $region66
        $region71: #{ppsnet_refinement_forward.6} parent=63 // loop_exit
          _
      $region64: #{ppsnet_refinement_forward.6} parent=59 // pred_fallthru
        _
      %v743 = vld [vmem:[%s402] sm:$0xff]
      %v744 = vld [vmem:[%s402 + $0x8] sm:$0xff]
      %v745 = vld [vmem:[%s402 + $0x10] sm:$0xff]
      %v746 = vld [vmem:[%s402 + $0x18] sm:$0xff]
      %v747 = vld [vmem:[%s402 + $0x20] sm:$0xff]
      %v748 = vld [vmem:[%s402 + $0x28] sm:$0xff]
      %v749 = vld [vmem:[%s402 + $0x30] sm:$0xff]
      %v750 = vld [vmem:[%s402 + $0x38] sm:$0xff]
      %v751 = vpack.c.bf16 %v744, %v743
      %v752 = vpack.c.bf16 %v746, %v745
      %v753 = vpack.c.bf16 %v748, %v747
      %v754 = vpack.c.bf16 %v750, %v749
      loop: start=0, step=1, limit=8
      $region72: #{ppsnet_refinement_forward.6} parent=59 // loop_pre_header
        _
      $region73: #{ppsnet_refinement_forward.6} parent=59 // loop_header
        %s756 = sphi 0, %s760
        %p757 = scmp.ge.s32.totalorder %s756, 8
        %v761 = vphi 0.0, %v1286
        %v762 = vphi 0.0, %v1287
        %v763 = vphi 0.0, %v1288
        %v764 = vphi 0.0, %v1289
        %v765 = vphi 0.0, %v1290
        %v766 = vphi 0.0, %v1291
        %v767 = vphi 0.0, %v1292
        %v768 = vphi 0.0, %v1293
      $region74: #{ppsnet_refinement_forward.6} parent=59 // loop_header_branch
        %759 = sbr.rel (%p757) target = $region78
      $region75: #{ppsnet_refinement_forward.6} parent=59 // loop_body
        %s769 = smul.u32 %s756, 16
        %s770 = smul.addr %s769, 4
        %s771 = scalar_lea.vmem %s2, %s770
        %v772 = vld [vmem:[%s771] sm:$0xf]
        %v773 = vld [vmem:[%s771 + $0x4] sm:$0xf]
        %v774 = vld [vmem:[%s771 + $0x8] sm:$0xf]
        %v775 = vld [vmem:[%s771 + $0xc] sm:$0xf]
        %v776 = vld [vmem:[%s771 + $0x10] sm:$0xf]
        %v777 = vld [vmem:[%s771 + $0x14] sm:$0xf]
        %v778 = vld [vmem:[%s771 + $0x18] sm:$0xf]
        %v779 = vld [vmem:[%s771 + $0x1c] sm:$0xf]
        %v780 = vld [vmem:[%s771 + $0x20] sm:$0xf]
        %v781 = vld [vmem:[%s771 + $0x24] sm:$0xf]
        %v782 = vld [vmem:[%s771 + $0x28] sm:$0xf]
        %v783 = vld [vmem:[%s771 + $0x2c] sm:$0xf]
        %v784 = vld [vmem:[%s771 + $0x30] sm:$0xf]
        %v785 = vld [vmem:[%s771 + $0x34] sm:$0xf]
        %v786 = vld [vmem:[%s771 + $0x38] sm:$0xf]
        %v787 = vld [vmem:[%s771 + $0x3c] sm:$0xf]
        %s788 = scalar_lea.vmem %s5, %s756
        %v789 = vld [vmem:[%s788] sm:$0x1]
        %v791 = vlaneseq
        %v792 = vshrl.u32 %v791, 7
        %v793 = vsub.s32 0, %v792
        %v794 = vrot.slane %v789, %v793
        %v812 = vunpack.c.l.b16 %v772
        %v813 = vunpack.c.l.b16 %v773
        %v814 = vunpack.c.l.b16 %v774
        %v815 = vunpack.c.l.b16 %v775
        %v816 = vunpack.c.l.b16 %v776
        %v817 = vunpack.c.l.b16 %v777
        %v818 = vunpack.c.l.b16 %v778
        %v819 = vunpack.c.l.b16 %v779
        %v820 = vunpack.c.l.b16 %v780
        %v821 = vunpack.c.l.b16 %v781
        %v822 = vunpack.c.l.b16 %v782
        %v823 = vunpack.c.l.b16 %v783
        %v824 = vunpack.c.l.b16 %v784
        %v825 = vunpack.c.l.b16 %v785
        %v826 = vunpack.c.l.b16 %v786
        %v827 = vunpack.c.l.b16 %v787
        %v828 = vpack.c.b16 %v813, %v812
        %v829 = vpack.c.b16 %v815, %v814
        %v830 = vpack.c.b16 %v817, %v816
        %v831 = vpack.c.b16 %v819, %v818
        %v832 = vpack.c.b16 %v821, %v820
        %v833 = vpack.c.b16 %v823, %v822
        %v834 = vpack.c.b16 %v825, %v824
        %v835 = vpack.c.b16 %v827, %v826
        %844 = vmatprep.subr.bf16.mxu0 0
        %845 = vmatpush1.bf16.msra.mxu0 %v828
        %846 = vmatprep.subr.bf16.mxu0 0
        %847 = vmatpush1.bf16.msra.mxu0 %v829
        %848 = vmatprep.subr.bf16.mxu0 0
        %849 = vmatpush1.bf16.msra.mxu0 %v830
        %850 = vmatprep.subr.bf16.mxu0 0
        %851 = vmatpush1.bf16.msra.mxu0 %v831
        %852 = vmatprep.subr.bf16.mxu0 0
        %853 = vmatpush1.bf16.msra.mxu0 %v832
        %854 = vmatprep.subr.bf16.mxu0 0
        %855 = vmatpush1.bf16.msra.mxu0 %v833
        %856 = vmatprep.subr.bf16.mxu0 0
        %857 = vmatpush1.bf16.msra.mxu0 %v834
        %858 = vmatprep.subr.bf16.mxu0 0
        %859 = vmatpush1.bf16.msra.mxu0 %v835
        %860 = vmatprep.subr.bf16.mxu0 0
        %861 = vmatpush1.bf16.msra.mxu0 0
        %862 = vmatprep.subr.bf16.mxu0 0
        %863 = vmatpush1.bf16.msra.mxu0 0
        %864 = vmatprep.subr.bf16.mxu0 0
        %865 = vmatpush1.bf16.msra.mxu0 0
        %866 = vmatprep.subr.bf16.mxu0 0
        %867 = vmatpush1.bf16.msra.mxu0 0
        %868 = vmatprep.subr.bf16.mxu0 0
        %869 = vmatpush1.bf16.msra.mxu0 0
        %870 = vmatprep.subr.bf16.mxu0 0
        %871 = vmatpush1.bf16.msra.mxu0 0
        %872 = vmatprep.subr.bf16.mxu0 0
        %873 = vmatpush1.bf16.msra.mxu0 0
        %874 = vmatprep.subr.bf16.mxu0 0
        %875 = vmatpush1.bf16.msra.mxu0 0
        %876 = vmatprep.mubr.bf16.mxu0 0
        %877 = vmatmul.mubr.bf16.gmra.mrb[0].mxu0 %v751
        %v878 = vpop.f32.mrb[0].mxu0
        %v879 = vadd.f32 %v794, %v878
        %v880 = vpop.f32.mrb[0].mxu0
        %v881 = vpop.f32.mrb[0].mxu0
        %v882 = vadd.f32 %v794, %v881
        %v883 = vpop.f32.mrb[0].mxu0
        %884 = vmatprep.mubr.bf16.mxu0 0
        %885 = vmatmul.mubr.bf16.gmra.mrb[0].mxu0 %v752
        %v886 = vpop.f32.mrb[0].mxu0
        %v887 = vadd.f32 %v794, %v886
        %v888 = vpop.f32.mrb[0].mxu0
        %v889 = vpop.f32.mrb[0].mxu0
        %v890 = vadd.f32 %v794, %v889
        %v891 = vpop.f32.mrb[0].mxu0
        %892 = vmatprep.mubr.bf16.mxu0 0
        %893 = vmatmul.mubr.bf16.gmra.mrb[0].mxu0 %v753
        %v894 = vpop.f32.mrb[0].mxu0
        %v895 = vadd.f32 %v794, %v894
        %v896 = vpop.f32.mrb[0].mxu0
        %v897 = vpop.f32.mrb[0].mxu0
        %v898 = vadd.f32 %v794, %v897
        %v899 = vpop.f32.mrb[0].mxu0
        %900 = vmatprep.mubr.bf16.mxu0 0
        %901 = vmatmul.mubr.bf16.gmra.mrb[0].mxu0 %v754
        %v902 = vpop.f32.mrb[0].mxu0
        %v903 = vadd.f32 %v794, %v902
        %v904 = vpop.f32.mrb[0].mxu0
        %v905 = vpop.f32.mrb[0].mxu0
        %v906 = vadd.f32 %v794, %v905
        %v907 = vpop.f32.mrb[0].mxu0
        %908 = vdwg.mxu0
        %v909 = vmul.f32 %v879, 0.25
        %v910 = vmul.f32 %v882, 0.25
        %v911 = vmul.f32 %v887, 0.25
        %v912 = vmul.f32 %v890, 0.25
        %v913 = vmul.f32 %v895, 0.25
        %v914 = vmul.f32 %v898, 0.25
        %v915 = vmul.f32 %v903, 0.25
        %v916 = vmul.f32 %v906, 0.25
        %v917 = vpack.c.bf16 %v910, %v909
        %v918 = vpack.c.bf16 %v912, %v911
        %v919 = vpack.c.bf16 %v914, %v913
        %v920 = vpack.c.bf16 %v916, %v915
        %s921 = smul.u32 %s756, 4
        %s922 = smul.addr %s921, 8
        %s923 = scalar_lea.vmem [#allocation2], %s922
        %v924 = vld [vmem:[%s923] sm:$0xff]
        %v925 = vld [vmem:[%s923 + $0x8] sm:$0xff]
        %v926 = vld [vmem:[%s923 + $0x10] sm:$0xff]
        %v927 = vld [vmem:[%s923 + $0x18] sm:$0xff]
        %vm928 = vcmask 130048
        %v930 = vsel %vm928, %v917, 0
        %v933 = vsel %vm928, %v918, 0
        %v936 = vsel %vm928, %v919, 0
        %v939 = vsel %vm928, %v920, 0
        %v942 = vsel %vm928, %v924, 0
        %v945 = vsel %vm928, %v925, 0
        %v948 = vsel %vm928, %v926, 0
        %v951 = vsel %vm928, %v927, 0
        %953 = vmatprep.subr.bf16.mxu0 0
        %954 = vmatpush1.bf16.xpose.msra.mxu0 %v942
        %955 = vmatprep.subr.bf16.mxu0 0
        %956 = vmatpush1.bf16.xpose.msra.mxu0 %v945
        %957 = vmatprep.subr.bf16.mxu0 0
        %958 = vmatpush1.bf16.xpose.msra.mxu0 %v948
        %959 = vmatprep.subr.bf16.mxu0 0
        %960 = vmatpush1.bf16.xpose.msra.mxu0 %v951
        %961 = vmatprep.subr.bf16.mxu0 0
        %962 = vmatpush1.bf16.xpose.msra.mxu0 0
        %963 = vmatprep.subr.bf16.mxu0 0
        %964 = vmatpush1.bf16.xpose.msra.mxu0 0
        %965 = vmatprep.subr.bf16.mxu0 0
        %966 = vmatpush1.bf16.xpose.msra.mxu0 0
        %967 = vmatprep.subr.bf16.mxu0 0
        %968 = vmatpush1.bf16.xpose.msra.mxu0 0
        %969 = vmatprep.subr.bf16.mxu0 0
        %970 = vmatpush1.bf16.xpose.msra.mxu0 0
        %971 = vmatprep.subr.bf16.mxu0 0
        %972 = vmatpush1.bf16.xpose.msra.mxu0 0
        %973 = vmatprep.subr.bf16.mxu0 0
        %974 = vmatpush1.bf16.xpose.msra.mxu0 0
        %975 = vmatprep.subr.bf16.mxu0 0
        %976 = vmatpush1.bf16.xpose.msra.mxu0 0
        %977 = vmatprep.subr.bf16.mxu0 0
        %978 = vmatpush1.bf16.xpose.msra.mxu0 0
        %979 = vmatprep.subr.bf16.mxu0 0
        %980 = vmatpush1.bf16.xpose.msra.mxu0 0
        %981 = vmatprep.subr.bf16.mxu0 0
        %982 = vmatpush1.bf16.xpose.msra.mxu0 0
        %983 = vmatprep.subr.bf16.mxu0 0
        %984 = vmatpush1.bf16.xpose.msra.mxu0 0
        %985 = vmatprep.mubr.bf16.mxu0 0
        %986 = vmatmul.mubr.bf16.gmra.mrb[0].mxu0 %v930
        %v987 = vpop.f32.mrb[0].mxu0
        %v988 = vadd.f32 0.0, %v987
        %v989 = vpop.f32.mrb[0].mxu0
        %v990 = vpop.f32.mrb[0].mxu0
        %v991 = vadd.f32 0.0, %v990
        %v992 = vpop.f32.mrb[0].mxu0
        %993 = vmatprep.mubr.bf16.mxu0 0
        %994 = vmatmul.mubr.bf16.gmra.mrb[0].mxu0 %v933
        %v995 = vpop.f32.mrb[0].mxu0
        %v996 = vadd.f32 0.0, %v995
        %v997 = vpop.f32.mrb[0].mxu0
        %v998 = vpop.f32.mrb[0].mxu0
        %v999 = vadd.f32 0.0, %v998
        %v1000 = vpop.f32.mrb[0].mxu0
        %1001 = vmatprep.mubr.bf16.mxu0 0
        %1002 = vmatmul.mubr.bf16.gmra.mrb[0].mxu0 %v936
        %v1003 = vpop.f32.mrb[0].mxu0
        %v1004 = vadd.f32 0.0, %v1003
        %v1005 = vpop.f32.mrb[0].mxu0
        %v1006 = vpop.f32.mrb[0].mxu0
        %v1007 = vadd.f32 0.0, %v1006
        %v1008 = vpop.f32.mrb[0].mxu0
        %1009 = vmatprep.mubr.bf16.mxu0 0
        %1010 = vmatmul.mubr.bf16.gmra.mrb[0].mxu0 %v939
        %v1011 = vpop.f32.mrb[0].mxu0
        %v1012 = vadd.f32 0.0, %v1011
        %v1013 = vpop.f32.mrb[0].mxu0
        %v1014 = vpop.f32.mrb[0].mxu0
        %v1015 = vadd.f32 0.0, %v1014
        %v1016 = vpop.f32.mrb[0].mxu0
        %1017 = vdwg.mxu0
        %vm1018 = vcmask 523264
        %v1019 = vsel %vm1018, %v988, -inf
        %1020 = vmax.xlane.f32.xlu0 %v1019
        %v1021 = vpop.xlane.xlu0 %1020
        %v1022 = vsel %vm1018, %v991, -inf
        %1023 = vmax.xlane.f32.xlu0 %v1022
        %v1024 = vpop.xlane.xlu0 %1023
        %v1025 = vsel %vm1018, %v996, -inf
        %1026 = vmax.xlane.f32.xlu0 %v1025
        %v1027 = vpop.xlane.xlu0 %1026
        %v1028 = vsel %vm1018, %v999, -inf
        %1029 = vmax.xlane.f32.xlu0 %v1028
        %v1030 = vpop.xlane.xlu0 %1029
        %v1031 = vsel %vm1018, %v1004, -inf
        %1032 = vmax.xlane.f32.xlu0 %v1031
        %v1033 = vpop.xlane.xlu0 %1032
        %v1034 = vsel %vm1018, %v1007, -inf
        %1035 = vmax.xlane.f32.xlu0 %v1034
        %v1036 = vpop.xlane.xlu0 %1035
        %v1037 = vsel %vm1018, %v1012, -inf
        %1038 = vmax.xlane.f32.xlu0 %v1037
        %v1039 = vpop.xlane.xlu0 %1038
        %v1040 = vsel %vm1018, %v1015, -inf
        %1041 = vmax.xlane.f32.xlu0 %v1040
        %v1042 = vpop.xlane.xlu0 %1041
        %v1043 = vsub.f32 %v988, %v1021
        %v1044 = vsub.f32 %v991, %v1024
        %v1045 = vsub.f32 %v996, %v1027
        %v1046 = vsub.f32 %v999, %v1030
        %v1047 = vsub.f32 %v1004, %v1033
        %v1048 = vsub.f32 %v1007, %v1036
        %v1049 = vsub.f32 %v1012, %v1039
        %v1050 = vsub.f32 %v1015, %v1042
        %v1051 = vmul.f32 %v1043, 1.442695
        %v1052 = vpow.pop %v1051
        %v1053 = vmul.f32 %v1044, 1.442695
        %v1054 = vpow.pop %v1053
        %v1055 = vmul.f32 %v1045, 1.442695
        %v1056 = vpow.pop %v1055
        %v1057 = vmul.f32 %v1046, 1.442695
        %v1058 = vpow.pop %v1057
        %v1059 = vmul.f32 %v1047, 1.442695
        %v1060 = vpow.pop %v1059
        %v1061 = vmul.f32 %v1048, 1.442695
        %v1062 = vpow.pop %v1061
        %v1063 = vmul.f32 %v1049, 1.442695
        %v1064 = vpow.pop %v1063
        %v1065 = vmul.f32 %v1050, 1.442695
        %v1066 = vpow.pop %v1065
        %v1067 = vsel %vm1018, %v1052, 0.0
        %1068 = vadd.xlane.f32.xlu0 %v1067
        %v1069 = vpop.xlane.xlu0 %1068
        %v1070 = vsel %vm1018, %v1054, 0.0
        %1071 = vadd.xlane.f32.xlu0 %v1070
        %v1072 = vpop.xlane.xlu0 %1071
        %v1073 = vsel %vm1018, %v1056, 0.0
        %1074 = vadd.xlane.f32.xlu0 %v1073
        %v1075 = vpop.xlane.xlu0 %1074
        %v1076 = vsel %vm1018, %v1058, 0.0
        %1077 = vadd.xlane.f32.xlu0 %v1076
        %v1078 = vpop.xlane.xlu0 %1077
        %v1079 = vsel %vm1018, %v1060, 0.0
        %1080 = vadd.xlane.f32.xlu0 %v1079
        %v1081 = vpop.xlane.xlu0 %1080
        %v1082 = vsel %vm1018, %v1062, 0.0
        %1083 = vadd.xlane.f32.xlu0 %v1082
        %v1084 = vpop.xlane.xlu0 %1083
        %v1085 = vsel %vm1018, %v1064, 0.0
        %1086 = vadd.xlane.f32.xlu0 %v1085
        %v1087 = vpop.xlane.xlu0 %1086
        %v1088 = vsel %vm1018, %v1066, 0.0
        %1089 = vadd.xlane.f32.xlu0 %v1088
        %v1090 = vpop.xlane.xlu0 %1089
        %v1091 = vrcp.pop %v1069
        %v1092 = vrcp.pop %v1072
        %v1093 = vrcp.pop %v1075
        %v1094 = vrcp.pop %v1078
        %v1095 = vrcp.pop %v1081
        %v1096 = vrcp.pop %v1084
        %v1097 = vrcp.pop %v1087
        %v1098 = vrcp.pop %v1090
        %v1099 = vmul.f32 %v1052, %v1091
        %v1100 = vmul.f32 %v1054, %v1092
        %v1101 = vmul.f32 %v1056, %v1093
        %v1102 = vmul.f32 %v1058, %v1094
        %v1103 = vmul.f32 %v1060, %v1095
        %v1104 = vmul.f32 %v1062, %v1096
        %v1105 = vmul.f32 %v1064, %v1097
        %v1106 = vmul.f32 %v1066, %v1098
        %v1107 = vpack.c.bf16 %v1100, %v1099
        %v1108 = vpack.c.bf16 %v1102, %v1101
        %v1109 = vpack.c.bf16 %v1104, %v1103
        %v1110 = vpack.c.bf16 %v1106, %v1105
        %s1111 = smul.addr %s921, 8
        %s1112 = scalar_lea.vmem [#allocation3], %s1111
        %v1113 = vld [vmem:[%s1112] sm:$0xff]
        %v1114 = vld [vmem:[%s1112 + $0x8] sm:$0xff]
        %v1115 = vld [vmem:[%s1112 + $0x10] sm:$0xff]
        %v1116 = vld [vmem:[%s1112 + $0x18] sm:$0xff]
        %v1118 = vsel %vm1018, %v1107, 0
        %v1121 = vsel %vm1018, %v1108, 0
        %v1124 = vsel %vm1018, %v1109, 0
        %v1127 = vsel %vm1018, %v1110, 0
        %1129 = vmatprep.subr.bf16.mxu0 0
        %1130 = vmatpush1.bf16.msra.mxu0 %v1113
        %1131 = vmatprep.subr.bf16.mxu0 0
        %1132 = vmatpush1.bf16.msra.mxu0 %v1114
        %1133 = vmatprep.subr.bf16.mxu0 0
        %1134 = vmatpush1.bf16.msra.mxu0 %v1115
        %1135 = vmatprep.subr.bf16.mxu0 0
        %1136 = vmatpush1.bf16.msra.mxu0 %v1116
        %1137 = vmatprep.subr.bf16.mxu0 0
        %1138 = vmatpush1.bf16.msra.mxu0 0
        %1139 = vmatprep.subr.bf16.mxu0 0
        %1140 = vmatpush1.bf16.msra.mxu0 0
        %1141 = vmatprep.subr.bf16.mxu0 0
        %1142 = vmatpush1.bf16.msra.mxu0 0
        %1143 = vmatprep.subr.bf16.mxu0 0
        %1144 = vmatpush1.bf16.msra.mxu0 0
        %1145 = vmatprep.subr.bf16.mxu0 0
        %1146 = vmatpush1.bf16.msra.mxu0 0
        %1147 = vmatprep.subr.bf16.mxu0 0
        %1148 = vmatpush1.bf16.msra.mxu0 0
        %1149 = vmatprep.subr.bf16.mxu0 0
        %1150 = vmatpush1.bf16.msra.mxu0 0
        %1151 = vmatprep.subr.bf16.mxu0 0
        %1152 = vmatpush1.bf16.msra.mxu0 0
        %1153 = vmatprep.subr.bf16.mxu0 0
        %1154 = vmatpush1.bf16.msra.mxu0 0
        %1155 = vmatprep.subr.bf16.mxu0 0
        %1156 = vmatpush1.bf16.msra.mxu0 0
        %1157 = vmatprep.subr.bf16.mxu0 0
        %1158 = vmatpush1.bf16.msra.mxu0 0
        %1159 = vmatprep.subr.bf16.mxu0 0
        %1160 = vmatpush1.bf16.msra.mxu0 0
        %1161 = vmatprep.mubr.bf16.mxu0 0
        %1162 = vmatmul.mubr.bf16.gmra.mrb[0].mxu0 %v1118
        %v1163 = vpop.f32.mrb[0].mxu0
        %v1164 = vadd.f32 0.0, %v1163
        %v1165 = vpop.f32.mrb[0].mxu0
        %v1166 = vpop.f32.mrb[0].mxu0
        %v1167 = vadd.f32 0.0, %v1166
        %v1168 = vpop.f32.mrb[0].mxu0
        %1169 = vmatprep.mubr.bf16.mxu0 0
        %1170 = vmatmul.mubr.bf16.gmra.mrb[0].mxu0 %v1121
        %v1171 = vpop.f32.mrb[0].mxu0
        %v1172 = vadd.f32 0.0, %v1171
        %v1173 = vpop.f32.mrb[0].mxu0
        %v1174 = vpop.f32.mrb[0].mxu0
        %v1175 = vadd.f32 0.0, %v1174
        %v1176 = vpop.f32.mrb[0].mxu0
        %1177 = vmatprep.mubr.bf16.mxu0 0
        %1178 = vmatmul.mubr.bf16.gmra.mrb[0].mxu0 %v1124
        %v1179 = vpop.f32.mrb[0].mxu0
        %v1180 = vadd.f32 0.0, %v1179
        %v1181 = vpop.f32.mrb[0].mxu0
        %v1182 = vpop.f32.mrb[0].mxu0
        %v1183 = vadd.f32 0.0, %v1182
        %v1184 = vpop.f32.mrb[0].mxu0
        %1185 = vmatprep.mubr.bf16.mxu0 0
        %1186 = vmatmul.mubr.bf16.gmra.mrb[0].mxu0 %v1127
        %v1187 = vpop.f32.mrb[0].mxu0
        %v1188 = vadd.f32 0.0, %v1187
        %v1189 = vpop.f32.mrb[0].mxu0
        %v1190 = vpop.f32.mrb[0].mxu0
        %v1191 = vadd.f32 0.0, %v1190
        %v1192 = vpop.f32.mrb[0].mxu0
        %1193 = vdwg.mxu0
        %v1194 = vpack.c.bf16 %v1167, %v1164
        %v1195 = vpack.c.bf16 %v1175, %v1172
        %v1196 = vpack.c.bf16 %v1183, %v1180
        %v1197 = vpack.c.bf16 %v1191, %v1188
        %s1198 = smul.u32 %s756, 2
        %s1199 = smul.addr %s1198, 4
        %s1200 = scalar_lea.vmem %s8, %s1199
        %v1201 = vld [vmem:[%s1200] sm:$0xf]
        %v1202 = vld [vmem:[%s1200 + $0x4] sm:$0xf]
        %v1205 = vunpack.c.l.b16 %v1201
        %v1206 = vunpack.c.l.b16 %v1202
        %v1207 = vpack.c.b16 %v1206, %v1205
        %v1210 = vsel %vm928, %v1194, 0
        %v1213 = vsel %vm928, %v1195, 0
        %v1216 = vsel %vm928, %v1196, 0
        %v1219 = vsel %vm928, %v1197, 0
        %1221 = vmatprep.subr.bf16.mxu0 0
        %1222 = vmatpush1.bf16.msra.mxu0 %v1207
        %1223 = vmatprep.subr.bf16.mxu0 0
        %1224 = vmatpush1.bf16.msra.mxu0 0
        %1225 = vmatprep.subr.bf16.mxu0 0
        %1226 = vmatpush1.bf16.msra.mxu0 0
        %1227 = vmatprep.subr.bf16.mxu0 0
        %1228 = vmatpush1.bf16.msra.mxu0 0
        %1229 = vmatprep.subr.bf16.mxu0 0
        %1230 = vmatpush1.bf16.msra.mxu0 0
        %1231 = vmatprep.subr.bf16.mxu0 0
        %1232 = vmatpush1.bf16.msra.mxu0 0
        %1233 = vmatprep.subr.bf16.mxu0 0
        %1234 = vmatpush1.bf16.msra.mxu0 0
        %1235 = vmatprep.subr.bf16.mxu0 0
        %1236 = vmatpush1.bf16.msra.mxu0 0
        %1237 = vmatprep.subr.bf16.mxu0 0
        %1238 = vmatpush1.bf16.msra.mxu0 0
        %1239 = vmatprep.subr.bf16.mxu0 0
        %1240 = vmatpush1.bf16.msra.mxu0 0
        %1241 = vmatprep.subr.bf16.mxu0 0
        %1242 = vmatpush1.bf16.msra.mxu0 0
        %1243 = vmatprep.subr.bf16.mxu0 0
        %1244 = vmatpush1.bf16.msra.mxu0 0
        %1245 = vmatprep.subr.bf16.mxu0 0
        %1246 = vmatpush1.bf16.msra.mxu0 0
        %1247 = vmatprep.subr.bf16.mxu0 0
        %1248 = vmatpush1.bf16.msra.mxu0 0
        %1249 = vmatprep.subr.bf16.mxu0 0
        %1250 = vmatpush1.bf16.msra.mxu0 0
        %1251 = vmatprep.subr.bf16.mxu0 0
        %1252 = vmatpush1.bf16.msra.mxu0 0
        %1253 = vmatprep.mubr.bf16.mxu0 0
        %1254 = vmatmul.mubr.bf16.gmra.mrb[0].mxu0 %v1210
        %v1255 = vpop.f32.mrb[0].mxu0
        %v1256 = vadd.f32 0.0, %v1255
        %v1257 = vpop.f32.mrb[0].mxu0
        %v1258 = vpop.f32.mrb[0].mxu0
        %v1259 = vadd.f32 0.0, %v1258
        %v1260 = vpop.f32.mrb[0].mxu0
        %1261 = vmatprep.mubr.bf16.mxu0 0
        %1262 = vmatmul.mubr.bf16.gmra.mrb[0].mxu0 %v1213
        %v1263 = vpop.f32.mrb[0].mxu0
        %v1264 = vadd.f32 0.0, %v1263
        %v1265 = vpop.f32.mrb[0].mxu0
        %v1266 = vpop.f32.mrb[0].mxu0
        %v1267 = vadd.f32 0.0, %v1266
        %v1268 = vpop.f32.mrb[0].mxu0
        %1269 = vmatprep.mubr.bf16.mxu0 0
        %1270 = vmatmul.mubr.bf16.gmra.mrb[0].mxu0 %v1216
        %v1271 = vpop.f32.mrb[0].mxu0
        %v1272 = vadd.f32 0.0, %v1271
        %v1273 = vpop.f32.mrb[0].mxu0
        %v1274 = vpop.f32.mrb[0].mxu0
        %v1275 = vadd.f32 0.0, %v1274
        %v1276 = vpop.f32.mrb[0].mxu0
        %1277 = vmatprep.mubr.bf16.mxu0 0
        %1278 = vmatmul.mubr.bf16.gmra.mrb[0].mxu0 %v1219
        %v1279 = vpop.f32.mrb[0].mxu0
        %v1280 = vadd.f32 0.0, %v1279
        %v1281 = vpop.f32.mrb[0].mxu0
        %v1282 = vpop.f32.mrb[0].mxu0
        %v1283 = vadd.f32 0.0, %v1282
        %v1284 = vpop.f32.mrb[0].mxu0
        %1285 = vdwg.mxu0
        %v1286 = vadd.f32 %v761, %v1256
        %v1287 = vadd.f32 %v762, %v1259
        %v1288 = vadd.f32 %v763, %v1264
        %v1289 = vadd.f32 %v764, %v1267
        %v1290 = vadd.f32 %v765, %v1272
        %v1291 = vadd.f32 %v766, %v1275
        %v1292 = vadd.f32 %v767, %v1280
        %v1293 = vadd.f32 %v768, %v1283
      $region76: #{ppsnet_refinement_forward.6} parent=59 // loop_footer
        %s760 = sadd.s32 1, %s756
      $region77: #{ppsnet_refinement_forward.6} parent=59 // loop_footer_branch
        %755 = sbr.rel target = $region73
      $region78: #{ppsnet_refinement_forward.6} parent=59 // loop_exit
        _
      %v1294 = vld [vmem:[%s9] sm:$0x1]
      %v1296 = vlaneseq
      %v1297 = vshrl.u32 %v1296, 7
      %v1298 = vsub.s32 0, %v1297
      %v1299 = vrot.slane %v1294, %v1298
      %v1301 = vadd.f32 %v761, %v1299
      %v1302 = vadd.f32 %v762, %v1299
      %v1303 = vadd.f32 %v763, %v1299
      %v1304 = vadd.f32 %v764, %v1299
      %v1305 = vadd.f32 %v765, %v1299
      %v1306 = vadd.f32 %v766, %v1299
      %v1307 = vadd.f32 %v767, %v1299
      %v1308 = vadd.f32 %v768, %v1299
      %1309 = vst [vmem:[%s417] sm:$0xff] %v1301
      %1310 = vst [vmem:[%s417 + $0x8] sm:$0xff] %v1302
      %1311 = vst [vmem:[%s417 + $0x10] sm:$0xff] %v1303
      %1312 = vst [vmem:[%s417 + $0x18] sm:$0xff] %v1304
      %1313 = vst [vmem:[%s417 + $0x20] sm:$0xff] %v1305
      %1314 = vst [vmem:[%s417 + $0x28] sm:$0xff] %v1306
      %1315 = vst [vmem:[%s417 + $0x30] sm:$0xff] %v1307
      %1316 = vst [vmem:[%s417 + $0x38] sm:$0xff] %v1308
      %s1317 = smul.u32 8, %s26
      %p1318 = scmp.lt.s32.totalorder %s25, 1
      %s1319 = scalar_select %p1318, %s25, 1
      %p1320 = scmp.lt.s32.totalorder %s1317, 7
      %s1321 = scalar_select %p1320, %s1317, 7
      %s1322 = smul.addr %s1319, 8
      %s1323 = sadd.s32 %s1321, %s1322
      %s1324 = smul.addr %s1323, 8
      %s1325 = scalar_lea.vmem %s10, %s1324
      // Predicated region
      $region79: #{ppsnet_refinement_forward.6} parent=59 // pred_check
        %p1326 = pneg %p275
      $region80: #{ppsnet_refinement_forward.6} parent=59 // pred_check_branch
        %1328 = sbr.rel (%p1326) target = $region82
      $region81: #{ppsnet_refinement_forward.6} parent=59 // pred_region
        %s1329 = smul.u32 8, %s26
      $region82: #{ppsnet_refinement_forward.6} parent=59 // pred_fallthru
        _
    $region60: #{ppsnet_refinement_forward.6} parent=5 // pred_fallthru
      _
    %p1330 = scmp.le.s32.totalorder 2, %s16
    // Predicated region
    $region83: #{ppsnet_refinement_forward.6} parent=5 // pred_check
      %p1331 = pneg %p1330
    $region84: #{ppsnet_refinement_forward.6} parent=5 // pred_check_branch
      %1333 = sbr.rel (%p1331) target = $region86
    $region85: #{ppsnet_refinement_forward.6} parent=5 // pred_region
      %s1334 = ssub.s32 %s16, 2
      // Predicated region
      $region87: #{ppsnet_refinement_forward.6} parent=85 // pred_check
        %p1335 = pneg %p281
      $region88: #{ppsnet_refinement_forward.6} parent=85 // pred_check_branch
        %1337 = sbr.rel (%p1335) target = $region90
      $region89: #{ppsnet_refinement_forward.6} parent=85 // pred_region
        %s1338 = smul.u32 8, %s28
        %p1339 = scmp.lt.s32.totalorder %s27, 1
        %s1340 = scalar_select %p1339, %s27, 1
        %p1341 = scmp.lt.s32.totalorder %s1338, 7
        %s1342 = scalar_select %p1341, %s1338, 7
        %s1343 = smul.addr %s1340, 8
        %s1344 = sadd.s32 %s1342, %s1343
        %s1345 = smul.addr %s1344, 8
        %s1346 = scalar_lea.vmem %s10, %s1345
      $region90: #{ppsnet_refinement_forward.6} parent=85 // pred_fallthru
        _
    $region86: #{ppsnet_refinement_forward.6} parent=5 // pred_fallthru
      _
  $region6: #{ppsnet_refinement_forward.6} parent=0 // loop_footer
    %s20 = sadd.s32 1, %s16
  $region7: #{ppsnet_refinement_forward.6} parent=0 // loop_footer_branch
    %15 = sbr.rel target = $region3
  $region8: #{ppsnet_refinement_forward.6} parent=0 // loop_exit
    _

// kernel: ppsnet_refinement_forward.7
$region0: #{ppsnet_refinement_forward.7}
  #allocation0 [shape = 'u32[]', space=smem, size = 0x4, offset = 0x4, fixed_abs, tag = 'smem constant byte address 0x4 - core index']
  #allocation1 [shape = 'u32[144,128]{1,0:T(1,128)}', space=vmem, size = 0x12000, scoped, tag = 'internal scratch']
  %s0 = inlined_call_operand.vmem [shape: bf16[64,1152], index: 0, kind: input, shape index: {}]
  %s1 = inlined_call_operand.vmem [shape: bf16[1152,128], index: 1, kind: input, shape index: {}]
  %s2 = inlined_call_operand.vmem [shape: f32[64,1], index: 2, kind: input, shape index: {}]
  %s3 = inlined_call_operand.vmem [shape: f32[64,128], index: 3, kind: output, shape index: {}]
  %s4 = sld [smem:[#allocation0]]
  $region22: #{ppsnet_refinement_forward.7} parent=0
    _
  %s6 = ssub.s32 1, %s4
  %s7 = scalar_select 0, %s6, %s4
  // Predicated region
  $region2: #{ppsnet_refinement_forward.7} parent=0 // pred_check
    _
  $region3: #{ppsnet_refinement_forward.7} parent=0 // pred_check_branch
    %9 = sbr.rel (0) target = $region5
  $region4: #{ppsnet_refinement_forward.7} parent=0 // pred_region
    _
  $region5: #{ppsnet_refinement_forward.7} parent=0 // pred_fallthru
    _
  // Predicated region
  $region6: #{ppsnet_refinement_forward.7} parent=0 // pred_check
    _
  $region7: #{ppsnet_refinement_forward.7} parent=0 // pred_check_branch
    %11 = sbr.rel (0) target = $region9
  $region8: #{ppsnet_refinement_forward.7} parent=0 // pred_region
    _
  $region9: #{ppsnet_refinement_forward.7} parent=0 // pred_fallthru
    _
  // Predicated region
  $region10: #{ppsnet_refinement_forward.7} parent=0 // pred_check
    _
  $region11: #{ppsnet_refinement_forward.7} parent=0 // pred_check_branch
    %13 = sbr.rel (0) target = $region13
  $region12: #{ppsnet_refinement_forward.7} parent=0 // pred_region
    _
  $region13: #{ppsnet_refinement_forward.7} parent=0 // pred_fallthru
    _
  %v15 = vld [vmem:[%s0] sm:$0xff]
  %v16 = vld [vmem:[%s0 + $0x8] sm:$0xff]
  %v17 = vld [vmem:[%s0 + $0x10] sm:$0xff]
  %v18 = vld [vmem:[%s0 + $0x18] sm:$0xff]
  %v19 = vld [vmem:[%s0 + $0x20] sm:$0xf]
  %v20 = vld [vmem:[%s0 + $0x24] sm:$0xff]
  %v21 = vld [vmem:[%s0 + $0x2c] sm:$0xff]
  %v22 = vld [vmem:[%s0 + $0x34] sm:$0xff]
  %v23 = vld [vmem:[%s0 + $0x3c] sm:$0xff]
  %v24 = vld [vmem:[%s0 + $0x44] sm:$0xf]
  %v25 = vld [vmem:[%s0 + $0x48] sm:$0xff]
  %v26 = vld [vmem:[%s0 + $0x50] sm:$0xff]
  %v27 = vld [vmem:[%s0 + $0x58] sm:$0xff]
  %v28 = vld [vmem:[%s0 + $0x60] sm:$0xff]
  %v29 = vld [vmem:[%s0 + $0x68] sm:$0xf]
  %v30 = vld [vmem:[%s0 + $0x6c] sm:$0xff]
  %v31 = vld [vmem:[%s0 + $0x74] sm:$0xff]
  %v32 = vld [vmem:[%s0 + $0x7c] sm:$0xff]
  %v33 = vld [vmem:[%s0 + $0x84] sm:$0xff]
  %v34 = vld [vmem:[%s0 + $0x8c] sm:$0xf]
  %v35 = vld [vmem:[%s0 + $0x90] sm:$0xff]
  %v36 = vld [vmem:[%s0 + $0x98] sm:$0xff]
  %v37 = vld [vmem:[%s0 + $0xa0] sm:$0xff]
  %v38 = vld [vmem:[%s0 + $0xa8] sm:$0xff]
  %v39 = vld [vmem:[%s0 + $0xb0] sm:$0xf]
  %v40 = vld [vmem:[%s0 + $0xb4] sm:$0xff]
  %v41 = vld [vmem:[%s0 + $0xbc] sm:$0xff]
  %v42 = vld [vmem:[%s0 + $0xc4] sm:$0xff]
  %v43 = vld [vmem:[%s0 + $0xcc] sm:$0xff]
  %v44 = vld [vmem:[%s0 + $0xd4] sm:$0xf]
  %v45 = vld [vmem:[%s0 + $0xd8] sm:$0xff]
  %v46 = vld [vmem:[%s0 + $0xe0] sm:$0xff]
  %v47 = vld [vmem:[%s0 + $0xe8] sm:$0xff]
  %v48 = vld [vmem:[%s0 + $0xf0] sm:$0xff]
  %v49 = vld [vmem:[%s0 + $0xf8] sm:$0xf]
  %v50 = vld [vmem:[%s0 + $0xfc] sm:$0xff]
  %v51 = vld [vmem:[%s0 + $0x104] sm:$0xff]
  %v52 = vld [vmem:[%s0 + $0x10c] sm:$0xff]
  %v53 = vld [vmem:[%s0 + $0x114] sm:$0xff]
  %v54 = vld [vmem:[%s0 + $0x11c] sm:$0xf]
  %v55 = vld [vmem:[%s1] sm:$0xf]
  %v56 = vld [vmem:[%s1 + $0x4] sm:$0xf]
  %v57 = vld [vmem:[%s1 + $0x8] sm:$0xf]
  %v58 = vld [vmem:[%s1 + $0xc] sm:$0xf]
  %v59 = vld [vmem:[%s1 + $0x10] sm:$0xf]
  %v60 = vld [vmem:[%s1 + $0x14] sm:$0xf]
  %v61 = vld [vmem:[%s1 + $0x18] sm:$0xf]
  %v62 = vld [vmem:[%s1 + $0x1c] sm:$0xf]
  %v63 = vld [vmem:[%s1 + $0x20] sm:$0xf]
  %v64 = vld [vmem:[%s1 + $0x24] sm:$0xf]
  %v65 = vld [vmem:[%s1 + $0x28] sm:$0xf]
  %v66 = vld [vmem:[%s1 + $0x2c] sm:$0xf]
  %v67 = vld [vmem:[%s1 + $0x30] sm:$0xf]
  %v68 = vld [vmem:[%s1 + $0x34] sm:$0xf]
  %v69 = vld [vmem:[%s1 + $0x38] sm:$0xf]
  %v70 = vld [vmem:[%s1 + $0x3c] sm:$0xf]
  %v71 = vld [vmem:[%s1 + $0x40] sm:$0xf]
  %v72 = vld [vmem:[%s1 + $0x44] sm:$0xf]
  %v73 = vld [vmem:[%s1 + $0x48] sm:$0xf]
  %v74 = vld [vmem:[%s1 + $0x4c] sm:$0xf]
  %v75 = vld [vmem:[%s1 + $0x50] sm:$0xf]
  %v76 = vld [vmem:[%s1 + $0x54] sm:$0xf]
  %v77 = vld [vmem:[%s1 + $0x58] sm:$0xf]
  %v78 = vld [vmem:[%s1 + $0x5c] sm:$0xf]
  %v79 = vld [vmem:[%s1 + $0x60] sm:$0xf]
  %v80 = vld [vmem:[%s1 + $0x64] sm:$0xf]
  %v81 = vld [vmem:[%s1 + $0x68] sm:$0xf]
  %v82 = vld [vmem:[%s1 + $0x6c] sm:$0xf]
  %v83 = vld [vmem:[%s1 + $0x70] sm:$0xf]
  %v84 = vld [vmem:[%s1 + $0x74] sm:$0xf]
  %v85 = vld [vmem:[%s1 + $0x78] sm:$0xf]
  %v86 = vld [vmem:[%s1 + $0x7c] sm:$0xf]
  %v87 = vld [vmem:[%s1 + $0x80] sm:$0xf]
  %v88 = vld [vmem:[%s1 + $0x84] sm:$0xf]
  %v89 = vld [vmem:[%s1 + $0x88] sm:$0xf]
  %v90 = vld [vmem:[%s1 + $0x8c] sm:$0xf]
  %v91 = vld [vmem:[%s1 + $0x90] sm:$0xf]
  %v92 = vld [vmem:[%s1 + $0x94] sm:$0xf]
  %v93 = vld [vmem:[%s1 + $0x98] sm:$0xf]
  %v94 = vld [vmem:[%s1 + $0x9c] sm:$0xf]
  %v95 = vld [vmem:[%s1 + $0xa0] sm:$0xf]
  %v96 = vld [vmem:[%s1 + $0xa4] sm:$0xf]
  %v97 = vld [vmem:[%s1 + $0xa8] sm:$0xf]
  %v98 = vld [vmem:[%s1 + $0xac] sm:$0xf]
  %v99 = vld [vmem:[%s1 + $0xb0] sm:$0xf]
  %v100 = vld [vmem:[%s1 + $0xb4] sm:$0xf]
  %v101 = vld [vmem:[%s1 + $0xb8] sm:$0xf]
  %v102 = vld [vmem:[%s1 + $0xbc] sm:$0xf]
  %v103 = vld [vmem:[%s1 + $0xc0] sm:$0xf]
  %v104 = vld [vmem:[%s1 + $0xc4] sm:$0xf]
  %v105 = vld [vmem:[%s1 + $0xc8] sm:$0xf]
  %v106 = vld [vmem:[%s1 + $0xcc] sm:$0xf]
  %v107 = vld [vmem:[%s1 + $0xd0] sm:$0xf]
  %v108 = vld [vmem:[%s1 + $0xd4] sm:$0xf]
  %v109 = vld [vmem:[%s1 + $0xd8] sm:$0xf]
  %v110 = vld [vmem:[%s1 + $0xdc] sm:$0xf]
  %v111 = vld [vmem:[%s1 + $0xe0] sm:$0xf]
  %v112 = vld [vmem:[%s1 + $0xe4] sm:$0xf]
  %v113 = vld [vmem:[%s1 + $0xe8] sm:$0xf]
  %v114 = vld [vmem:[%s1 + $0xec] sm:$0xf]
  %v115 = vld [vmem:[%s1 + $0xf0] sm:$0xf]
  %v116 = vld [vmem:[%s1 + $0xf4] sm:$0xf]
  %v117 = vld [vmem:[%s1 + $0xf8] sm:$0xf]
  %v118 = vld [vmem:[%s1 + $0xfc] sm:$0xf]
  %v119 = vld [vmem:[%s1 + $0x100] sm:$0xf]
  %v120 = vld [vmem:[%s1 + $0x104] sm:$0xf]
  %v121 = vld [vmem:[%s1 + $0x108] sm:$0xf]
  %v122 = vld [vmem:[%s1 + $0x10c] sm:$0xf]
  %v123 = vld [vmem:[%s1 + $0x110] sm:$0xf]
  %v124 = vld [vmem:[%s1 + $0x114] sm:$0xf]
  %v125 = vld [vmem:[%s1 + $0x118] sm:$0xf]
  %v126 = vld [vmem:[%s1 + $0x11c] sm:$0xf]
  %v127 = vld [vmem:[%s1 + $0x120] sm:$0xf]
  %v128 = vld [vmem:[%s1 + $0x124] sm:$0xf]
  %v129 = vld [vmem:[%s1 + $0x128] sm:$0xf]
  %v130 = vld [vmem:[%s1 + $0x12c] sm:$0xf]
  %v131 = vld [vmem:[%s1 + $0x130] sm:$0xf]
  %v132 = vld [vmem:[%s1 + $0x134] sm:$0xf]
  %v133 = vld [vmem:[%s1 + $0x138] sm:$0xf]
  %v134 = vld [vmem:[%s1 + $0x13c] sm:$0xf]
  %v135 = vld [vmem:[%s1 + $0x140] sm:$0xf]
  %v136 = vld [vmem:[%s1 + $0x144] sm:$0xf]
  %v137 = vld [vmem:[%s1 + $0x148] sm:$0xf]
  %v138 = vld [vmem:[%s1 + $0x14c] sm:$0xf]
  %v139 = vld [vmem:[%s1 + $0x150] sm:$0xf]
  %v140 = vld [vmem:[%s1 + $0x154] sm:$0xf]
  %v141 = vld [vmem:[%s1 + $0x158] sm:$0xf]
  %v142 = vld [vmem:[%s1 + $0x15c] sm:$0xf]
  %v143 = vld [vmem:[%s1 + $0x160] sm:$0xf]
  %v144 = vld [vmem:[%s1 + $0x164] sm:$0xf]
  %v145 = vld [vmem:[%s1 + $0x168] sm:$0xf]
  %v146 = vld [vmem:[%s1 + $0x16c] sm:$0xf]
  %v147 = vld [vmem:[%s1 + $0x170] sm:$0xf]
  %v148 = vld [vmem:[%s1 + $0x174] sm:$0xf]
  %v149 = vld [vmem:[%s1 + $0x178] sm:$0xf]
  %v150 = vld [vmem:[%s1 + $0x17c] sm:$0xf]
  %v151 = vld [vmem:[%s1 + $0x180] sm:$0xf]
  %v152 = vld [vmem:[%s1 + $0x184] sm:$0xf]
  %v153 = vld [vmem:[%s1 + $0x188] sm:$0xf]
  %v154 = vld [vmem:[%s1 + $0x18c] sm:$0xf]
  %v155 = vld [vmem:[%s1 + $0x190] sm:$0xf]
  %v156 = vld [vmem:[%s1 + $0x194] sm:$0xf]
  %v157 = vld [vmem:[%s1 + $0x198] sm:$0xf]
  %v158 = vld [vmem:[%s1 + $0x19c] sm:$0xf]
  %v159 = vld [vmem:[%s1 + $0x1a0] sm:$0xf]
  %v160 = vld [vmem:[%s1 + $0x1a4] sm:$0xf]
  %v161 = vld [vmem:[%s1 + $0x1a8] sm:$0xf]
  %v162 = vld [vmem:[%s1 + $0x1ac] sm:$0xf]
  %v163 = vld [vmem:[%s1 + $0x1b0] sm:$0xf]
  %v164 = vld [vmem:[%s1 + $0x1b4] sm:$0xf]
  %v165 = vld [vmem:[%s1 + $0x1b8] sm:$0xf]
  %v166 = vld [vmem:[%s1 + $0x1bc] sm:$0xf]
  %v167 = vld [vmem:[%s1 + $0x1c0] sm:$0xf]
  %v168 = vld [vmem:[%s1 + $0x1c4] sm:$0xf]
  %v169 = vld [vmem:[%s1 + $0x1c8] sm:$0xf]
  %v170 = vld [vmem:[%s1 + $0x1cc] sm:$0xf]
  %v171 = vld [vmem:[%s1 + $0x1d0] sm:$0xf]
  %v172 = vld [vmem:[%s1 + $0x1d4] sm:$0xf]
  %v173 = vld [vmem:[%s1 + $0x1d8] sm:$0xf]
  %v174 = vld [vmem:[%s1 + $0x1dc] sm:$0xf]
  %v175 = vld [vmem:[%s1 + $0x1e0] sm:$0xf]
  %v176 = vld [vmem:[%s1 + $0x1e4] sm:$0xf]
  %v177 = vld [vmem:[%s1 + $0x1e8] sm:$0xf]
  %v178 = vld [vmem:[%s1 + $0x1ec] sm:$0xf]
  %v179 = vld [vmem:[%s1 + $0x1f0] sm:$0xf]
  %v180 = vld [vmem:[%s1 + $0x1f4] sm:$0xf]
  %v181 = vld [vmem:[%s1 + $0x1f8] sm:$0xf]
  %v182 = vld [vmem:[%s1 + $0x1fc] sm:$0xf]
  %v183 = vld [vmem:[%s1 + $0x200] sm:$0xf]
  %v184 = vld [vmem:[%s1 + $0x204] sm:$0xf]
  %v185 = vld [vmem:[%s1 + $0x208] sm:$0xf]
  %v186 = vld [vmem:[%s1 + $0x20c] sm:$0xf]
  %v187 = vld [vmem:[%s1 + $0x210] sm:$0xf]
  %v188 = vld [vmem:[%s1 + $0x214] sm:$0xf]
  %v189 = vld [vmem:[%s1 + $0x218] sm:$0xf]
  %v190 = vld [vmem:[%s1 + $0x21c] sm:$0xf]
  %v191 = vld [vmem:[%s1 + $0x220] sm:$0xf]
  %v192 = vld [vmem:[%s1 + $0x224] sm:$0xf]
  %v193 = vld [vmem:[%s1 + $0x228] sm:$0xf]
  %v194 = vld [vmem:[%s1 + $0x22c] sm:$0xf]
  %v195 = vld [vmem:[%s1 + $0x230] sm:$0xf]
  %v196 = vld [vmem:[%s1 + $0x234] sm:$0xf]
  %v197 = vld [vmem:[%s1 + $0x238] sm:$0xf]
  %v198 = vld [vmem:[%s1 + $0x23c] sm:$0xf]
  %v199 = vld [vmem:[%s2] sm:$0xff]
  %v200 = vld [vmem:[%s2 + $0x8] sm:$0xff]
  %v201 = vld [vmem:[%s2 + $0x10] sm:$0xff]
  %v202 = vld [vmem:[%s2 + $0x18] sm:$0xff]
  %v203 = vld [vmem:[%s2 + $0x20] sm:$0xff]
  %v204 = vld [vmem:[%s2 + $0x28] sm:$0xff]
  %v205 = vld [vmem:[%s2 + $0x30] sm:$0xff]
  %v206 = vld [vmem:[%s2 + $0x38] sm:$0xff]
  %208 = vset.pattern.permute.xlu0 0
  %209 = vperm.xlu0 %208, %v199
  %v210 = vpop.permute.xlu0 %209
  %213 = vset.pattern.permute.xlu0 0
  %214 = vperm.xlu0 %213, %v200
  %v215 = vpop.permute.xlu0 %214
  %218 = vset.pattern.permute.xlu0 0
  %219 = vperm.xlu0 %218, %v201
  %v220 = vpop.permute.xlu0 %219
  %223 = vset.pattern.permute.xlu0 0
  %224 = vperm.xlu0 %223, %v202
  %v225 = vpop.permute.xlu0 %224
  %228 = vset.pattern.permute.xlu0 0
  %229 = vperm.xlu0 %228, %v203
  %v230 = vpop.permute.xlu0 %229
  %233 = vset.pattern.permute.xlu0 0
  %234 = vperm.xlu0 %233, %v204
  %v235 = vpop.permute.xlu0 %234
  %238 = vset.pattern.permute.xlu0 0
  %239 = vperm.xlu0 %238, %v205
  %v240 = vpop.permute.xlu0 %239
  %243 = vset.pattern.permute.xlu0 0
  %244 = vperm.xlu0 %243, %v206
  %v245 = vpop.permute.xlu0 %244
  %v287 = vunpack.c.l.b16 %v15
  %v288 = vunpack.c.h.b16 %v15
  %v289 = vunpack.c.l.b16 %v16
  %v290 = vunpack.c.h.b16 %v16
  %v291 = vunpack.c.l.b16 %v17
  %v292 = vunpack.c.h.b16 %v17
  %v293 = vunpack.c.l.b16 %v18
  %v294 = vunpack.c.h.b16 %v18
  %v295 = vunpack.c.l.b16 %v19
  %v296 = vunpack.c.l.b16 %v20
  %v297 = vunpack.c.h.b16 %v20
  %v298 = vunpack.c.l.b16 %v21
  %v299 = vunpack.c.h.b16 %v21
  %v300 = vunpack.c.l.b16 %v22
  %v301 = vunpack.c.h.b16 %v22
  %v302 = vunpack.c.l.b16 %v23
  %v303 = vunpack.c.h.b16 %v23
  %v304 = vunpack.c.l.b16 %v24
  %v305 = vunpack.c.l.b16 %v25
  %v306 = vunpack.c.h.b16 %v25
  %v307 = vunpack.c.l.b16 %v26
  %v308 = vunpack.c.h.b16 %v26
  %v309 = vunpack.c.l.b16 %v27
  %v310 = vunpack.c.h.b16 %v27
  %v311 = vunpack.c.l.b16 %v28
  %v312 = vunpack.c.h.b16 %v28
  %v313 = vunpack.c.l.b16 %v29
  %v314 = vunpack.c.l.b16 %v30
  %v315 = vunpack.c.h.b16 %v30
  %v316 = vunpack.c.l.b16 %v31
  %v317 = vunpack.c.h.b16 %v31
  %v318 = vunpack.c.l.b16 %v32
  %v319 = vunpack.c.h.b16 %v32
  %v320 = vunpack.c.l.b16 %v33
  %v321 = vunpack.c.h.b16 %v33
  %v322 = vunpack.c.l.b16 %v34
  %v323 = vunpack.c.l.b16 %v35
  %v324 = vunpack.c.h.b16 %v35
  %v325 = vunpack.c.l.b16 %v36
  %v326 = vunpack.c.h.b16 %v36
  %v327 = vunpack.c.l.b16 %v37
  %v328 = vunpack.c.h.b16 %v37
  %v329 = vunpack.c.l.b16 %v38
  %v330 = vunpack.c.h.b16 %v38
  %v331 = vunpack.c.l.b16 %v39
  %v332 = vunpack.c.l.b16 %v40
  %v333 = vunpack.c.h.b16 %v40
  %v334 = vunpack.c.l.b16 %v41
  %v335 = vunpack.c.h.b16 %v41
  %v336 = vunpack.c.l.b16 %v42
  %v337 = vunpack.c.h.b16 %v42
  %v338 = vunpack.c.l.b16 %v43
  %v339 = vunpack.c.h.b16 %v43
  %v340 = vunpack.c.l.b16 %v44
  %v341 = vunpack.c.l.b16 %v45
  %v342 = vunpack.c.h.b16 %v45
  %v343 = vunpack.c.l.b16 %v46
  %v344 = vunpack.c.h.b16 %v46
  %v345 = vunpack.c.l.b16 %v47
  %v346 = vunpack.c.h.b16 %v47
  %v347 = vunpack.c.l.b16 %v48
  %v348 = vunpack.c.h.b16 %v48
  %v349 = vunpack.c.l.b16 %v49
  %v350 = vunpack.c.l.b16 %v50
  %v351 = vunpack.c.h.b16 %v50
  %v352 = vunpack.c.l.b16 %v51
  %v353 = vunpack.c.h.b16 %v51
  %v354 = vunpack.c.l.b16 %v52
  %v355 = vunpack.c.h.b16 %v52
  %v356 = vunpack.c.l.b16 %v53
  %v357 = vunpack.c.h.b16 %v53
  %v358 = vunpack.c.l.b16 %v54
  %v359 = vpack.c.b16 %v296, %v287
  %v360 = vpack.c.b16 %v297, %v288
  %v361 = vpack.c.b16 %v298, %v289
  %v362 = vpack.c.b16 %v299, %v290
  %v363 = vpack.c.b16 %v300, %v291
  %v364 = vpack.c.b16 %v301, %v292
  %v365 = vpack.c.b16 %v302, %v293
  %v366 = vpack.c.b16 %v303, %v294
  %v367 = vpack.c.b16 %v304, %v295
  %v368 = vpack.c.b16 %v314, %v305
  %v369 = vpack.c.b16 %v315, %v306
  %v370 = vpack.c.b16 %v316, %v307
  %v371 = vpack.c.b16 %v317, %v308
  %v372 = vpack.c.b16 %v318, %v309
  %v373 = vpack.c.b16 %v319, %v310
  %v374 = vpack.c.b16 %v320, %v311
  %v375 = vpack.c.b16 %v321, %v312
  %v376 = vpack.c.b16 %v322, %v313
  %v377 = vpack.c.b16 %v332, %v323
  %v378 = vpack.c.b16 %v333, %v324
  %v379 = vpack.c.b16 %v334, %v325
  %v380 = vpack.c.b16 %v335, %v326
  %v381 = vpack.c.b16 %v336, %v327
  %v382 = vpack.c.b16 %v337, %v328
  %v383 = vpack.c.b16 %v338, %v329
  %v384 = vpack.c.b16 %v339, %v330
  %v385 = vpack.c.b16 %v340, %v331
  %v386 = vpack.c.b16 %v350, %v341
  %v387 = vpack.c.b16 %v351, %v342
  %v388 = vpack.c.b16 %v352, %v343
  %v389 = vpack.c.b16 %v353, %v344
  %v390 = vpack.c.b16 %v354, %v345
  %v391 = vpack.c.b16 %v355, %v346
  %v392 = vpack.c.b16 %v356, %v347
  %v393 = vpack.c.b16 %v357, %v348
  %v394 = vpack.c.b16 %v358, %v349
  %v575 = vunpack.c.l.b16 %v55
  %v576 = vunpack.c.l.b16 %v56
  %v577 = vunpack.c.l.b16 %v57
  %v578 = vunpack.c.l.b16 %v58
  %v579 = vunpack.c.l.b16 %v59
  %v580 = vunpack.c.l.b16 %v60
  %v581 = vunpack.c.l.b16 %v61
  %v582 = vunpack.c.l.b16 %v62
  %v583 = vunpack.c.l.b16 %v63
  %v584 = vunpack.c.l.b16 %v64
  %v585 = vunpack.c.l.b16 %v65
  %v586 = vunpack.c.l.b16 %v66
  %v587 = vunpack.c.l.b16 %v67
  %v588 = vunpack.c.l.b16 %v68
  %v589 = vunpack.c.l.b16 %v69
  %v590 = vunpack.c.l.b16 %v70
  %v591 = vunpack.c.l.b16 %v71
  %v592 = vunpack.c.l.b16 %v72
  %v593 = vunpack.c.l.b16 %v73
  %v594 = vunpack.c.l.b16 %v74
  %v595 = vunpack.c.l.b16 %v75
  %v596 = vunpack.c.l.b16 %v76
  %v597 = vunpack.c.l.b16 %v77
  %v598 = vunpack.c.l.b16 %v78
  %v599 = vunpack.c.l.b16 %v79
  %v600 = vunpack.c.l.b16 %v80
  %v601 = vunpack.c.l.b16 %v81
  %v602 = vunpack.c.l.b16 %v82
  %v603 = vunpack.c.l.b16 %v83
  %v604 = vunpack.c.l.b16 %v84
  %v605 = vunpack.c.l.b16 %v85
  %v606 = vunpack.c.l.b16 %v86
  %v607 = vunpack.c.l.b16 %v87
  %v608 = vunpack.c.l.b16 %v88
  %v609 = vunpack.c.l.b16 %v89
  %v610 = vunpack.c.l.b16 %v90
  %v611 = vunpack.c.l.b16 %v91
  %v612 = vunpack.c.l.b16 %v92
  %v613 = vunpack.c.l.b16 %v93
  %v614 = vunpack.c.l.b16 %v94
  %v615 = vunpack.c.l.b16 %v95
  %v616 = vunpack.c.l.b16 %v96
  %v617 = vunpack.c.l.b16 %v97
  %v618 = vunpack.c.l.b16 %v98
  %v619 = vunpack.c.l.b16 %v99
  %v620 = vunpack.c.l.b16 %v100
  %v621 = vunpack.c.l.b16 %v101
  %v622 = vunpack.c.l.b16 %v102
  %v623 = vunpack.c.l.b16 %v103
  %v624 = vunpack.c.l.b16 %v104
  %v625 = vunpack.c.l.b16 %v105
  %v626 = vunpack.c.l.b16 %v106
  %v627 = vunpack.c.l.b16 %v107
  %v628 = vunpack.c.l.b16 %v108
  %v629 = vunpack.c.l.b16 %v109
  %v630 = vunpack.c.l.b16 %v110
  %v631 = vunpack.c.l.b16 %v111
  %v632 = vunpack.c.l.b16 %v112
  %v633 = vunpack.c.l.b16 %v113
  %v634 = vunpack.c.l.b16 %v114
  %v635 = vunpack.c.l.b16 %v115
  %v636 = vunpack.c.l.b16 %v116
  %v637 = vunpack.c.l.b16 %v117
  %v638 = vunpack.c.l.b16 %v118
  %v639 = vunpack.c.l.b16 %v119
  %v640 = vunpack.c.l.b16 %v120
  %v641 = vunpack.c.l.b16 %v121
  %v642 = vunpack.c.l.b16 %v122
  %v643 = vunpack.c.l.b16 %v123
  %v644 = vunpack.c.l.b16 %v124
  %v645 = vunpack.c.l.b16 %v125
  %v646 = vunpack.c.l.b16 %v126
  %v647 = vunpack.c.l.b16 %v127
  %v648 = vunpack.c.l.b16 %v128
  %v649 = vunpack.c.l.b16 %v129
  %v650 = vunpack.c.l.b16 %v130
  %v651 = vunpack.c.l.b16 %v131
  %v652 = vunpack.c.l.b16 %v132
  %v653 = vunpack.c.l.b16 %v133
  %v654 = vunpack.c.l.b16 %v134
  %v655 = vunpack.c.l.b16 %v135
  %v656 = vunpack.c.l.b16 %v136
  %v657 = vunpack.c.l.b16 %v137
  %v658 = vunpack.c.l.b16 %v138
  %v659 = vunpack.c.l.b16 %v139
  %v660 = vunpack.c.l.b16 %v140
  %v661 = vunpack.c.l.b16 %v141
  %v662 = vunpack.c.l.b16 %v142
  %v663 = vunpack.c.l.b16 %v143
  %v664 = vunpack.c.l.b16 %v144
  %v665 = vunpack.c.l.b16 %v145
  %v666 = vunpack.c.l.b16 %v146
  %v667 = vunpack.c.l.b16 %v147
  %v668 = vunpack.c.l.b16 %v148
  %v669 = vunpack.c.l.b16 %v149
  %v670 = vunpack.c.l.b16 %v150
  %v671 = vunpack.c.l.b16 %v151
  %v672 = vunpack.c.l.b16 %v152
  %v673 = vunpack.c.l.b16 %v153
  %v674 = vunpack.c.l.b16 %v154
  %v675 = vunpack.c.l.b16 %v155
  %v676 = vunpack.c.l.b16 %v156
  %v677 = vunpack.c.l.b16 %v157
  %v678 = vunpack.c.l.b16 %v158
  %v679 = vunpack.c.l.b16 %v159
  %v680 = vunpack.c.l.b16 %v160
  %v681 = vunpack.c.l.b16 %v161
  %v682 = vunpack.c.l.b16 %v162
  %v683 = vunpack.c.l.b16 %v163
  %v684 = vunpack.c.l.b16 %v164
  %v685 = vunpack.c.l.b16 %v165
  %v686 = vunpack.c.l.b16 %v166
  %v687 = vunpack.c.l.b16 %v167
  %v688 = vunpack.c.l.b16 %v168
  %v689 = vunpack.c.l.b16 %v169
  %v690 = vunpack.c.l.b16 %v170
  %v691 = vunpack.c.l.b16 %v171
  %v692 = vunpack.c.l.b16 %v172
  %v693 = vunpack.c.l.b16 %v173
  %v694 = vunpack.c.l.b16 %v174
  %v695 = vunpack.c.l.b16 %v175
  %v696 = vunpack.c.l.b16 %v176
  %v697 = vunpack.c.l.b16 %v177
  %v698 = vunpack.c.l.b16 %v178
  %v699 = vunpack.c.l.b16 %v179
  %v700 = vunpack.c.l.b16 %v180
  %v701 = vunpack.c.l.b16 %v181
  %v702 = vunpack.c.l.b16 %v182
  %v703 = vunpack.c.l.b16 %v183
  %v704 = vunpack.c.l.b16 %v184
  %v705 = vunpack.c.l.b16 %v185
  %v706 = vunpack.c.l.b16 %v186
  %v707 = vunpack.c.l.b16 %v187
  %v708 = vunpack.c.l.b16 %v188
  %v709 = vunpack.c.l.b16 %v189
  %v710 = vunpack.c.l.b16 %v190
  %v711 = vunpack.c.l.b16 %v191
  %v712 = vunpack.c.l.b16 %v192
  %v713 = vunpack.c.l.b16 %v193
  %v714 = vunpack.c.l.b16 %v194
  %v715 = vunpack.c.l.b16 %v195
  %v716 = vunpack.c.l.b16 %v196
  %v717 = vunpack.c.l.b16 %v197
  %v718 = vunpack.c.l.b16 %v198
  %v719 = vpack.c.b16 %v576, %v575
  %v720 = vpack.c.b16 %v578, %v577
  %v721 = vpack.c.b16 %v580, %v579
  %v722 = vpack.c.b16 %v582, %v581
  %v723 = vpack.c.b16 %v584, %v583
  %v724 = vpack.c.b16 %v586, %v585
  %v725 = vpack.c.b16 %v588, %v587
  %v726 = vpack.c.b16 %v590, %v589
  %v727 = vpack.c.b16 %v592, %v591
  %v728 = vpack.c.b16 %v594, %v593
  %v729 = vpack.c.b16 %v596, %v595
  %v730 = vpack.c.b16 %v598, %v597
  %v731 = vpack.c.b16 %v600, %v599
  %v732 = vpack.c.b16 %v602, %v601
  %v733 = vpack.c.b16 %v604, %v603
  %v734 = vpack.c.b16 %v606, %v605
  %v735 = vpack.c.b16 %v608, %v607
  %v736 = vpack.c.b16 %v610, %v609
  %v737 = vpack.c.b16 %v612, %v611
  %v738 = vpack.c.b16 %v614, %v613
  %v739 = vpack.c.b16 %v616, %v615
  %v740 = vpack.c.b16 %v618, %v617
  %v741 = vpack.c.b16 %v620, %v619
  %v742 = vpack.c.b16 %v622, %v621
  %v743 = vpack.c.b16 %v624, %v623
  %v744 = vpack.c.b16 %v626, %v625
  %v745 = vpack.c.b16 %v628, %v627
  %v746 = vpack.c.b16 %v630, %v629
  %v747 = vpack.c.b16 %v632, %v631
  %v748 = vpack.c.b16 %v634, %v633
  %v749 = vpack.c.b16 %v636, %v635
  %v750 = vpack.c.b16 %v638, %v637
  %v751 = vpack.c.b16 %v640, %v639
  %v752 = vpack.c.b16 %v642, %v641
  %v753 = vpack.c.b16 %v644, %v643
  %v754 = vpack.c.b16 %v646, %v645
  %v755 = vpack.c.b16 %v648, %v647
  %v756 = vpack.c.b16 %v650, %v649
  %v757 = vpack.c.b16 %v652, %v651
  %v758 = vpack.c.b16 %v654, %v653
  %v759 = vpack.c.b16 %v656, %v655
  %v760 = vpack.c.b16 %v658, %v657
  %v761 = vpack.c.b16 %v660, %v659
  %v762 = vpack.c.b16 %v662, %v661
  %v763 = vpack.c.b16 %v664, %v663
  %v764 = vpack.c.b16 %v666, %v665
  %v765 = vpack.c.b16 %v668, %v667
  %v766 = vpack.c.b16 %v670, %v669
  %v767 = vpack.c.b16 %v672, %v671
  %v768 = vpack.c.b16 %v674, %v673
  %v769 = vpack.c.b16 %v676, %v675
  %v770 = vpack.c.b16 %v678, %v677
  %v771 = vpack.c.b16 %v680, %v679
  %v772 = vpack.c.b16 %v682, %v681
  %v773 = vpack.c.b16 %v684, %v683
  %v774 = vpack.c.b16 %v686, %v685
  %v775 = vpack.c.b16 %v688, %v687
  %v776 = vpack.c.b16 %v690, %v689
  %v777 = vpack.c.b16 %v692, %v691
  %v778 = vpack.c.b16 %v694, %v693
  %v779 = vpack.c.b16 %v696, %v695
  %v780 = vpack.c.b16 %v698, %v697
  %v781 = vpack.c.b16 %v700, %v699
  %v782 = vpack.c.b16 %v702, %v701
  %v783 = vpack.c.b16 %v704, %v703
  %v784 = vpack.c.b16 %v706, %v705
  %v785 = vpack.c.b16 %v708, %v707
  %v786 = vpack.c.b16 %v710, %v709
  %v787 = vpack.c.b16 %v712, %v711
  %v788 = vpack.c.b16 %v714, %v713
  %v789 = vpack.c.b16 %v716, %v715
  %v790 = vpack.c.b16 %v718, %v717
  %863 = vmatprep.subr.bf16.mxu0 0
  %864 = vmatpush1.bf16.msra.mxu0 %v719
  %865 = vmatprep.subr.bf16.mxu0 0
  %866 = vmatpush1.bf16.msra.mxu0 %v720
  %867 = vmatprep.subr.bf16.mxu0 0
  %868 = vmatpush1.bf16.msra.mxu0 %v721
  %869 = vmatprep.subr.bf16.mxu0 0
  %870 = vmatpush1.bf16.msra.mxu0 %v722
  %871 = vmatprep.subr.bf16.mxu0 0
  %872 = vmatpush1.bf16.msra.mxu0 %v723
  %873 = vmatprep.subr.bf16.mxu0 0
  %874 = vmatpush1.bf16.msra.mxu0 %v724
  %875 = vmatprep.subr.bf16.mxu0 0
  %876 = vmatpush1.bf16.msra.mxu0 %v725
  %877 = vmatprep.subr.bf16.mxu0 0
  %878 = vmatpush1.bf16.msra.mxu0 %v726
  %879 = vmatprep.subr.bf16.mxu0 0
  %880 = vmatpush1.bf16.msra.mxu0 %v727
  %881 = vmatprep.subr.bf16.mxu0 0
  %882 = vmatpush1.bf16.msra.mxu0 %v728
  %883 = vmatprep.subr.bf16.mxu0 0
  %884 = vmatpush1.bf16.msra.mxu0 %v729
  %885 = vmatprep.subr.bf16.mxu0 0
  %886 = vmatpush1.bf16.msra.mxu0 %v730
  %887 = vmatprep.subr.bf16.mxu0 0
  %888 = vmatpush1.bf16.msra.mxu0 %v731
  %889 = vmatprep.subr.bf16.mxu0 0
  %890 = vmatpush1.bf16.msra.mxu0 %v732
  %891 = vmatprep.subr.bf16.mxu0 0
  %892 = vmatpush1.bf16.msra.mxu0 %v733
  %893 = vmatprep.subr.bf16.mxu0 0
  %894 = vmatpush1.bf16.msra.mxu0 %v734
  %895 = vmatprep.mubr.bf16.mxu0 %v360
  %896 = vmatmul.mubr.bf16.gmra.mrb[0].mxu0 %v359
  %v897 = vpop.f32.mrb[0].mxu0
  %v898 = vadd.f32 %v210, %v897
  %v899 = vpop.f32.mrb[0].mxu0
  %v900 = vpop.f32.mrb[0].mxu0
  %v901 = vadd.f32 %v215, %v900
  %v902 = vpop.f32.mrb[0].mxu0
  %903 = vmatprep.mubr.bf16.mxu0 %v369
  %904 = vmatmul.mubr.bf16.gmra.mrb[0].mxu0 %v368
  %v905 = vpop.f32.mrb[0].mxu0
  %v906 = vadd.f32 %v220, %v905
  %v907 = vpop.f32.mrb[0].mxu0
  %v908 = vpop.f32.mrb[0].mxu0
  %v909 = vadd.f32 %v225, %v908
  %v910 = vpop.f32.mrb[0].mxu0
  %911 = vmatprep.mubr.bf16.mxu0 %v378
  %912 = vmatmul.mubr.bf16.gmra.mrb[0].mxu0 %v377
  %v913 = vpop.f32.mrb[0].mxu0
  %v914 = vadd.f32 %v230, %v913
  %v915 = vpop.f32.mrb[0].mxu0
  %v916 = vpop.f32.mrb[0].mxu0
  %v917 = vadd.f32 %v235, %v916
  %v918 = vpop.f32.mrb[0].mxu0
  %919 = vmatprep.mubr.bf16.mxu0 %v387
  %920 = vmatmul.mubr.bf16.gmra.mrb[0].mxu0 %v386
  %v921 = vpop.f32.mrb[0].mxu0
  %v922 = vadd.f32 %v240, %v921
  %v923 = vpop.f32.mrb[0].mxu0
  %v924 = vpop.f32.mrb[0].mxu0
  %v925 = vadd.f32 %v245, %v924
  %v926 = vpop.f32.mrb[0].mxu0
  %927 = vdwg.mxu0
  %928 = vmatprep.subr.bf16.mxu0 0
  %929 = vmatpush1.bf16.msra.mxu0 %v735
  %930 = vmatprep.subr.bf16.mxu0 0
  %931 = vmatpush1.bf16.msra.mxu0 %v736
  %932 = vmatprep.subr.bf16.mxu0 0
  %933 = vmatpush1.bf16.msra.mxu0 %v737
  %934 = vmatprep.subr.bf16.mxu0 0
  %935 = vmatpush1.bf16.msra.mxu0 %v738
  %936 = vmatprep.subr.bf16.mxu0 0
  %937 = vmatpush1.bf16.msra.mxu0 %v739
  %938 = vmatprep.subr.bf16.mxu0 0
  %939 = vmatpush1.bf16.msra.mxu0 %v740
  %940 = vmatprep.subr.bf16.mxu0 0
  %941 = vmatpush1.bf16.msra.mxu0 %v741
  %942 = vmatprep.subr.bf16.mxu0 0
  %943 = vmatpush1.bf16.msra.mxu0 %v742
  %944 = vmatprep.subr.bf16.mxu0 0
  %945 = vmatpush1.bf16.msra.mxu0 %v743
  %946 = vmatprep.subr.bf16.mxu0 0
  %947 = vmatpush1.bf16.msra.mxu0 %v744
  %948 = vmatprep.subr.bf16.mxu0 0
  %949 = vmatpush1.bf16.msra.mxu0 %v745
  %950 = vmatprep.subr.bf16.mxu0 0
  %951 = vmatpush1.bf16.msra.mxu0 %v746
  %952 = vmatprep.subr.bf16.mxu0 0
  %953 = vmatpush1.bf16.msra.mxu0 %v747
  %954 = vmatprep.subr.bf16.mxu0 0
  %955 = vmatpush1.bf16.msra.mxu0 %v748
  %956 = vmatprep.subr.bf16.mxu0 0
  %957 = vmatpush1.bf16.msra.mxu0 %v749
  %958 = vmatprep.subr.bf16.mxu0 0
  %959 = vmatpush1.bf16.msra.mxu0 %v750
  %960 = vmatprep.mubr.bf16.mxu0 %v362
  %961 = vmatmul.mubr.bf16.gmra.mrb[0].mxu0 %v361
  %v962 = vpop.f32.mrb[0].mxu0
  %v963 = vadd.f32 %v898, %v962
  %v964 = vpop.f32.mrb[0].mxu0
  %v965 = vpop.f32.mrb[0].mxu0
  %v966 = vadd.f32 %v901, %v965
  %v967 = vpop.f32.mrb[0].mxu0
  %968 = vmatprep.mubr.bf16.mxu0 %v371
  %969 = vmatmul.mubr.bf16.gmra.mrb[0].mxu0 %v370
  %v970 = vpop.f32.mrb[0].mxu0
  %v971 = vadd.f32 %v906, %v970
  %v972 = vpop.f32.mrb[0].mxu0
  %v973 = vpop.f32.mrb[0].mxu0
  %v974 = vadd.f32 %v909, %v973
  %v975 = vpop.f32.mrb[0].mxu0
  %976 = vmatprep.mubr.bf16.mxu0 %v380
  %977 = vmatmul.mubr.bf16.gmra.mrb[0].mxu0 %v379
  %v978 = vpop.f32.mrb[0].mxu0
  %v979 = vadd.f32 %v914, %v978
  %v980 = vpop.f32.mrb[0].mxu0
  %v981 = vpop.f32.mrb[0].mxu0
  %v982 = vadd.f32 %v917, %v981
  %v983 = vpop.f32.mrb[0].mxu0
  %984 = vmatprep.mubr.bf16.mxu0 %v389
  %985 = vmatmul.mubr.bf16.gmra.mrb[0].mxu0 %v388
  %v986 = vpop.f32.mrb[0].mxu0
  %v987 = vadd.f32 %v922, %v986
  %v988 = vpop.f32.mrb[0].mxu0
  %v989 = vpop.f32.mrb[0].mxu0
  %v990 = vadd.f32 %v925, %v989
  %v991 = vpop.f32.mrb[0].mxu0
  %992 = vdwg.mxu0
  %993 = vmatprep.subr.bf16.mxu0 0
  %994 = vmatpush1.bf16.msra.mxu0 %v751
  %995 = vmatprep.subr.bf16.mxu0 0
  %996 = vmatpush1.bf16.msra.mxu0 %v752
  %997 = vmatprep.subr.bf16.mxu0 0
  %998 = vmatpush1.bf16.msra.mxu0 %v753
  %999 = vmatprep.subr.bf16.mxu0 0
  %1000 = vmatpush1.bf16.msra.mxu0 %v754
  %1001 = vmatprep.subr.bf16.mxu0 0
  %1002 = vmatpush1.bf16.msra.mxu0 %v755
  %1003 = vmatprep.subr.bf16.mxu0 0
  %1004 = vmatpush1.bf16.msra.mxu0 %v756
  %1005 = vmatprep.subr.bf16.mxu0 0
  %1006 = vmatpush1.bf16.msra.mxu0 %v757
  %1007 = vmatprep.subr.bf16.mxu0 0
  %1008 = vmatpush1.bf16.msra.mxu0 %v758
  %1009 = vmatprep.subr.bf16.mxu0 0
  %1010 = vmatpush1.bf16.msra.mxu0 %v759
  %1011 = vmatprep.subr.bf16.mxu0 0
  %1012 = vmatpush1.bf16.msra.mxu0 %v760
  %1013 = vmatprep.subr.bf16.mxu0 0
  %1014 = vmatpush1.bf16.msra.mxu0 %v761
  %1015 = vmatprep.subr.bf16.mxu0 0
  %1016 = vmatpush1.bf16.msra.mxu0 %v762
  %1017 = vmatprep.subr.bf16.mxu0 0
  %1018 = vmatpush1.bf16.msra.mxu0 %v763
  %1019 = vmatprep.subr.bf16.mxu0 0
  %1020 = vmatpush1.bf16.msra.mxu0 %v764
  %1021 = vmatprep.subr.bf16.mxu0 0
  %1022 = vmatpush1.bf16.msra.mxu0 %v765
  %1023 = vmatprep.subr.bf16.mxu0 0
  %1024 = vmatpush1.bf16.msra.mxu0 %v766
  %1025 = vmatprep.mubr.bf16.mxu0 %v364
  %1026 = vmatmul.mubr.bf16.gmra.mrb[0].mxu0 %v363
  %v1027 = vpop.f32.mrb[0].mxu0
  %v1028 = vadd.f32 %v963, %v1027
  %v1029 = vpop.f32.mrb[0].mxu0
  %v1030 = vpop.f32.mrb[0].mxu0
  %v1031 = vadd.f32 %v966, %v1030
  %v1032 = vpop.f32.mrb[0].mxu0
  %1033 = vmatprep.mubr.bf16.mxu0 %v373
  %1034 = vmatmul.mubr.bf16.gmra.mrb[0].mxu0 %v372
  %v1035 = vpop.f32.mrb[0].mxu0
  %v1036 = vadd.f32 %v971, %v1035
  %v1037 = vpop.f32.mrb[0].mxu0
  %v1038 = vpop.f32.mrb[0].mxu0
  %v1039 = vadd.f32 %v974, %v1038
  %v1040 = vpop.f32.mrb[0].mxu0
  %1041 = vmatprep.mubr.bf16.mxu0 %v382
  %1042 = vmatmul.mubr.bf16.gmra.mrb[0].mxu0 %v381
  %v1043 = vpop.f32.mrb[0].mxu0
  %v1044 = vadd.f32 %v979, %v1043
  %v1045 = vpop.f32.mrb[0].mxu0
  %v1046 = vpop.f32.mrb[0].mxu0
  %v1047 = vadd.f32 %v982, %v1046
  %v1048 = vpop.f32.mrb[0].mxu0
  %1049 = vmatprep.mubr.bf16.mxu0 %v391
  %1050 = vmatmul.mubr.bf16.gmra.mrb[0].mxu0 %v390
  %v1051 = vpop.f32.mrb[0].mxu0
  %v1052 = vadd.f32 %v987, %v1051
  %v1053 = vpop.f32.mrb[0].mxu0
  %v1054 = vpop.f32.mrb[0].mxu0
  %v1055 = vadd.f32 %v990, %v1054
  %v1056 = vpop.f32.mrb[0].mxu0
  %1057 = vdwg.mxu0
  %1058 = vmatprep.subr.bf16.mxu0 0
  %1059 = vmatpush1.bf16.msra.mxu0 %v767
  %1060 = vmatprep.subr.bf16.mxu0 0
  %1061 = vmatpush1.bf16.msra.mxu0 %v768
  %1062 = vmatprep.subr.bf16.mxu0 0
  %1063 = vmatpush1.bf16.msra.mxu0 %v769
  %1064 = vmatprep.subr.bf16.mxu0 0
  %1065 = vmatpush1.bf16.msra.mxu0 %v770
  %1066 = vmatprep.subr.bf16.mxu0 0
  %1067 = vmatpush1.bf16.msra.mxu0 %v771
  %1068 = vmatprep.subr.bf16.mxu0 0
  %1069 = vmatpush1.bf16.msra.mxu0 %v772
  %1070 = vmatprep.subr.bf16.mxu0 0
  %1071 = vmatpush1.bf16.msra.mxu0 %v773
  %1072 = vmatprep.subr.bf16.mxu0 0
  %1073 = vmatpush1.bf16.msra.mxu0 %v774
  %1074 = vmatprep.subr.bf16.mxu0 0
  %1075 = vmatpush1.bf16.msra.mxu0 %v775
  %1076 = vmatprep.subr.bf16.mxu0 0
  %1077 = vmatpush1.bf16.msra.mxu0 %v776
  %1078 = vmatprep.subr.bf16.mxu0 0
  %1079 = vmatpush1.bf16.msra.mxu0 %v777
  %1080 = vmatprep.subr.bf16.mxu0 0
  %1081 = vmatpush1.bf16.msra.mxu0 %v778
  %1082 = vmatprep.subr.bf16.mxu0 0
  %1083 = vmatpush1.bf16.msra.mxu0 %v779
  %1084 = vmatprep.subr.bf16.mxu0 0
  %1085 = vmatpush1.bf16.msra.mxu0 %v780
  %1086 = vmatprep.subr.bf16.mxu0 0
  %1087 = vmatpush1.bf16.msra.mxu0 %v781
  %1088 = vmatprep.subr.bf16.mxu0 0
  %1089 = vmatpush1.bf16.msra.mxu0 %v782
  %1090 = vmatprep.mubr.bf16.mxu0 %v366
  %1091 = vmatmul.mubr.bf16.gmra.mrb[0].mxu0 %v365
  %v1092 = vpop.f32.mrb[0].mxu0
  %v1093 = vadd.f32 %v1028, %v1092
  %v1094 = vpop.f32.mrb[0].mxu0
  %v1095 = vpop.f32.mrb[0].mxu0
  %v1096 = vadd.f32 %v1031, %v1095
  %v1097 = vpop.f32.mrb[0].mxu0
  %1098 = vmatprep.mubr.bf16.mxu0 %v375
  %1099 = vmatmul.mubr.bf16.gmra.mrb[0].mxu0 %v374
  %v1100 = vpop.f32.mrb[0].mxu0
  %v1101 = vadd.f32 %v1036, %v1100
  %v1102 = vpop.f32.mrb[0].mxu0
  %v1103 = vpop.f32.mrb[0].mxu0
  %v1104 = vadd.f32 %v1039, %v1103
  %v1105 = vpop.f32.mrb[0].mxu0
  %1106 = vmatprep.mubr.bf16.mxu0 %v384
  %1107 = vmatmul.mubr.bf16.gmra.mrb[0].mxu0 %v383
  %v1108 = vpop.f32.mrb[0].mxu0
  %v1109 = vadd.f32 %v1044, %v1108
  %v1110 = vpop.f32.mrb[0].mxu0
  %v1111 = vpop.f32.mrb[0].mxu0
  %v1112 = vadd.f32 %v1047, %v1111
  %v1113 = vpop.f32.mrb[0].mxu0
  %1114 = vmatprep.mubr.bf16.mxu0 %v393
  %1115 = vmatmul.mubr.bf16.gmra.mrb[0].mxu0 %v392
  %v1116 = vpop.f32.mrb[0].mxu0
  %v1117 = vadd.f32 %v1052, %v1116
  %v1118 = vpop.f32.mrb[0].mxu0
  %v1119 = vpop.f32.mrb[0].mxu0
  %v1120 = vadd.f32 %v1055, %v1119
  %v1121 = vpop.f32.mrb[0].mxu0
  %1122 = vdwg.mxu0
  %1123 = vmatprep.subr.bf16.mxu0 0
  %1124 = vmatpush1.bf16.msra.mxu0 %v783
  %1125 = vmatprep.subr.bf16.mxu0 0
  %1126 = vmatpush1.bf16.msra.mxu0 %v784
  %1127 = vmatprep.subr.bf16.mxu0 0
  %1128 = vmatpush1.bf16.msra.mxu0 %v785
  %1129 = vmatprep.subr.bf16.mxu0 0
  %1130 = vmatpush1.bf16.msra.mxu0 %v786
  %1131 = vmatprep.subr.bf16.mxu0 0
  %1132 = vmatpush1.bf16.msra.mxu0 %v787
  %1133 = vmatprep.subr.bf16.mxu0 0
  %1134 = vmatpush1.bf16.msra.mxu0 %v788
  %1135 = vmatprep.subr.bf16.mxu0 0
  %1136 = vmatpush1.bf16.msra.mxu0 %v789
  %1137 = vmatprep.subr.bf16.mxu0 0
  %1138 = vmatpush1.bf16.msra.mxu0 %v790
  %1139 = vmatprep.subr.bf16.mxu0 0
  %1140 = vmatpush1.bf16.msra.mxu0 0
  %1141 = vmatprep.subr.bf16.mxu0 0
  %1142 = vmatpush1.bf16.msra.mxu0 0
  %1143 = vmatprep.subr.bf16.mxu0 0
  %1144 = vmatpush1.bf16.msra.mxu0 0
  %1145 = vmatprep.subr.bf16.mxu0 0
  %1146 = vmatpush1.bf16.msra.mxu0 0
  %1147 = vmatprep.subr.bf16.mxu0 0
  %1148 = vmatpush1.bf16.msra.mxu0 0
  %1149 = vmatprep.subr.bf16.mxu0 0
  %1150 = vmatpush1.bf16.msra.mxu0 0
  %1151 = vmatprep.subr.bf16.mxu0 0
  %1152 = vmatpush1.bf16.msra.mxu0 0
  %1153 = vmatprep.subr.bf16.mxu0 0
  %1154 = vmatpush1.bf16.msra.mxu0 0
  %1155 = vmatprep.mubr.bf16.mxu0 0
  %1156 = vmatmul.mubr.bf16.gmra.mrb[0].mxu0 %v367
  %v1157 = vpop.f32.mrb[0].mxu0
  %v1158 = vadd.f32 %v1093, %v1157
  %v1159 = vpop.f32.mrb[0].mxu0
  %v1160 = vpop.f32.mrb[0].mxu0
  %v1161 = vadd.f32 %v1096, %v1160
  %v1162 = vpop.f32.mrb[0].mxu0
  %1163 = vmatprep.mubr.bf16.mxu0 0
  %1164 = vmatmul.mubr.bf16.gmra.mrb[0].mxu0 %v376
  %v1165 = vpop.f32.mrb[0].mxu0
  %v1166 = vadd.f32 %v1101, %v1165
  %v1167 = vpop.f32.mrb[0].mxu0
  %v1168 = vpop.f32.mrb[0].mxu0
  %v1169 = vadd.f32 %v1104, %v1168
  %v1170 = vpop.f32.mrb[0].mxu0
  %1171 = vmatprep.mubr.bf16.mxu0 0
  %1172 = vmatmul.mubr.bf16.gmra.mrb[0].mxu0 %v385
  %v1173 = vpop.f32.mrb[0].mxu0
  %v1174 = vadd.f32 %v1109, %v1173
  %v1175 = vpop.f32.mrb[0].mxu0
  %v1176 = vpop.f32.mrb[0].mxu0
  %v1177 = vadd.f32 %v1112, %v1176
  %v1178 = vpop.f32.mrb[0].mxu0
  %1179 = vmatprep.mubr.bf16.mxu0 0
  %1180 = vmatmul.mubr.bf16.gmra.mrb[0].mxu0 %v394
  %v1181 = vpop.f32.mrb[0].mxu0
  %v1182 = vadd.f32 %v1117, %v1181
  %v1183 = vpop.f32.mrb[0].mxu0
  %v1184 = vpop.f32.mrb[0].mxu0
  %v1185 = vadd.f32 %v1120, %v1184
  %v1186 = vpop.f32.mrb[0].mxu0
  %1187 = vdwg.mxu0
  %v1188 = vmax.f32 %v1158, 0.0
  %v1189 = vmax.f32 %v1161, 0.0
  %v1190 = vmax.f32 %v1166, 0.0
  %v1191 = vmax.f32 %v1169, 0.0
  %v1192 = vmax.f32 %v1174, 0.0
  %v1193 = vmax.f32 %v1177, 0.0
  %v1194 = vmax.f32 %v1182, 0.0
  %v1195 = vmax.f32 %v1185, 0.0
  %1196 = vst [vmem:[%s3] sm:$0xff] %v1188
  %1197 = vst [vmem:[%s3 + $0x8] sm:$0xff] %v1189
  %1198 = vst [vmem:[%s3 + $0x10] sm:$0xff] %v1190
  %1199 = vst [vmem:[%s3 + $0x18] sm:$0xff] %v1191
  %1200 = vst [vmem:[%s3 + $0x20] sm:$0xff] %v1192
  %1201 = vst [vmem:[%s3 + $0x28] sm:$0xff] %v1193
  %1202 = vst [vmem:[%s3 + $0x30] sm:$0xff] %v1194
  %1203 = vst [vmem:[%s3 + $0x38] sm:$0xff] %v1195
  // Predicated region
  $region14: #{ppsnet_refinement_forward.7} parent=0 // pred_check
    _
  $region15: #{ppsnet_refinement_forward.7} parent=0 // pred_check_branch
    %1205 = sbr.rel (0) target = $region17
  $region16: #{ppsnet_refinement_forward.7} parent=0 // pred_region
    _
  $region17: #{ppsnet_refinement_forward.7} parent=0 // pred_fallthru
    _
  // Predicated region
  $region18: #{ppsnet_refinement_forward.7} parent=0 // pred_check
    _
  $region19: #{ppsnet_refinement_forward.7} parent=0 // pred_check_branch
    %1207 = sbr.rel (0) target = $region21
  $region20: #{ppsnet_refinement_forward.7} parent=0 // pred_region
    _
  $region21: #{ppsnet_refinement_forward.7} parent=0 // pred_fallthru
    _

// kernel: ppsnet_refinement_forward.8
$region0: #{ppsnet_refinement_forward.8}
  #allocation0 [shape = 'u32[]', space=smem, size = 0x4, offset = 0x4, fixed_abs, tag = 'smem constant byte address 0x4 - core index']
  #allocation1 [shape = 'u32[144,128]{1,0:T(1,128)}', space=vmem, size = 0x12000, scoped, tag = 'internal scratch']
  %s0 = inlined_call_operand.vmem [shape: bf16[32,576], index: 0, kind: input, shape index: {}]
  %s1 = inlined_call_operand.vmem [shape: bf16[576,128], index: 1, kind: input, shape index: {}]
  %s2 = inlined_call_operand.vmem [shape: f32[32,1], index: 2, kind: input, shape index: {}]
  %s3 = inlined_call_operand.vmem [shape: f32[32,128], index: 3, kind: output, shape index: {}]
  %s4 = sld [smem:[#allocation0]]
  $region22: #{ppsnet_refinement_forward.8} parent=0
    _
  %s6 = ssub.s32 1, %s4
  %s7 = scalar_select 0, %s6, %s4
  // Predicated region
  $region2: #{ppsnet_refinement_forward.8} parent=0 // pred_check
    _
  $region3: #{ppsnet_refinement_forward.8} parent=0 // pred_check_branch
    %9 = sbr.rel (0) target = $region5
  $region4: #{ppsnet_refinement_forward.8} parent=0 // pred_region
    _
  $region5: #{ppsnet_refinement_forward.8} parent=0 // pred_fallthru
    _
  // Predicated region
  $region6: #{ppsnet_refinement_forward.8} parent=0 // pred_check
    _
  $region7: #{ppsnet_refinement_forward.8} parent=0 // pred_check_branch
    %11 = sbr.rel (0) target = $region9
  $region8: #{ppsnet_refinement_forward.8} parent=0 // pred_region
    _
  $region9: #{ppsnet_refinement_forward.8} parent=0 // pred_fallthru
    _
  // Predicated region
  $region10: #{ppsnet_refinement_forward.8} parent=0 // pred_check
    _
  $region11: #{ppsnet_refinement_forward.8} parent=0 // pred_check_branch
    %13 = sbr.rel (0) target = $region13
  $region12: #{ppsnet_refinement_forward.8} parent=0 // pred_region
    _
  $region13: #{ppsnet_refinement_forward.8} parent=0 // pred_fallthru
    _
  %v15 = vld [vmem:[%s0] sm:$0xff]
  %v16 = vld [vmem:[%s0 + $0x8] sm:$0xff]
  %v17 = vld [vmem:[%s0 + $0x10] sm:$0xf]
  %v18 = vld [vmem:[%s0 + $0x14] sm:$0xff]
  %v19 = vld [vmem:[%s0 + $0x1c] sm:$0xff]
  %v20 = vld [vmem:[%s0 + $0x24] sm:$0xf]
  %v21 = vld [vmem:[%s0 + $0x28] sm:$0xff]
  %v22 = vld [vmem:[%s0 + $0x30] sm:$0xff]
  %v23 = vld [vmem:[%s0 + $0x38] sm:$0xf]
  %v24 = vld [vmem:[%s0 + $0x3c] sm:$0xff]
  %v25 = vld [vmem:[%s0 + $0x44] sm:$0xff]
  %v26 = vld [vmem:[%s0 + $0x4c] sm:$0xf]
  %v27 = vld [vmem:[%s1] sm:$0xf]
  %v28 = vld [vmem:[%s1 + $0x4] sm:$0xf]
  %v29 = vld [vmem:[%s1 + $0x8] sm:$0xf]
  %v30 = vld [vmem:[%s1 + $0xc] sm:$0xf]
  %v31 = vld [vmem:[%s1 + $0x10] sm:$0xf]
  %v32 = vld [vmem:[%s1 + $0x14] sm:$0xf]
  %v33 = vld [vmem:[%s1 + $0x18] sm:$0xf]
  %v34 = vld [vmem:[%s1 + $0x1c] sm:$0xf]
  %v35 = vld [vmem:[%s1 + $0x20] sm:$0xf]
  %v36 = vld [vmem:[%s1 + $0x24] sm:$0xf]
  %v37 = vld [vmem:[%s1 + $0x28] sm:$0xf]
  %v38 = vld [vmem:[%s1 + $0x2c] sm:$0xf]
  %v39 = vld [vmem:[%s1 + $0x30] sm:$0xf]
  %v40 = vld [vmem:[%s1 + $0x34] sm:$0xf]
  %v41 = vld [vmem:[%s1 + $0x38] sm:$0xf]
  %v42 = vld [vmem:[%s1 + $0x3c] sm:$0xf]
  %v43 = vld [vmem:[%s1 + $0x40] sm:$0xf]
  %v44 = vld [vmem:[%s1 + $0x44] sm:$0xf]
  %v45 = vld [vmem:[%s1 + $0x48] sm:$0xf]
  %v46 = vld [vmem:[%s1 + $0x4c] sm:$0xf]
  %v47 = vld [vmem:[%s1 + $0x50] sm:$0xf]
  %v48 = vld [vmem:[%s1 + $0x54] sm:$0xf]
  %v49 = vld [vmem:[%s1 + $0x58] sm:$0xf]
  %v50 = vld [vmem:[%s1 + $0x5c] sm:$0xf]
  %v51 = vld [vmem:[%s1 + $0x60] sm:$0xf]
  %v52 = vld [vmem:[%s1 + $0x64] sm:$0xf]
  %v53 = vld [vmem:[%s1 + $0x68] sm:$0xf]
  %v54 = vld [vmem:[%s1 + $0x6c] sm:$0xf]
  %v55 = vld [vmem:[%s1 + $0x70] sm:$0xf]
  %v56 = vld [vmem:[%s1 + $0x74] sm:$0xf]
  %v57 = vld [vmem:[%s1 + $0x78] sm:$0xf]
  %v58 = vld [vmem:[%s1 + $0x7c] sm:$0xf]
  %v59 = vld [vmem:[%s1 + $0x80] sm:$0xf]
  %v60 = vld [vmem:[%s1 + $0x84] sm:$0xf]
  %v61 = vld [vmem:[%s1 + $0x88] sm:$0xf]
  %v62 = vld [vmem:[%s1 + $0x8c] sm:$0xf]
  %v63 = vld [vmem:[%s1 + $0x90] sm:$0xf]
  %v64 = vld [vmem:[%s1 + $0x94] sm:$0xf]
  %v65 = vld [vmem:[%s1 + $0x98] sm:$0xf]
  %v66 = vld [vmem:[%s1 + $0x9c] sm:$0xf]
  %v67 = vld [vmem:[%s1 + $0xa0] sm:$0xf]
  %v68 = vld [vmem:[%s1 + $0xa4] sm:$0xf]
  %v69 = vld [vmem:[%s1 + $0xa8] sm:$0xf]
  %v70 = vld [vmem:[%s1 + $0xac] sm:$0xf]
  %v71 = vld [vmem:[%s1 + $0xb0] sm:$0xf]
  %v72 = vld [vmem:[%s1 + $0xb4] sm:$0xf]
  %v73 = vld [vmem:[%s1 + $0xb8] sm:$0xf]
  %v74 = vld [vmem:[%s1 + $0xbc] sm:$0xf]
  %v75 = vld [vmem:[%s1 + $0xc0] sm:$0xf]
  %v76 = vld [vmem:[%s1 + $0xc4] sm:$0xf]
  %v77 = vld [vmem:[%s1 + $0xc8] sm:$0xf]
  %v78 = vld [vmem:[%s1 + $0xcc] sm:$0xf]
  %v79 = vld [vmem:[%s1 + $0xd0] sm:$0xf]
  %v80 = vld [vmem:[%s1 + $0xd4] sm:$0xf]
  %v81 = vld [vmem:[%s1 + $0xd8] sm:$0xf]
  %v82 = vld [vmem:[%s1 + $0xdc] sm:$0xf]
  %v83 = vld [vmem:[%s1 + $0xe0] sm:$0xf]
  %v84 = vld [vmem:[%s1 + $0xe4] sm:$0xf]
  %v85 = vld [vmem:[%s1 + $0xe8] sm:$0xf]
  %v86 = vld [vmem:[%s1 + $0xec] sm:$0xf]
  %v87 = vld [vmem:[%s1 + $0xf0] sm:$0xf]
  %v88 = vld [vmem:[%s1 + $0xf4] sm:$0xf]
  %v89 = vld [vmem:[%s1 + $0xf8] sm:$0xf]
  %v90 = vld [vmem:[%s1 + $0xfc] sm:$0xf]
  %v91 = vld [vmem:[%s1 + $0x100] sm:$0xf]
  %v92 = vld [vmem:[%s1 + $0x104] sm:$0xf]
  %v93 = vld [vmem:[%s1 + $0x108] sm:$0xf]
  %v94 = vld [vmem:[%s1 + $0x10c] sm:$0xf]
  %v95 = vld [vmem:[%s1 + $0x110] sm:$0xf]
  %v96 = vld [vmem:[%s1 + $0x114] sm:$0xf]
  %v97 = vld [vmem:[%s1 + $0x118] sm:$0xf]
  %v98 = vld [vmem:[%s1 + $0x11c] sm:$0xf]
  %v99 = vld [vmem:[%s2] sm:$0xff]
  %v100 = vld [vmem:[%s2 + $0x8] sm:$0xff]
  %v101 = vld [vmem:[%s2 + $0x10] sm:$0xff]
  %v102 = vld [vmem:[%s2 + $0x18] sm:$0xff]
  %104 = vset.pattern.permute.xlu0 0
  %105 = vperm.xlu0 %104, %v99
  %v106 = vpop.permute.xlu0 %105
  %109 = vset.pattern.permute.xlu0 0
  %110 = vperm.xlu0 %109, %v100
  %v111 = vpop.permute.xlu0 %110
  %114 = vset.pattern.permute.xlu0 0
  %115 = vperm.xlu0 %114, %v101
  %v116 = vpop.permute.xlu0 %115
  %119 = vset.pattern.permute.xlu0 0
  %120 = vperm.xlu0 %119, %v102
  %v121 = vpop.permute.xlu0 %120
  %v135 = vunpack.c.l.b16 %v15
  %v136 = vunpack.c.h.b16 %v15
  %v137 = vunpack.c.l.b16 %v16
  %v138 = vunpack.c.h.b16 %v16
  %v139 = vunpack.c.l.b16 %v17
  %v140 = vunpack.c.l.b16 %v18
  %v141 = vunpack.c.h.b16 %v18
  %v142 = vunpack.c.l.b16 %v19
  %v143 = vunpack.c.h.b16 %v19
  %v144 = vunpack.c.l.b16 %v20
  %v145 = vunpack.c.l.b16 %v21
  %v146 = vunpack.c.h.b16 %v21
  %v147 = vunpack.c.l.b16 %v22
  %v148 = vunpack.c.h.b16 %v22
  %v149 = vunpack.c.l.b16 %v23
  %v150 = vunpack.c.l.b16 %v24
  %v151 = vunpack.c.h.b16 %v24
  %v152 = vunpack.c.l.b16 %v25
  %v153 = vunpack.c.h.b16 %v25
  %v154 = vunpack.c.l.b16 %v26
  %v155 = vpack.c.b16 %v140, %v135
  %v156 = vpack.c.b16 %v141, %v136
  %v157 = vpack.c.b16 %v142, %v137
  %v158 = vpack.c.b16 %v143, %v138
  %v159 = vpack.c.b16 %v144, %v139
  %v160 = vpack.c.b16 %v150, %v145
  %v161 = vpack.c.b16 %v151, %v146
  %v162 = vpack.c.b16 %v152, %v147
  %v163 = vpack.c.b16 %v153, %v148
  %v164 = vpack.c.b16 %v154, %v149
  %v245 = vunpack.c.l.b16 %v27
  %v246 = vunpack.c.l.b16 %v28
  %v247 = vunpack.c.l.b16 %v29
  %v248 = vunpack.c.l.b16 %v30
  %v249 = vunpack.c.l.b16 %v31
  %v250 = vunpack.c.l.b16 %v32
  %v251 = vunpack.c.l.b16 %v33
  %v252 = vunpack.c.l.b16 %v34
  %v253 = vunpack.c.l.b16 %v35
  %v254 = vunpack.c.l.b16 %v36
  %v255 = vunpack.c.l.b16 %v37
  %v256 = vunpack.c.l.b16 %v38
  %v257 = vunpack.c.l.b16 %v39
  %v258 = vunpack.c.l.b16 %v40
  %v259 = vunpack.c.l.b16 %v41
  %v260 = vunpack.c.l.b16 %v42
  %v261 = vunpack.c.l.b16 %v43
  %v262 = vunpack.c.l.b16 %v44
  %v263 = vunpack.c.l.b16 %v45
  %v264 = vunpack.c.l.b16 %v46
  %v265 = vunpack.c.l.b16 %v47
  %v266 = vunpack.c.l.b16 %v48
  %v267 = vunpack.c.l.b16 %v49
  %v268 = vunpack.c.l.b16 %v50
  %v269 = vunpack.c.l.b16 %v51
  %v270 = vunpack.c.l.b16 %v52
  %v271 = vunpack.c.l.b16 %v53
  %v272 = vunpack.c.l.b16 %v54
  %v273 = vunpack.c.l.b16 %v55
  %v274 = vunpack.c.l.b16 %v56
  %v275 = vunpack.c.l.b16 %v57
  %v276 = vunpack.c.l.b16 %v58
  %v277 = vunpack.c.l.b16 %v59
  %v278 = vunpack.c.l.b16 %v60
  %v279 = vunpack.c.l.b16 %v61
  %v280 = vunpack.c.l.b16 %v62
  %v281 = vunpack.c.l.b16 %v63
  %v282 = vunpack.c.l.b16 %v64
  %v283 = vunpack.c.l.b16 %v65
  %v284 = vunpack.c.l.b16 %v66
  %v285 = vunpack.c.l.b16 %v67
  %v286 = vunpack.c.l.b16 %v68
  %v287 = vunpack.c.l.b16 %v69
  %v288 = vunpack.c.l.b16 %v70
  %v289 = vunpack.c.l.b16 %v71
  %v290 = vunpack.c.l.b16 %v72
  %v291 = vunpack.c.l.b16 %v73
  %v292 = vunpack.c.l.b16 %v74
  %v293 = vunpack.c.l.b16 %v75
  %v294 = vunpack.c.l.b16 %v76
  %v295 = vunpack.c.l.b16 %v77
  %v296 = vunpack.c.l.b16 %v78
  %v297 = vunpack.c.l.b16 %v79
  %v298 = vunpack.c.l.b16 %v80
  %v299 = vunpack.c.l.b16 %v81
  %v300 = vunpack.c.l.b16 %v82
  %v301 = vunpack.c.l.b16 %v83
  %v302 = vunpack.c.l.b16 %v84
  %v303 = vunpack.c.l.b16 %v85
  %v304 = vunpack.c.l.b16 %v86
  %v305 = vunpack.c.l.b16 %v87
  %v306 = vunpack.c.l.b16 %v88
  %v307 = vunpack.c.l.b16 %v89
  %v308 = vunpack.c.l.b16 %v90
  %v309 = vunpack.c.l.b16 %v91
  %v310 = vunpack.c.l.b16 %v92
  %v311 = vunpack.c.l.b16 %v93
  %v312 = vunpack.c.l.b16 %v94
  %v313 = vunpack.c.l.b16 %v95
  %v314 = vunpack.c.l.b16 %v96
  %v315 = vunpack.c.l.b16 %v97
  %v316 = vunpack.c.l.b16 %v98
  %v317 = vpack.c.b16 %v246, %v245
  %v318 = vpack.c.b16 %v248, %v247
  %v319 = vpack.c.b16 %v250, %v249
  %v320 = vpack.c.b16 %v252, %v251
  %v321 = vpack.c.b16 %v254, %v253
  %v322 = vpack.c.b16 %v256, %v255
  %v323 = vpack.c.b16 %v258, %v257
  %v324 = vpack.c.b16 %v260, %v259
  %v325 = vpack.c.b16 %v262, %v261
  %v326 = vpack.c.b16 %v264, %v263
  %v327 = vpack.c.b16 %v266, %v265
  %v328 = vpack.c.b16 %v268, %v267
  %v329 = vpack.c.b16 %v270, %v269
  %v330 = vpack.c.b16 %v272, %v271
  %v331 = vpack.c.b16 %v274, %v273
  %v332 = vpack.c.b16 %v276, %v275
  %v333 = vpack.c.b16 %v278, %v277
  %v334 = vpack.c.b16 %v280, %v279
  %v335 = vpack.c.b16 %v282, %v281
  %v336 = vpack.c.b16 %v284, %v283
  %v337 = vpack.c.b16 %v286, %v285
  %v338 = vpack.c.b16 %v288, %v287
  %v339 = vpack.c.b16 %v290, %v289
  %v340 = vpack.c.b16 %v292, %v291
  %v341 = vpack.c.b16 %v294, %v293
  %v342 = vpack.c.b16 %v296, %v295
  %v343 = vpack.c.b16 %v298, %v297
  %v344 = vpack.c.b16 %v300, %v299
  %v345 = vpack.c.b16 %v302, %v301
  %v346 = vpack.c.b16 %v304, %v303
  %v347 = vpack.c.b16 %v306, %v305
  %v348 = vpack.c.b16 %v308, %v307
  %v349 = vpack.c.b16 %v310, %v309
  %v350 = vpack.c.b16 %v312, %v311
  %v351 = vpack.c.b16 %v314, %v313
  %v352 = vpack.c.b16 %v316, %v315
  %vm389 = vcmask 523264
  %v391 = vsel %vm389, %v159, 0
  %v394 = vsel %vm389, %v164, 0
  %396 = vmatprep.subr.bf16.mxu0 0
  %397 = vmatpush1.bf16.msra.mxu0 %v317
  %398 = vmatprep.subr.bf16.mxu0 0
  %399 = vmatpush1.bf16.msra.mxu0 %v318
  %400 = vmatprep.subr.bf16.mxu0 0
  %401 = vmatpush1.bf16.msra.mxu0 %v319
  %402 = vmatprep.subr.bf16.mxu0 0
  %403 = vmatpush1.bf16.msra.mxu0 %v320
  %404 = vmatprep.subr.bf16.mxu0 0
  %405 = vmatpush1.bf16.msra.mxu0 %v321
  %406 = vmatprep.subr.bf16.mxu0 0
  %407 = vmatpush1.bf16.msra.mxu0 %v322
  %408 = vmatprep.subr.bf16.mxu0 0
  %409 = vmatpush1.bf16.msra.mxu0 %v323
  %410 = vmatprep.subr.bf16.mxu0 0
  %411 = vmatpush1.bf16.msra.mxu0 %v324
  %412 = vmatprep.subr.bf16.mxu0 0
  %413 = vmatpush1.bf16.msra.mxu0 %v325
  %414 = vmatprep.subr.bf16.mxu0 0
  %415 = vmatpush1.bf16.msra.mxu0 %v326
  %416 = vmatprep.subr.bf16.mxu0 0
  %417 = vmatpush1.bf16.msra.mxu0 %v327
  %418 = vmatprep.subr.bf16.mxu0 0
  %419 = vmatpush1.bf16.msra.mxu0 %v328
  %420 = vmatprep.subr.bf16.mxu0 0
  %421 = vmatpush1.bf16.msra.mxu0 %v329
  %422 = vmatprep.subr.bf16.mxu0 0
  %423 = vmatpush1.bf16.msra.mxu0 %v330
  %424 = vmatprep.subr.bf16.mxu0 0
  %425 = vmatpush1.bf16.msra.mxu0 %v331
  %426 = vmatprep.subr.bf16.mxu0 0
  %427 = vmatpush1.bf16.msra.mxu0 %v332
  %428 = vmatprep.mubr.bf16.mxu0 %v156
  %429 = vmatmul.mubr.bf16.gmra.mrb[0].mxu0 %v155
  %v430 = vpop.f32.mrb[0].mxu0
  %v431 = vadd.f32 %v106, %v430
  %v432 = vpop.f32.mrb[0].mxu0
  %v433 = vpop.f32.mrb[0].mxu0
  %v434 = vadd.f32 %v111, %v433
  %v435 = vpop.f32.mrb[0].mxu0
  %436 = vmatprep.mubr.bf16.mxu0 %v161
  %437 = vmatmul.mubr.bf16.gmra.mrb[0].mxu0 %v160
  %v438 = vpop.f32.mrb[0].mxu0
  %v439 = vadd.f32 %v116, %v438
  %v440 = vpop.f32.mrb[0].mxu0
  %v441 = vpop.f32.mrb[0].mxu0
  %v442 = vadd.f32 %v121, %v441
  %v443 = vpop.f32.mrb[0].mxu0
  %444 = vdwg.mxu0
  %445 = vmatprep.subr.bf16.mxu0 0
  %446 = vmatpush1.bf16.msra.mxu0 %v333
  %447 = vmatprep.subr.bf16.mxu0 0
  %448 = vmatpush1.bf16.msra.mxu0 %v334
  %449 = vmatprep.subr.bf16.mxu0 0
  %450 = vmatpush1.bf16.msra.mxu0 %v335
  %451 = vmatprep.subr.bf16.mxu0 0
  %452 = vmatpush1.bf16.msra.mxu0 %v336
  %453 = vmatprep.subr.bf16.mxu0 0
  %454 = vmatpush1.bf16.msra.mxu0 %v337
  %455 = vmatprep.subr.bf16.mxu0 0
  %456 = vmatpush1.bf16.msra.mxu0 %v338
  %457 = vmatprep.subr.bf16.mxu0 0
  %458 = vmatpush1.bf16.msra.mxu0 %v339
  %459 = vmatprep.subr.bf16.mxu0 0
  %460 = vmatpush1.bf16.msra.mxu0 %v340
  %461 = vmatprep.subr.bf16.mxu0 0
  %462 = vmatpush1.bf16.msra.mxu0 %v341
  %463 = vmatprep.subr.bf16.mxu0 0
  %464 = vmatpush1.bf16.msra.mxu0 %v342
  %465 = vmatprep.subr.bf16.mxu0 0
  %466 = vmatpush1.bf16.msra.mxu0 %v343
  %467 = vmatprep.subr.bf16.mxu0 0
  %468 = vmatpush1.bf16.msra.mxu0 %v344
  %469 = vmatprep.subr.bf16.mxu0 0
  %470 = vmatpush1.bf16.msra.mxu0 %v345
  %471 = vmatprep.subr.bf16.mxu0 0
  %472 = vmatpush1.bf16.msra.mxu0 %v346
  %473 = vmatprep.subr.bf16.mxu0 0
  %474 = vmatpush1.bf16.msra.mxu0 %v347
  %475 = vmatprep.subr.bf16.mxu0 0
  %476 = vmatpush1.bf16.msra.mxu0 %v348
  %477 = vmatprep.mubr.bf16.mxu0 %v158
  %478 = vmatmul.mubr.bf16.gmra.mrb[0].mxu0 %v157
  %v479 = vpop.f32.mrb[0].mxu0
  %v480 = vadd.f32 %v431, %v479
  %v481 = vpop.f32.mrb[0].mxu0
  %v482 = vpop.f32.mrb[0].mxu0
  %v483 = vadd.f32 %v434, %v482
  %v484 = vpop.f32.mrb[0].mxu0
  %485 = vmatprep.mubr.bf16.mxu0 %v163
  %486 = vmatmul.mubr.bf16.gmra.mrb[0].mxu0 %v162
  %v487 = vpop.f32.mrb[0].mxu0
  %v488 = vadd.f32 %v439, %v487
  %v489 = vpop.f32.mrb[0].mxu0
  %v490 = vpop.f32.mrb[0].mxu0
  %v491 = vadd.f32 %v442, %v490
  %v492 = vpop.f32.mrb[0].mxu0
  %493 = vdwg.mxu0
  %494 = vmatprep.subr.bf16.mxu0 0
  %495 = vmatpush1.bf16.msra.mxu0 %v349
  %496 = vmatprep.subr.bf16.mxu0 0
  %497 = vmatpush1.bf16.msra.mxu0 %v350
  %498 = vmatprep.subr.bf16.mxu0 0
  %499 = vmatpush1.bf16.msra.mxu0 %v351
  %500 = vmatprep.subr.bf16.mxu0 0
  %501 = vmatpush1.bf16.msra.mxu0 %v352
  %502 = vmatprep.subr.bf16.mxu0 0
  %503 = vmatpush1.bf16.msra.mxu0 0
  %504 = vmatprep.subr.bf16.mxu0 0
  %505 = vmatpush1.bf16.msra.mxu0 0
  %506 = vmatprep.subr.bf16.mxu0 0
  %507 = vmatpush1.bf16.msra.mxu0 0
  %508 = vmatprep.subr.bf16.mxu0 0
  %509 = vmatpush1.bf16.msra.mxu0 0
  %510 = vmatprep.subr.bf16.mxu0 0
  %511 = vmatpush1.bf16.msra.mxu0 0
  %512 = vmatprep.subr.bf16.mxu0 0
  %513 = vmatpush1.bf16.msra.mxu0 0
  %514 = vmatprep.subr.bf16.mxu0 0
  %515 = vmatpush1.bf16.msra.mxu0 0
  %516 = vmatprep.subr.bf16.mxu0 0
  %517 = vmatpush1.bf16.msra.mxu0 0
  %518 = vmatprep.subr.bf16.mxu0 0
  %519 = vmatpush1.bf16.msra.mxu0 0
  %520 = vmatprep.subr.bf16.mxu0 0
  %521 = vmatpush1.bf16.msra.mxu0 0
  %522 = vmatprep.subr.bf16.mxu0 0
  %523 = vmatpush1.bf16.msra.mxu0 0
  %524 = vmatprep.subr.bf16.mxu0 0
  %525 = vmatpush1.bf16.msra.mxu0 0
  %526 = vmatprep.mubr.bf16.mxu0 0
  %527 = vmatmul.mubr.bf16.gmra.mrb[0].mxu0 %v391
  %v528 = vpop.f32.mrb[0].mxu0
  %v529 = vadd.f32 %v480, %v528
  %v530 = vpop.f32.mrb[0].mxu0
  %v531 = vpop.f32.mrb[0].mxu0
  %v532 = vadd.f32 %v483, %v531
  %v533 = vpop.f32.mrb[0].mxu0
  %534 = vmatprep.mubr.bf16.mxu0 0
  %535 = vmatmul.mubr.bf16.gmra.mrb[0].mxu0 %v394
  %v536 = vpop.f32.mrb[0].mxu0
  %v537 = vadd.f32 %v488, %v536
  %v538 = vpop.f32.mrb[0].mxu0
  %v539 = vpop.f32.mrb[0].mxu0
  %v540 = vadd.f32 %v491, %v539
  %v541 = vpop.f32.mrb[0].mxu0
  %542 = vdwg.mxu0
  %v543 = vmax.f32 %v529, 0.0
  %v544 = vmax.f32 %v532, 0.0
  %v545 = vmax.f32 %v537, 0.0
  %v546 = vmax.f32 %v540, 0.0
  %547 = vst [vmem:[%s3] sm:$0xff] %v543
  %548 = vst [vmem:[%s3 + $0x8] sm:$0xff] %v544
  %549 = vst [vmem:[%s3 + $0x10] sm:$0xff] %v545
  %550 = vst [vmem:[%s3 + $0x18] sm:$0xff] %v546
  // Predicated region
  $region14: #{ppsnet_refinement_forward.8} parent=0 // pred_check
    _
  $region15: #{ppsnet_refinement_forward.8} parent=0 // pred_check_branch
    %552 = sbr.rel (0) target = $region17
  $region16: #{ppsnet_refinement_forward.8} parent=0 // pred_region
    _
  $region17: #{ppsnet_refinement_forward.8} parent=0 // pred_fallthru
    _
  // Predicated region
  $region18: #{ppsnet_refinement_forward.8} parent=0 // pred_check
    _
  $region19: #{ppsnet_refinement_forward.8} parent=0 // pred_check_branch
    %554 = sbr.rel (0) target = $region21
  $region20: #{ppsnet_refinement_forward.8} parent=0 // pred_region
    _
  $region21: #{ppsnet_refinement_forward.8} parent=0 // pred_fallthru
    _

// kernel: ppsnet_refinement_forward.9
$region0: #{ppsnet_refinement_forward.9}
  #allocation0 [shape = 'u32[]', space=smem, size = 0x4, offset = 0x4, fixed_abs, tag = 'smem constant byte address 0x4 - core index']
  #allocation1 [shape = 'u32[144,128]{1,0:T(1,128)}', space=vmem, size = 0x12000, scoped, tag = 'internal scratch']
  %s0 = inlined_call_operand.vmem [shape: f32[2,32,2,2], index: 0, kind: input, shape index: {}]
  %s1 = inlined_call_operand.vmem [shape: f32[32,2], index: 1, kind: input, shape index: {}]
  %s2 = inlined_call_operand.vmem [shape: f32[1,2], index: 2, kind: input, shape index: {}]
  %s3 = inlined_call_operand.vmem [shape: f32[2,1,32,32], index: 3, kind: input, shape index: {}]
  %s4 = inlined_call_operand.vmem [shape: f32[16,32], index: 4, kind: input, shape index: {}]
  %s5 = inlined_call_operand.vmem [shape: f32[32,16], index: 5, kind: input, shape index: {}]
  %s6 = inlined_call_operand.vmem [shape: f32[2,1,16,16], index: 6, kind: output, shape index: {}]
  %s7 = sld [smem:[#allocation0]]
  $region57: #{ppsnet_refinement_forward.9} parent=0
    _
  %s9 = ssub.s32 1, %s7
  %s10 = scalar_select 0, %s9, %s7
  loop: start=0, step=1, limit=4
  $region2: #{ppsnet_refinement_forward.9} parent=0 // loop_pre_header
    _
  $region3: #{ppsnet_refinement_forward.9} parent=0 // loop_header
    %s12 = sphi 0, %s16
    %p13 = scmp.ge.s32.totalorder %s12, 4
    %s22 = sphi 0, %s24
    %s25 = sphi 0, %s22
    %s26 = sphi 0, %s25
    %s42 = sphi 0, %s26
    %s46 = sphi 0, %s46
    %s48 = sphi 0, %s46
    %s49 = sphi 0, %s48
    %s63 = sphi 0, %s49
    %s67 = sphi 0, %s67
    %s69 = sphi 0, %s67
    %s70 = sphi 0, %s69
    %s84 = sphi 0, %s70
    %s90 = sphi 0, %s92
    %s93 = sphi 0, %s90
    %s94 = sphi 0, %s93
    %s110 = sphi 0, %s94
    %s114 = sphi 0, %s114
    %s116 = sphi 0, %s114
    %s117 = sphi 0, %s116
    %s131 = sphi 0, %s117
    %s135 = sphi 0, %s135
    %s137 = sphi 0, %s135
    %s138 = sphi 0, %s137
    %s152 = sphi 0, %s138
    %s158 = sphi 0, %s160
    %s161 = sphi 0, %s158
    %s162 = sphi 0, %s161
    %s178 = sphi 0, %s162
  $region4: #{ppsnet_refinement_forward.9} parent=0 // loop_header_branch
    %15 = sbr.rel (%p13) target = $region8
  $region5: #{ppsnet_refinement_forward.9} parent=0 // loop_body
    %s17 = ssub.s32 %s12, 1
    %s18 = ssub.s32 %s12, 2
    %s19 = sadd.s32 %s12, 1
    %s20 = ssub.s32 %s12, %s19
    %p21 = scmp.eq.s32.totalorder %s20, 0
    %s23 = sadd.s32 %s22, 1
    %s24 = scalar_select %p21, %s22, %s23
    %p27 = pneg %p21
    %p28 = scmp.eq.s32.totalorder %s12, 1
    %p29 = por %p27, %p28
    %p30 = scmp.ne.s32.totalorder %s22, %s25
    %p31 = scmp.eq.s32.totalorder %s12, 0
    %p32 = por %p30, %p31
    %p33 = scmp.ne.s32.totalorder %s22, %s25
    %p34 = scmp.eq.s32.totalorder %s17, 1
    %p35 = por %p33, %p34
    %p36 = scmp.ne.s32.totalorder %s25, %s26
    %p37 = scmp.eq.s32.totalorder %s17, 0
    %p38 = por %p36, %p37
    %p39 = scmp.ne.s32.totalorder %s25, %s26
    %p40 = scmp.eq.s32.totalorder %s18, 1
    %p41 = por %p39, %p40
    %p43 = scmp.ne.s32.totalorder %s26, %s42
    %p44 = scmp.eq.s32.totalorder %s18, 0
    %p45 = por %p43, %p44
    %s47 = sadd.s32 %s46, 1
    %p50 = scmp.eq.s32.totalorder %s12, 1
    %p51 = scmp.ne.s32.totalorder %s46, %s48
    %p52 = scmp.eq.s32.totalorder %s12, 0
    %p53 = por %p51, %p52
    %p54 = scmp.ne.s32.totalorder %s46, %s48
    %p55 = scmp.eq.s32.totalorder %s17, 1
    %p56 = por %p54, %p55
    %p57 = scmp.ne.s32.totalorder %s48, %s49
    %p58 = scmp.eq.s32.totalorder %s17, 0
    %p59 = por %p57, %p58
    %p60 = scmp.ne.s32.totalorder %s48, %s49
    %p61 = scmp.eq.s32.totalorder %s18, 1
    %p62 = por %p60, %p61
    %p64 = scmp.ne.s32.totalorder %s49, %s63
    %p65 = scmp.eq.s32.totalorder %s18, 0
    %p66 = por %p64, %p65
    %s68 = sadd.s32 %s67, 1
    %p71 = scmp.eq.s32.totalorder %s12, 1
    %p72 = scmp.ne.s32.totalorder %s67, %s69
    %p73 = scmp.eq.s32.totalorder %s12, 0
    %p74 = por %p72, %p73
    %p75 = scmp.ne.s32.totalorder %s67, %s69
    %p76 = scmp.eq.s32.totalorder %s17, 1
    %p77 = por %p75, %p76
    %p78 = scmp.ne.s32.totalorder %s69, %s70
    %p79 = scmp.eq.s32.totalorder %s17, 0
    %p80 = por %p78, %p79
    %p81 = scmp.ne.s32.totalorder %s69, %s70
    %p82 = scmp.eq.s32.totalorder %s18, 1
    %p83 = por %p81, %p82
    %p85 = scmp.ne.s32.totalorder %s70, %s84
    %p86 = scmp.eq.s32.totalorder %s18, 0
    %p87 = por %p85, %p86
    %s88 = ssub.s32 %s12, %s19
    %p89 = scmp.eq.s32.totalorder %s88, 0
    %s91 = sadd.s32 %s90, 1
    %s92 = scalar_select %p89, %s90, %s91
    %p95 = pneg %p89
    %p96 = scmp.eq.s32.totalorder %s12, 1
    %p97 = por %p95, %p96
    %p98 = scmp.ne.s32.totalorder %s90, %s93
    %p99 = scmp.eq.s32.totalorder %s12, 0
    %p100 = por %p98, %p99
    %p101 = scmp.ne.s32.totalorder %s90, %s93
    %p102 = scmp.eq.s32.totalorder %s17, 1
    %p103 = por %p101, %p102
    %p104 = scmp.ne.s32.totalorder %s93, %s94
    %p105 = scmp.eq.s32.totalorder %s17, 0
    %p106 = por %p104, %p105
    %p107 = scmp.ne.s32.totalorder %s93, %s94
    %p108 = scmp.eq.s32.totalorder %s18, 1
    %p109 = por %p107, %p108
    %p111 = scmp.ne.s32.totalorder %s94, %s110
    %p112 = scmp.eq.s32.totalorder %s18, 0
    %p113 = por %p111, %p112
    %s115 = sadd.s32 %s114, 1
    %p118 = scmp.eq.s32.totalorder %s12, 1
    %p119 = scmp.ne.s32.totalorder %s114, %s116
    %p120 = scmp.eq.s32.totalorder %s12, 0
    %p121 = por %p119, %p120
    %p122 = scmp.ne.s32.totalorder %s114, %s116
    %p123 = scmp.eq.s32.totalorder %s17, 1
    %p124 = por %p122, %p123
    %p125 = scmp.ne.s32.totalorder %s116, %s117
    %p126 = scmp.eq.s32.totalorder %s17, 0
    %p127 = por %p125, %p126
    %p128 = scmp.ne.s32.totalorder %s116, %s117
    %p129 = scmp.eq.s32.totalorder %s18, 1
    %p130 = por %p128, %p129
    %p132 = scmp.ne.s32.totalorder %s117, %s131
    %p133 = scmp.eq.s32.totalorder %s18, 0
    %p134 = por %p132, %p133
    %s136 = sadd.s32 %s135, 1
    %p139 = scmp.eq.s32.totalorder %s12, 1
    %p140 = scmp.ne.s32.totalorder %s135, %s137
    %p141 = scmp.eq.s32.totalorder %s12, 0
    %p142 = por %p140, %p141
    %p143 = scmp.ne.s32.totalorder %s135, %s137
    %p144 = scmp.eq.s32.totalorder %s17, 1
    %p145 = por %p143, %p144
    %p146 = scmp.ne.s32.totalorder %s137, %s138
    %p147 = scmp.eq.s32.totalorder %s17, 0
    %p148 = por %p146, %p147
    %p149 = scmp.ne.s32.totalorder %s137, %s138
    %p150 = scmp.eq.s32.totalorder %s18, 1
    %p151 = por %p149, %p150
    %p153 = scmp.ne.s32.totalorder %s138, %s152
    %p154 = scmp.eq.s32.totalorder %s18, 0
    %p155 = por %p153, %p154
    %s156 = ssub.s32 %s12, %s19
    %p157 = scmp.eq.s32.totalorder %s156, 0
    %s159 = sadd.s32 %s158, 1
    %s160 = scalar_select %p157, %s158, %s159
    %p163 = pneg %p157
    %p164 = scmp.eq.s32.totalorder %s12, 1
    %p165 = por %p163, %p164
    %p166 = scmp.ne.s32.totalorder %s158, %s161
    %p167 = scmp.eq.s32.totalorder %s12, 0
    %p168 = por %p166, %p167
    %p169 = scmp.ne.s32.totalorder %s158, %s161
    %p170 = scmp.eq.s32.totalorder %s17, 1
    %p171 = por %p169, %p170
    %p172 = scmp.ne.s32.totalorder %s161, %s162
    %p173 = scmp.eq.s32.totalorder %s17, 0
    %p174 = por %p172, %p173
    %p175 = scmp.ne.s32.totalorder %s161, %s162
    %p176 = scmp.eq.s32.totalorder %s18, 1
    %p177 = por %p175, %p176
    %p179 = scmp.ne.s32.totalorder %s162, %s178
    %p180 = scmp.eq.s32.totalorder %s18, 0
    %p181 = por %p179, %p180
    %p182 = scmp.le.s32.totalorder 1, %s12
    %p183 = scmp.lt.s32.totalorder %s12, 3
    %p184 = pnand %p182, %p183
    %p185 = pneg %p184
    // Predicated region
    $region9: #{ppsnet_refinement_forward.9} parent=5 // pred_check
      _
    $region10: #{ppsnet_refinement_forward.9} parent=5 // pred_check_branch
      %187 = sbr.rel (%p184) target = $region12
    $region11: #{ppsnet_refinement_forward.9} parent=5 // pred_region
      %s188 = ssub.s32 %s12, 1
      // Predicated region
      $region13: #{ppsnet_refinement_forward.9} parent=11 // pred_check
        %p189 = pneg %p59
      $region14: #{ppsnet_refinement_forward.9} parent=11 // pred_check_branch
        %191 = sbr.rel (%p189) target = $region16
      $region15: #{ppsnet_refinement_forward.9} parent=11 // pred_region
        _
      $region16: #{ppsnet_refinement_forward.9} parent=11 // pred_fallthru
        _
      // Predicated region
      $region17: #{ppsnet_refinement_forward.9} parent=11 // pred_check
        %p192 = pneg %p80
      $region18: #{ppsnet_refinement_forward.9} parent=11 // pred_check_branch
        %194 = sbr.rel (%p192) target = $region20
      $region19: #{ppsnet_refinement_forward.9} parent=11 // pred_region
        _
      $region20: #{ppsnet_refinement_forward.9} parent=11 // pred_fallthru
        _
      // Predicated region
      $region21: #{ppsnet_refinement_forward.9} parent=11 // pred_check
        %p195 = pneg %p127
      $region22: #{ppsnet_refinement_forward.9} parent=11 // pred_check_branch
        %197 = sbr.rel (%p195) target = $region24
      $region23: #{ppsnet_refinement_forward.9} parent=11 // pred_region
        _
      $region24: #{ppsnet_refinement_forward.9} parent=11 // pred_fallthru
        _
      // Predicated region
      $region25: #{ppsnet_refinement_forward.9} parent=11 // pred_check
        %p198 = pneg %p148
      $region26: #{ppsnet_refinement_forward.9} parent=11 // pred_check_branch
        %200 = sbr.rel (%p198) target = $region28
      $region27: #{ppsnet_refinement_forward.9} parent=11 // pred_region
        _
      $region28: #{ppsnet_refinement_forward.9} parent=11 // pred_fallthru
        _
    $region12: #{ppsnet_refinement_forward.9} parent=5 // pred_fallthru
      _
    %p201 = scmp.lt.s32.totalorder %s12, 2
    // Predicated region
    $region29: #{ppsnet_refinement_forward.9} parent=5 // pred_check
      %p202 = pneg %p201
    $region30: #{ppsnet_refinement_forward.9} parent=5 // pred_check_branch
      %204 = sbr.rel (%p202) target = $region32
    $region31: #{ppsnet_refinement_forward.9} parent=5 // pred_region
      // Predicated region
      $region33: #{ppsnet_refinement_forward.9} parent=31 // pred_check
        %p205 = pneg %p32
      $region34: #{ppsnet_refinement_forward.9} parent=31 // pred_check_branch
        %207 = sbr.rel (%p205) target = $region36
      $region35: #{ppsnet_refinement_forward.9} parent=31 // pred_region
        %p208 = scmp.lt.s32.totalorder %s12, 1
        %s209 = scalar_select %p208, %s12, 1
        %s210 = smul.addr %s209, 32
        %s211 = smul.addr %s210, 2
        %s212 = scalar_lea.vmem %s0, %s211
      $region36: #{ppsnet_refinement_forward.9} parent=31 // pred_fallthru
        _
      // Predicated region
      $region37: #{ppsnet_refinement_forward.9} parent=31 // pred_check
        %p213 = pneg %p100
      $region38: #{ppsnet_refinement_forward.9} parent=31 // pred_check_branch
        %215 = sbr.rel (%p213) target = $region40
      $region39: #{ppsnet_refinement_forward.9} parent=31 // pred_region
        %p216 = scmp.lt.s32.totalorder %s12, 1
        %s217 = scalar_select %p216, %s12, 1
        %s218 = smul.addr %s217, 4
        %s219 = smul.addr %s218, 8
        %s220 = scalar_lea.vmem %s3, %s219
      $region40: #{ppsnet_refinement_forward.9} parent=31 // pred_fallthru
        _
    $region32: #{ppsnet_refinement_forward.9} parent=5 // pred_fallthru
      _
    %p221 = scmp.le.s32.totalorder 1, %s12
    %p222 = scmp.lt.s32.totalorder %s12, 3
    %p223 = pnand %p221, %p222
    %p224 = pneg %p223
    // Predicated region
    $region41: #{ppsnet_refinement_forward.9} parent=5 // pred_check
      _
    $region42: #{ppsnet_refinement_forward.9} parent=5 // pred_check_branch
      %226 = sbr.rel (%p223) target = $region44
    $region43: #{ppsnet_refinement_forward.9} parent=5 // pred_region
      %s227 = ssub.s32 %s12, 1
      %p228 = scmp.lt.s32.totalorder %s17, 1
      %s229 = scalar_select %p228, %s17, 1
      %s230 = smul.addr %s229, 32
      %s231 = smul.addr %s230, 2
      %s232 = scalar_lea.vmem %s0, %s231
      %p233 = pneg %p38
      %p234 = pneg %p35
      %p235 = pneg %p59
      %p236 = pneg %p56
      %p237 = pneg %p80
      %p238 = pneg %p77
      %p239 = scmp.lt.s32.totalorder %s17, 1
      %s240 = scalar_select %p239, %s17, 1
      %s241 = smul.addr %s240, 4
      %s242 = smul.addr %s241, 8
      %s243 = scalar_lea.vmem %s3, %s242
      %p244 = pneg %p106
      %p245 = pneg %p103
      %p246 = pneg %p127
      %p247 = pneg %p124
      %p248 = pneg %p148
      %p249 = pneg %p145
      %p250 = pneg %p174
      %p251 = pneg %p171
      %p252 = scmp.lt.s32.totalorder %s17, 1
      %s253 = scalar_select %p252, %s17, 1
      %s254 = smul.addr %s253, 2
      %s255 = smul.addr %s254, 8
      %s256 = scalar_lea.vmem %s6, %s255
      %p257 = scmp.lt.s32.totalorder %s17, 1
      %s258 = scalar_select %p257, %s17, 1
      %s259 = smul.addr %s258, 32
      %s260 = smul.addr %s259, 2
      %s261 = scalar_lea.vmem %s0, %s260
      %p262 = scmp.lt.s32.totalorder %s17, 1
      %s263 = scalar_select %p262, %s17, 1
      %s264 = smul.addr %s263, 4
      %s265 = smul.addr %s264, 8
      %s266 = scalar_lea.vmem %s3, %s265
      %p267 = scmp.lt.s32.totalorder %s17, 1
      %s268 = scalar_select %p267, %s17, 1
      %s269 = smul.addr %s268, 2
      %s270 = smul.addr %s269, 8
      %s271 = scalar_lea.vmem %s6, %s270
      %v272 = vld [vmem:[%s261] sm:$0x3]
      %v273 = vld [vmem:[%s261 + $0x2] sm:$0x3]
      %v274 = vld [vmem:[%s261 + $0x4] sm:$0x3]
      %v275 = vld [vmem:[%s261 + $0x6] sm:$0x3]
      %v276 = vld [vmem:[%s261 + $0x8] sm:$0x3]
      %v277 = vld [vmem:[%s261 + $0xa] sm:$0x3]
      %v278 = vld [vmem:[%s261 + $0xc] sm:$0x3]
      %v279 = vld [vmem:[%s261 + $0xe] sm:$0x3]
      %v280 = vld [vmem:[%s261 + $0x10] sm:$0x3]
      %v281 = vld [vmem:[%s261 + $0x12] sm:$0x3]
      %v282 = vld [vmem:[%s261 + $0x14] sm:$0x3]
      %v283 = vld [vmem:[%s261 + $0x16] sm:$0x3]
      %v284 = vld [vmem:[%s261 + $0x18] sm:$0x3]
      %v285 = vld [vmem:[%s261 + $0x1a] sm:$0x3]
      %v286 = vld [vmem:[%s261 + $0x1c] sm:$0x3]
      %v287 = vld [vmem:[%s261 + $0x1e] sm:$0x3]
      %v288 = vld [vmem:[%s261 + $0x20] sm:$0x3]
      %v289 = vld [vmem:[%s261 + $0x22] sm:$0x3]
      %v290 = vld [vmem:[%s261 + $0x24] sm:$0x3]
      %v291 = vld [vmem:[%s261 + $0x26] sm:$0x3]
      %v292 = vld [vmem:[%s261 + $0x28] sm:$0x3]
      %v293 = vld [vmem:[%s261 + $0x2a] sm:$0x3]
      %v294 = vld [vmem:[%s261 + $0x2c] sm:$0x3]
      %v295 = vld [vmem:[%s261 + $0x2e] sm:$0x3]
      %v296 = vld [vmem:[%s261 + $0x30] sm:$0x3]
      %v297 = vld [vmem:[%s261 + $0x32] sm:$0x3]
      %v298 = vld [vmem:[%s261 + $0x34] sm:$0x3]
      %v299 = vld [vmem:[%s261 + $0x36] sm:$0x3]
      %v300 = vld [vmem:[%s261 + $0x38] sm:$0x3]
      %v301 = vld [vmem:[%s261 + $0x3a] sm:$0x3]
      %v302 = vld [vmem:[%s261 + $0x3c] sm:$0x3]
      %v303 = vld [vmem:[%s261 + $0x3e] sm:$0x3]
      %vm304 = vcmask 9216
      %v305 = vsel %vm304, %v272, 0.0
      %306 = vadd.xlane.f32.xlu0 %v305
      %v307 = vpop.xlane.xlu0 %306
      %v308 = vsel %vm304, %v273, 0.0
      %309 = vadd.xlane.f32.xlu0 %v308
      %v310 = vpop.xlane.xlu0 %309
      %v311 = vsel %vm304, %v274, 0.0
      %312 = vadd.xlane.f32.xlu0 %v311
      %v313 = vpop.xlane.xlu0 %312
      %v314 = vsel %vm304, %v275, 0.0
      %315 = vadd.xlane.f32.xlu0 %v314
      %v316 = vpop.xlane.xlu0 %315
      %v317 = vsel %vm304, %v276, 0.0
      %318 = vadd.xlane.f32.xlu0 %v317
      %v319 = vpop.xlane.xlu0 %318
      %v320 = vsel %vm304, %v277, 0.0
      %321 = vadd.xlane.f32.xlu0 %v320
      %v322 = vpop.xlane.xlu0 %321
      %v323 = vsel %vm304, %v278, 0.0
      %324 = vadd.xlane.f32.xlu0 %v323
      %v325 = vpop.xlane.xlu0 %324
      %v326 = vsel %vm304, %v279, 0.0
      %327 = vadd.xlane.f32.xlu0 %v326
      %v328 = vpop.xlane.xlu0 %327
      %v329 = vsel %vm304, %v280, 0.0
      %330 = vadd.xlane.f32.xlu0 %v329
      %v331 = vpop.xlane.xlu0 %330
      %v332 = vsel %vm304, %v281, 0.0
      %333 = vadd.xlane.f32.xlu0 %v332
      %v334 = vpop.xlane.xlu0 %333
      %v335 = vsel %vm304, %v282, 0.0
      %336 = vadd.xlane.f32.xlu0 %v335
      %v337 = vpop.xlane.xlu0 %336
      %v338 = vsel %vm304, %v283, 0.0
      %339 = vadd.xlane.f32.xlu0 %v338
      %v340 = vpop.xlane.xlu0 %339
      %v341 = vsel %vm304, %v284, 0.0
      %342 = vadd.xlane.f32.xlu0 %v341
      %v343 = vpop.xlane.xlu0 %342
      %v344 = vsel %vm304, %v285, 0.0
      %345 = vadd.xlane.f32.xlu0 %v344
      %v346 = vpop.xlane.xlu0 %345
      %v347 = vsel %vm304, %v286, 0.0
      %348 = vadd.xlane.f32.xlu0 %v347
      %v349 = vpop.xlane.xlu0 %348
      %v350 = vsel %vm304, %v287, 0.0
      %351 = vadd.xlane.f32.xlu0 %v350
      %v352 = vpop.xlane.xlu0 %351
      %v353 = vsel %vm304, %v288, 0.0
      %354 = vadd.xlane.f32.xlu0 %v353
      %v355 = vpop.xlane.xlu0 %354
      %v356 = vsel %vm304, %v289, 0.0
      %357 = vadd.xlane.f32.xlu0 %v356
      %v358 = vpop.xlane.xlu0 %357
      %v359 = vsel %vm304, %v290, 0.0
      %360 = vadd.xlane.f32.xlu0 %v359
      %v361 = vpop.xlane.xlu0 %360
      %v362 = vsel %vm304, %v291, 0.0
      %363 = vadd.xlane.f32.xlu0 %v362
      %v364 = vpop.xlane.xlu0 %363
      %v365 = vsel %vm304, %v292, 0.0
      %366 = vadd.xlane.f32.xlu0 %v365
      %v367 = vpop.xlane.xlu0 %366
      %v368 = vsel %vm304, %v293, 0.0
      %369 = vadd.xlane.f32.xlu0 %v368
      %v370 = vpop.xlane.xlu0 %369
      %v371 = vsel %vm304, %v294, 0.0
      %372 = vadd.xlane.f32.xlu0 %v371
      %v373 = vpop.xlane.xlu0 %372
      %v374 = vsel %vm304, %v295, 0.0
      %375 = vadd.xlane.f32.xlu0 %v374
      %v376 = vpop.xlane.xlu0 %375
      %v377 = vsel %vm304, %v296, 0.0
      %378 = vadd.xlane.f32.xlu0 %v377
      %v379 = vpop.xlane.xlu0 %378
      %v380 = vsel %vm304, %v297, 0.0
      %381 = vadd.xlane.f32.xlu0 %v380
      %v382 = vpop.xlane.xlu0 %381
      %v383 = vsel %vm304, %v298, 0.0
      %384 = vadd.xlane.f32.xlu0 %v383
      %v385 = vpop.xlane.xlu0 %384
      %v386 = vsel %vm304, %v299, 0.0
      %387 = vadd.xlane.f32.xlu0 %v386
      %v388 = vpop.xlane.xlu0 %387
      %v389 = vsel %vm304, %v300, 0.0
      %390 = vadd.xlane.f32.xlu0 %v389
      %v391 = vpop.xlane.xlu0 %390
      %v392 = vsel %vm304, %v301, 0.0
      %393 = vadd.xlane.f32.xlu0 %v392
      %v394 = vpop.xlane.xlu0 %393
      %v395 = vsel %vm304, %v302, 0.0
      %396 = vadd.xlane.f32.xlu0 %v395
      %v397 = vpop.xlane.xlu0 %396
      %v398 = vsel %vm304, %v303, 0.0
      %399 = vadd.xlane.f32.xlu0 %v398
      %v400 = vpop.xlane.xlu0 %399
      %v433 = vlaneseq
      %v434 = vand.u32 %v433, 127
      %v435 = vlaneseq
      %v436 = vshrl.u32 %v435, 7
      %v437 = vsub.s32 %v434, %v436
      %v438 = vrot.slane %v307, %v437
      %v439 = vlaneseq
      %v440 = vshrl.u32 %v439, 7
      %v441 = vsub.s32 %v434, %v440
      %v442 = vrot.slane %v310, %v441
      %v443 = vlaneseq
      %v444 = vshrl.u32 %v443, 7
      %v445 = vsub.s32 %v434, %v444
      %v446 = vrot.slane %v313, %v445
      %v447 = vlaneseq
      %v448 = vshrl.u32 %v447, 7
      %v449 = vsub.s32 %v434, %v448
      %v450 = vrot.slane %v316, %v449
      %v451 = vlaneseq
      %v452 = vshrl.u32 %v451, 7
      %v453 = vsub.s32 %v434, %v452
      %v454 = vrot.slane %v319, %v453
      %v455 = vlaneseq
      %v456 = vshrl.u32 %v455, 7
      %v457 = vsub.s32 %v434, %v456
      %v458 = vrot.slane %v322, %v457
      %v459 = vlaneseq
      %v460 = vshrl.u32 %v459, 7
      %v461 = vsub.s32 %v434, %v460
      %v462 = vrot.slane %v325, %v461
      %v463 = vlaneseq
      %v464 = vshrl.u32 %v463, 7
      %v465 = vsub.s32 %v434, %v464
      %v466 = vrot.slane %v328, %v465
      %v467 = vlaneseq
      %v468 = vshrl.u32 %v467, 7
      %v469 = vsub.s32 %v434, %v468
      %v470 = vrot.slane %v331, %v469
      %v471 = vlaneseq
      %v472 = vshrl.u32 %v471, 7
      %v473 = vsub.s32 %v434, %v472
      %v474 = vrot.slane %v334, %v473
      %v475 = vlaneseq
      %v476 = vshrl.u32 %v475, 7
      %v477 = vsub.s32 %v434, %v476
      %v478 = vrot.slane %v337, %v477
      %v479 = vlaneseq
      %v480 = vshrl.u32 %v479, 7
      %v481 = vsub.s32 %v434, %v480
      %v482 = vrot.slane %v340, %v481
      %v483 = vlaneseq
      %v484 = vshrl.u32 %v483, 7
      %v485 = vsub.s32 %v434, %v484
      %v486 = vrot.slane %v343, %v485
      %v487 = vlaneseq
      %v488 = vshrl.u32 %v487, 7
      %v489 = vsub.s32 %v434, %v488
      %v490 = vrot.slane %v346, %v489
      %v491 = vlaneseq
      %v492 = vshrl.u32 %v491, 7
      %v493 = vsub.s32 %v434, %v492
      %v494 = vrot.slane %v349, %v493
      %v495 = vlaneseq
      %v496 = vshrl.u32 %v495, 7
      %v497 = vsub.s32 %v434, %v496
      %v498 = vrot.slane %v352, %v497
      %v499 = vlaneseq
      %v500 = vshrl.u32 %v499, 7
      %v501 = vsub.s32 %v434, %v500
      %v502 = vrot.slane %v355, %v501
      %v503 = vlaneseq
      %v504 = vshrl.u32 %v503, 7
      %v505 = vsub.s32 %v434, %v504
      %v506 = vrot.slane %v358, %v505
      %v507 = vlaneseq
      %v508 = vshrl.u32 %v507, 7
      %v509 = vsub.s32 %v434, %v508
      %v510 = vrot.slane %v361, %v509
      %v511 = vlaneseq
      %v512 = vshrl.u32 %v511, 7
      %v513 = vsub.s32 %v434, %v512
      %v514 = vrot.slane %v364, %v513
      %v515 = vlaneseq
      %v516 = vshrl.u32 %v515, 7
      %v517 = vsub.s32 %v434, %v516
      %v518 = vrot.slane %v367, %v517
      %v519 = vlaneseq
      %v520 = vshrl.u32 %v519, 7
      %v521 = vsub.s32 %v434, %v520
      %v522 = vrot.slane %v370, %v521
      %v523 = vlaneseq
      %v524 = vshrl.u32 %v523, 7
      %v525 = vsub.s32 %v434, %v524
      %v526 = vrot.slane %v373, %v525
      %v527 = vlaneseq
      %v528 = vshrl.u32 %v527, 7
      %v529 = vsub.s32 %v434, %v528
      %v530 = vrot.slane %v376, %v529
      %v531 = vlaneseq
      %v532 = vshrl.u32 %v531, 7
      %v533 = vsub.s32 %v434, %v532
      %v534 = vrot.slane %v379, %v533
      %v535 = vlaneseq
      %v536 = vshrl.u32 %v535, 7
      %v537 = vsub.s32 %v434, %v536
      %v538 = vrot.slane %v382, %v537
      %v539 = vlaneseq
      %v540 = vshrl.u32 %v539, 7
      %v541 = vsub.s32 %v434, %v540
      %v542 = vrot.slane %v385, %v541
      %v543 = vlaneseq
      %v544 = vshrl.u32 %v543, 7
      %v545 = vsub.s32 %v434, %v544
      %v546 = vrot.slane %v388, %v545
      %v547 = vlaneseq
      %v548 = vshrl.u32 %v547, 7
      %v549 = vsub.s32 %v434, %v548
      %v550 = vrot.slane %v391, %v549
      %v551 = vlaneseq
      %v552 = vshrl.u32 %v551, 7
      %v553 = vsub.s32 %v434, %v552
      %v554 = vrot.slane %v394, %v553
      %v555 = vlaneseq
      %v556 = vshrl.u32 %v555, 7
      %v557 = vsub.s32 %v434, %v556
      %v558 = vrot.slane %v397, %v557
      %v559 = vlaneseq
      %v560 = vshrl.u32 %v559, 7
      %v561 = vsub.s32 %v434, %v560
      %v562 = vrot.slane %v400, %v561
      %vm563 = vcmask 1041409
      %v564 = vsel %vm563, %v442, %v438
      %vm565 = vcmask 1042434
      %v566 = vsel %vm565, %v446, %v564
      %vm567 = vcmask 1043459
      %v568 = vsel %vm567, %v450, %v566
      %vm569 = vcmask 1044484
      %v570 = vsel %vm569, %v454, %v568
      %vm571 = vcmask 1045509
      %v572 = vsel %vm571, %v458, %v570
      %vm573 = vcmask 1046534
      %v574 = vsel %vm573, %v462, %v572
      %vm575 = vcmask 1047559
      %v576 = vsel %vm575, %v466, %v574
      %v577 = vsel %vm563, %v474, %v470
      %v578 = vsel %vm565, %v478, %v577
      %v579 = vsel %vm567, %v482, %v578
      %v580 = vsel %vm569, %v486, %v579
      %v581 = vsel %vm571, %v490, %v580
      %v582 = vsel %vm573, %v494, %v581
      %v583 = vsel %vm575, %v498, %v582
      %v584 = vsel %vm563, %v506, %v502
      %v585 = vsel %vm565, %v510, %v584
      %v586 = vsel %vm567, %v514, %v585
      %v587 = vsel %vm569, %v518, %v586
      %v588 = vsel %vm571, %v522, %v587
      %v589 = vsel %vm573, %v526, %v588
      %v590 = vsel %vm575, %v530, %v589
      %v591 = vsel %vm563, %v538, %v534
      %v592 = vsel %vm565, %v542, %v591
      %v593 = vsel %vm567, %v546, %v592
      %v594 = vsel %vm569, %v550, %v593
      %v595 = vsel %vm571, %v554, %v594
      %v596 = vsel %vm573, %v558, %v595
      %v597 = vsel %vm575, %v562, %v596
      %vm602 = vcmask 15360
      %v603 = vsel %vm602, %v576, 0.0
      %604 = vadd.xlane.f32.xlu0 %v603
      %v605 = vpop.xlane.xlu0 %604
      %v606 = vsel %vm602, %v583, 0.0
      %607 = vadd.xlane.f32.xlu0 %v606
      %v608 = vpop.xlane.xlu0 %607
      %v609 = vsel %vm602, %v590, 0.0
      %610 = vadd.xlane.f32.xlu0 %v609
      %v611 = vpop.xlane.xlu0 %610
      %v612 = vsel %vm602, %v597, 0.0
      %613 = vadd.xlane.f32.xlu0 %v612
      %v614 = vpop.xlane.xlu0 %613
      %v615 = vmul.f32 %v605, 0.25
      %v616 = vmul.f32 %v608, 0.25
      %v617 = vmul.f32 %v611, 0.25
      %v618 = vmul.f32 %v614, 0.25
      %v619 = vld [vmem:[%s1] sm:$0xff]
      %v620 = vld [vmem:[%s1 + $0x8] sm:$0xff]
      %v621 = vld [vmem:[%s1 + $0x10] sm:$0xff]
      %v622 = vld [vmem:[%s1 + $0x18] sm:$0xff]
      %v623 = vld [vmem:[%s2] sm:$0x1]
      %v628 = vlaneseq
      %v629 = vshrl.u32 %v628, 7
      %v630 = vsub.s32 %v434, %v629
      %v631 = vrot.slane %v615, %v630
      %v632 = vadd.s32 %v434, 4294967288
      %v633 = vlaneseq
      %v634 = vshrl.u32 %v633, 7
      %v635 = vsub.s32 %v632, %v634
      %v636 = vrot.slane %v616, %v635
      %vm637 = vcmask 130112
      %v638 = vsel %vm637, %v636, %v631
      %v639 = vadd.s32 %v434, 4294967280
      %v640 = vlaneseq
      %v641 = vshrl.u32 %v640, 7
      %v642 = vsub.s32 %v639, %v641
      %v643 = vrot.slane %v617, %v642
      %vm644 = vcmask 195712
      %v645 = vsel %vm644, %v643, %v638
      %v646 = vadd.s32 %v434, 4294967272
      %v647 = vlaneseq
      %v648 = vshrl.u32 %v647, 7
      %v649 = vsub.s32 %v646, %v648
      %v650 = vrot.slane %v618, %v649
      %vm651 = vcmask 261312
      %v652 = vsel %vm651, %v650, %v645
      %vm653 = vcmask 261120
      %v654 = vsel %vm653, %v652, 0
      %656 = vmatprep.subr.mxu0 0.0
      %657 = vmatpush1.msra.mxu0 %v619
      %658 = vmatprep.subr.mxu0 0.0
      %659 = vmatpush1.msra.mxu0 %v620
      %660 = vmatprep.subr.mxu0 0.0
      %661 = vmatpush1.msra.mxu0 %v621
      %662 = vmatprep.subr.mxu0 0.0
      %663 = vmatpush1.msra.mxu0 %v622
      %664 = vmatprep.subr.mxu0 0.0
      %665 = vmatpush1.msra.mxu0 0.0
      %666 = vmatprep.subr.mxu0 0.0
      %667 = vmatpush1.msra.mxu0 0.0
      %668 = vmatprep.subr.mxu0 0.0
      %669 = vmatpush1.msra.mxu0 0.0
      %670 = vmatprep.subr.mxu0 0.0
      %671 = vmatpush1.msra.mxu0 0.0
      %672 = vmatprep.subr.mxu0 0.0
      %673 = vmatpush1.msra.mxu0 0.0
      %674 = vmatprep.subr.mxu0 0.0
      %675 = vmatpush1.msra.mxu0 0.0
      %676 = vmatprep.subr.mxu0 0.0
      %677 = vmatpush1.msra.mxu0 0.0
      %678 = vmatprep.subr.mxu0 0.0
      %679 = vmatpush1.msra.mxu0 0.0
      %680 = vmatprep.subr.mxu0 0.0
      %681 = vmatpush1.msra.mxu0 0.0
      %682 = vmatprep.subr.mxu0 0.0
      %683 = vmatpush1.msra.mxu0 0.0
      %684 = vmatprep.subr.mxu0 0.0
      %685 = vmatpush1.msra.mxu0 0.0
      %686 = vmatprep.subr.mxu0 0.0
      %687 = vmatpush1.msra.mxu0 0.0
      %688 = vmatprep.subr.mxu0 0.0
      %689 = vmatpush1.msra.mxu0 0.0
      %690 = vmatprep.subr.mxu0 0.0
      %691 = vmatpush1.msra.mxu0 0.0
      %692 = vmatprep.subr.mxu0 0.0
      %693 = vmatpush1.msra.mxu0 0.0
      %694 = vmatprep.subr.mxu0 0.0
      %695 = vmatpush1.msra.mxu0 0.0
      %696 = vmatprep.subr.mxu0 0.0
      %697 = vmatpush1.msra.mxu0 0.0
      %698 = vmatprep.subr.mxu0 0.0
      %699 = vmatpush1.msra.mxu0 0.0
      %700 = vmatprep.subr.mxu0 0.0
      %701 = vmatpush1.msra.mxu0 0.0
      %702 = vmatprep.subr.mxu0 0.0
      %703 = vmatpush1.msra.mxu0 0.0
      %704 = vmatprep.subr.mxu0 0.0
      %705 = vmatpush1.msra.mxu0 0.0
      %706 = vmatprep.subr.mxu0 0.0
      %707 = vmatpush1.msra.mxu0 0.0
      %708 = vmatprep.subr.mxu0 0.0
      %709 = vmatpush1.msra.mxu0 0.0
      %710 = vmatprep.subr.mxu0 0.0
      %711 = vmatpush1.msra.mxu0 0.0
      %712 = vmatprep.subr.mxu0 0.0
      %713 = vmatpush1.msra.mxu0 0.0
      %714 = vmatprep.subr.mxu0 0.0
      %715 = vmatpush1.msra.mxu0 0.0
      %716 = vmatprep.subr.mxu0 0.0
      %717 = vmatpush1.msra.mxu0 0.0
      %718 = vmatprep.subr.mxu0 0.0
      %719 = vmatpush1.msra.mxu0 0.0
      %720 = vmatprep.mubr.f32.mxu0 0.0
      %721 = vmatmul.mubr.f32.gmra.mrb[0].mxu0 %v654
      %v722 = vpop.f32.mrb[0].mxu0
      %v723 = vadd.f32 %v623, %v722
      %v724 = vpop.f32.mrb[0].mxu0
      %725 = vdwg.mxu0
      %v726 = vld [vmem:[%s266] sm:$0xff]
      %v727 = vld [vmem:[%s266 + $0x8] sm:$0xff]
      %v728 = vld [vmem:[%s266 + $0x10] sm:$0xff]
      %v729 = vld [vmem:[%s266 + $0x18] sm:$0xff]
      %s731 = vtos %v723
      %v732 = vstv %s731
      %v734 = vmul.f32 %v726, %v732
      %v735 = vmul.f32 %v727, %v732
      %v736 = vmul.f32 %v728, %v732
      %v737 = vmul.f32 %v729, %v732
      %738 = vrot.lane.b32.xlu0 %v723, 127
      %v739 = vpop.permute.xlu0 %738
      %s740 = vtos %v739
      %v741 = vstv %s740
      %v743 = vadd.f32 %v734, %v741
      %v744 = vadd.f32 %v735, %v741
      %v745 = vadd.f32 %v736, %v741
      %v746 = vadd.f32 %v737, %v741
      %v747 = vld [vmem:[%s4] sm:$0xff]
      %v748 = vld [vmem:[%s4 + $0x8] sm:$0xff]
      %v750 = vsel %vm653, %v747, 0
      %v753 = vsel %vm653, %v748, 0
      %755 = vmatprep.subr.mxu0 0.0
      %756 = vmatpush1.msra.mxu0 %v743
      %757 = vmatprep.subr.mxu0 0.0
      %758 = vmatpush1.msra.mxu0 %v744
      %759 = vmatprep.subr.mxu0 0.0
      %760 = vmatpush1.msra.mxu0 %v745
      %761 = vmatprep.subr.mxu0 0.0
      %762 = vmatpush1.msra.mxu0 %v746
      %763 = vmatprep.subr.mxu0 0.0
      %764 = vmatpush1.msra.mxu0 0.0
      %765 = vmatprep.subr.mxu0 0.0
      %766 = vmatpush1.msra.mxu0 0.0
      %767 = vmatprep.subr.mxu0 0.0
      %768 = vmatpush1.msra.mxu0 0.0
      %769 = vmatprep.subr.mxu0 0.0
      %770 = vmatpush1.msra.mxu0 0.0
      %771 = vmatprep.subr.mxu0 0.0
      %772 = vmatpush1.msra.mxu0 0.0
      %773 = vmatprep.subr.mxu0 0.0
      %774 = vmatpush1.msra.mxu0 0.0
      %775 = vmatprep.subr.mxu0 0.0
      %776 = vmatpush1.msra.mxu0 0.0
      %777 = vmatprep.subr.mxu0 0.0
      %778 = vmatpush1.msra.mxu0 0.0
      %779 = vmatprep.subr.mxu0 0.0
      %780 = vmatpush1.msra.mxu0 0.0
      %781 = vmatprep.subr.mxu0 0.0
      %782 = vmatpush1.msra.mxu0 0.0
      %783 = vmatprep.subr.mxu0 0.0
      %784 = vmatpush1.msra.mxu0 0.0
      %785 = vmatprep.subr.mxu0 0.0
      %786 = vmatpush1.msra.mxu0 0.0
      %787 = vmatprep.subr.mxu0 0.0
      %788 = vmatpush1.msra.mxu0 0.0
      %789 = vmatprep.subr.mxu0 0.0
      %790 = vmatpush1.msra.mxu0 0.0
      %791 = vmatprep.subr.mxu0 0.0
      %792 = vmatpush1.msra.mxu0 0.0
      %793 = vmatprep.subr.mxu0 0.0
      %794 = vmatpush1.msra.mxu0 0.0
      %795 = vmatprep.subr.mxu0 0.0
      %796 = vmatpush1.msra.mxu0 0.0
      %797 = vmatprep.subr.mxu0 0.0
      %798 = vmatpush1.msra.mxu0 0.0
      %799 = vmatprep.subr.mxu0 0.0
      %800 = vmatpush1.msra.mxu0 0.0
      %801 = vmatprep.subr.mxu0 0.0
      %802 = vmatpush1.msra.mxu0 0.0
      %803 = vmatprep.subr.mxu0 0.0
      %804 = vmatpush1.msra.mxu0 0.0
      %805 = vmatprep.subr.mxu0 0.0
      %806 = vmatpush1.msra.mxu0 0.0
      %807 = vmatprep.subr.mxu0 0.0
      %808 = vmatpush1.msra.mxu0 0.0
      %809 = vmatprep.subr.mxu0 0.0
      %810 = vmatpush1.msra.mxu0 0.0
      %811 = vmatprep.subr.mxu0 0.0
      %812 = vmatpush1.msra.mxu0 0.0
      %813 = vmatprep.subr.mxu0 0.0
      %814 = vmatpush1.msra.mxu0 0.0
      %815 = vmatprep.subr.mxu0 0.0
      %816 = vmatpush1.msra.mxu0 0.0
      %817 = vmatprep.subr.mxu0 0.0
      %818 = vmatpush1.msra.mxu0 0.0
      %819 = vmatprep.mubr.f32.mxu0 0.0
      %820 = vmatmul.mubr.f32.gmra.mrb[0].mxu0 %v750
      %v821 = vpop.f32.mrb[0].mxu0
      %v822 = vadd.f32 0.0, %v821
      %v823 = vpop.f32.mrb[0].mxu0
      %824 = vmatprep.mubr.f32.mxu0 0.0
      %825 = vmatmul.mubr.f32.gmra.mrb[0].mxu0 %v753
      %v826 = vpop.f32.mrb[0].mxu0
      %v827 = vadd.f32 0.0, %v826
      %v828 = vpop.f32.mrb[0].mxu0
      %829 = vdwg.mxu0
      %v830 = vld [vmem:[%s5] sm:$0xff]
      %v831 = vld [vmem:[%s5 + $0x8] sm:$0xff]
      %v832 = vld [vmem:[%s5 + $0x10] sm:$0xff]
      %v833 = vld [vmem:[%s5 + $0x18] sm:$0xff]
      %v835 = vsel %vm653, %v822, 0
      %v838 = vsel %vm653, %v827, 0
      %840 = vmatprep.subr.mxu0 0.0
      %841 = vmatpush1.msra.mxu0 %v830
      %842 = vmatprep.subr.mxu0 0.0
      %843 = vmatpush1.msra.mxu0 %v831
      %844 = vmatprep.subr.mxu0 0.0
      %845 = vmatpush1.msra.mxu0 %v832
      %846 = vmatprep.subr.mxu0 0.0
      %847 = vmatpush1.msra.mxu0 %v833
      %848 = vmatprep.subr.mxu0 0.0
      %849 = vmatpush1.msra.mxu0 0.0
      %850 = vmatprep.subr.mxu0 0.0
      %851 = vmatpush1.msra.mxu0 0.0
      %852 = vmatprep.subr.mxu0 0.0
      %853 = vmatpush1.msra.mxu0 0.0
      %854 = vmatprep.subr.mxu0 0.0
      %855 = vmatpush1.msra.mxu0 0.0
      %856 = vmatprep.subr.mxu0 0.0
      %857 = vmatpush1.msra.mxu0 0.0
      %858 = vmatprep.subr.mxu0 0.0
      %859 = vmatpush1.msra.mxu0 0.0
      %860 = vmatprep.subr.mxu0 0.0
      %861 = vmatpush1.msra.mxu0 0.0
      %862 = vmatprep.subr.mxu0 0.0
      %863 = vmatpush1.msra.mxu0 0.0
      %864 = vmatprep.subr.mxu0 0.0
      %865 = vmatpush1.msra.mxu0 0.0
      %866 = vmatprep.subr.mxu0 0.0
      %867 = vmatpush1.msra.mxu0 0.0
      %868 = vmatprep.subr.mxu0 0.0
      %869 = vmatpush1.msra.mxu0 0.0
      %870 = vmatprep.subr.mxu0 0.0
      %871 = vmatpush1.msra.mxu0 0.0
      %872 = vmatprep.subr.mxu0 0.0
      %873 = vmatpush1.msra.mxu0 0.0
      %874 = vmatprep.subr.mxu0 0.0
      %875 = vmatpush1.msra.mxu0 0.0
      %876 = vmatprep.subr.mxu0 0.0
      %877 = vmatpush1.msra.mxu0 0.0
      %878 = vmatprep.subr.mxu0 0.0
      %879 = vmatpush1.msra.mxu0 0.0
      %880 = vmatprep.subr.mxu0 0.0
      %881 = vmatpush1.msra.mxu0 0.0
      %882 = vmatprep.subr.mxu0 0.0
      %883 = vmatpush1.msra.mxu0 0.0
      %884 = vmatprep.subr.mxu0 0.0
      %885 = vmatpush1.msra.mxu0 0.0
      %886 = vmatprep.subr.mxu0 0.0
      %887 = vmatpush1.msra.mxu0 0.0
      %888 = vmatprep.subr.mxu0 0.0
      %889 = vmatpush1.msra.mxu0 0.0
      %890 = vmatprep.subr.mxu0 0.0
      %891 = vmatpush1.msra.mxu0 0.0
      %892 = vmatprep.subr.mxu0 0.0
      %893 = vmatpush1.msra.mxu0 0.0
      %894 = vmatprep.subr.mxu0 0.0
      %895 = vmatpush1.msra.mxu0 0.0
      %896 = vmatprep.subr.mxu0 0.0
      %897 = vmatpush1.msra.mxu0 0.0
      %898 = vmatprep.subr.mxu0 0.0
      %899 = vmatpush1.msra.mxu0 0.0
      %900 = vmatprep.subr.mxu0 0.0
      %901 = vmatpush1.msra.mxu0 0.0
      %902 = vmatprep.subr.mxu0 0.0
      %903 = vmatpush1.msra.mxu0 0.0
      %904 = vmatprep.mubr.f32.mxu0 0.0
      %905 = vmatmul.mubr.f32.gmra.mrb[0].mxu0 %v835
      %v906 = vpop.f32.mrb[0].mxu0
      %v907 = vadd.f32 0.0, %v906
      %v908 = vpop.f32.mrb[0].mxu0
      %909 = vmatprep.mubr.f32.mxu0 0.0
      %910 = vmatmul.mubr.f32.gmra.mrb[0].mxu0 %v838
      %v911 = vpop.f32.mrb[0].mxu0
      %v912 = vadd.f32 0.0, %v911
      %v913 = vpop.f32.mrb[0].mxu0
      %914 = vdwg.mxu0
      %vm915 = vcmask 130048
      %916 = vst.msk [vmem:[%s271] sm:$0xff] %vm915, %v907
      %917 = vst.msk [vmem:[%s271 + $0x8] sm:$0xff] %vm915, %v912
      %p918 = scmp.lt.s32.totalorder %s17, 1
      %s919 = scalar_select %p918, %s17, 1
      %s920 = smul.addr %s919, 2
      %s921 = smul.addr %s920, 8
      %s922 = scalar_lea.vmem %s6, %s921
      // Predicated region
      $region45: #{ppsnet_refinement_forward.9} parent=43 // pred_check
        %p923 = pneg %p171
      $region46: #{ppsnet_refinement_forward.9} parent=43 // pred_check_branch
        %925 = sbr.rel (%p923) target = $region48
      $region47: #{ppsnet_refinement_forward.9} parent=43 // pred_region
        _
      $region48: #{ppsnet_refinement_forward.9} parent=43 // pred_fallthru
        _
    $region44: #{ppsnet_refinement_forward.9} parent=5 // pred_fallthru
      _
    %p926 = scmp.le.s32.totalorder 2, %s12
    // Predicated region
    $region49: #{ppsnet_refinement_forward.9} parent=5 // pred_check
      %p927 = pneg %p926
    $region50: #{ppsnet_refinement_forward.9} parent=5 // pred_check_branch
      %929 = sbr.rel (%p927) target = $region52
    $region51: #{ppsnet_refinement_forward.9} parent=5 // pred_region
      %s930 = ssub.s32 %s12, 2
      // Predicated region
      $region53: #{ppsnet_refinement_forward.9} parent=51 // pred_check
        %p931 = pneg %p177
      $region54: #{ppsnet_refinement_forward.9} parent=51 // pred_check_branch
        %933 = sbr.rel (%p931) target = $region56
      $region55: #{ppsnet_refinement_forward.9} parent=51 // pred_region
        %p934 = scmp.lt.s32.totalorder %s18, 1
        %s935 = scalar_select %p934, %s18, 1
        %s936 = smul.addr %s935, 2
        %s937 = smul.addr %s936, 8
        %s938 = scalar_lea.vmem %s6, %s937
      $region56: #{ppsnet_refinement_forward.9} parent=51 // pred_fallthru
        _
    $region52: #{ppsnet_refinement_forward.9} parent=5 // pred_fallthru
      _
  $region6: #{ppsnet_refinement_forward.9} parent=0 // loop_footer
    %s16 = sadd.s32 1, %s12
  $region7: #{ppsnet_refinement_forward.9} parent=0 // loop_footer_branch
    %11 = sbr.rel target = $region3
  $region8: #{ppsnet_refinement_forward.9} parent=0 // loop_exit
    _

// kernel: ppsnet_refinement_forward.10
$region0: #{ppsnet_refinement_forward.10}
  #allocation0 [shape = 'u32[]', space=smem, size = 0x4, offset = 0x4, fixed_abs, tag = 'smem constant byte address 0x4 - core index']
  #allocation1 [shape = 'u32[144,128]{1,0:T(1,128)}', space=vmem, size = 0x12000, scoped, tag = 'internal scratch']
  #allocation2 [shape = 'f32[1]{0:T(128)S(6)}', space=smem, size = 0x200, scoped, tag = 'scoped memory for ppsnet_refinement_forward.10']
  #allocation3 [shape = 'f32[1]{0:T(128)S(6)}', space=smem, size = 0x200, scoped, tag = 'scoped memory for ppsnet_refinement_forward.10']
  %s0 = inlined_call_operand.vmem [shape: f32[2,1,20,20], index: 0, kind: input, shape index: {}]
  %s1 = inlined_call_operand.vmem [shape: f32[9], index: 1, kind: input, shape index: {}]
  %s2 = inlined_call_operand.<no memory space> [shape: f32[1], index: 2, kind: input, shape index: {}]
  %s3 = inlined_call_operand.vmem [shape: f32[9], index: 3, kind: input, shape index: {}]
  %s4 = inlined_call_operand.<no memory space> [shape: f32[1], index: 4, kind: input, shape index: {}]
  %s5 = inlined_call_operand.vmem [shape: f32[2,1,16,16], index: 5, kind: output, shape index: {}]
  %s6 = sld [smem:[#allocation0]]
  $region61: #{ppsnet_refinement_forward.10} parent=0
    _
  %s8 = ssub.s32 1, %s6
  %s9 = scalar_select 0, %s8, %s6
  %10 = sst [smem:[#allocation2]] %s2
  %11 = sst [smem:[#allocation3]] %s4
  $region1: #{ppsnet_refinement_forward.10} parent=0
    #allocation4 [shape = 'u8[512]{0}', space=smem, size = 0x200, scoped, tag = 'input window, operand 1, single buffered']
    #allocation5 [shape = 's32[2]{0}', space=sflag, size = 0x8, scoped, tag = 'scoped memory for ppsnet_refinement_forward.10']
    #allocation6 [shape = 'u8[512]{0}', space=smem, size = 0x200, scoped, tag = 'input window, operand 3, single buffered']
    #allocation7 [shape = 's32[1]{0}', space=sflag, size = 0x4, scoped, tag = 'scoped memory for ppsnet_refinement_forward.10']
    %12 = vsyncpa [#allocation5], 0
    %13 = vsyncpa [#allocation7], 0
    loop: start=0, step=1, limit=4
    $region2: #{ppsnet_refinement_forward.10} parent=1 // loop_pre_header
      _
    $region3: #{ppsnet_refinement_forward.10} parent=1 // loop_header
      %s15 = sphi 0, %s19
      %p16 = scmp.ge.s32.totalorder %s15, 4
      %s25 = sphi 0, %s27
      %s28 = sphi 0, %s25
      %s29 = sphi 0, %s28
      %s45 = sphi 0, %s29
      %s49 = sphi 0, %s49
      %s51 = sphi 0, %s49
      %s52 = sphi 0, %s51
      %s66 = sphi 0, %s52
      %s70 = sphi 0, %s70
      %s72 = sphi 0, %s70
      %s73 = sphi 0, %s72
      %s87 = sphi 0, %s73
      %s91 = sphi 0, %s91
      %s93 = sphi 0, %s91
      %s94 = sphi 0, %s93
      %s108 = sphi 0, %s94
      %s112 = sphi 0, %s112
      %s114 = sphi 0, %s112
      %s115 = sphi 0, %s114
      %s129 = sphi 0, %s115
      %s135 = sphi 0, %s137
      %s138 = sphi 0, %s135
      %s139 = sphi 0, %s138
      %s155 = sphi 0, %s139
    $region4: #{ppsnet_refinement_forward.10} parent=1 // loop_header_branch
      %18 = sbr.rel (%p16) target = $region8
    $region5: #{ppsnet_refinement_forward.10} parent=1 // loop_body
      %s20 = ssub.s32 %s15, 1
      %s21 = ssub.s32 %s15, 2
      %s22 = sadd.s32 %s15, 1
      %s23 = ssub.s32 %s15, %s22
      %p24 = scmp.eq.s32.totalorder %s23, 0
      %s26 = sadd.s32 %s25, 1
      %s27 = scalar_select %p24, %s25, %s26
      %p30 = pneg %p24
      %p31 = scmp.eq.s32.totalorder %s15, 1
      %p32 = por %p30, %p31
      %p33 = scmp.ne.s32.totalorder %s25, %s28
      %p34 = scmp.eq.s32.totalorder %s15, 0
      %p35 = por %p33, %p34
      %p36 = scmp.ne.s32.totalorder %s25, %s28
      %p37 = scmp.eq.s32.totalorder %s20, 1
      %p38 = por %p36, %p37
      %p39 = scmp.ne.s32.totalorder %s28, %s29
      %p40 = scmp.eq.s32.totalorder %s20, 0
      %p41 = por %p39, %p40
      %p42 = scmp.ne.s32.totalorder %s28, %s29
      %p43 = scmp.eq.s32.totalorder %s21, 1
      %p44 = por %p42, %p43
      %p46 = scmp.ne.s32.totalorder %s29, %s45
      %p47 = scmp.eq.s32.totalorder %s21, 0
      %p48 = por %p46, %p47
      %s50 = sadd.s32 %s49, 1
      %p53 = scmp.eq.s32.totalorder %s15, 1
      %p54 = scmp.ne.s32.totalorder %s49, %s51
      %p55 = scmp.eq.s32.totalorder %s15, 0
      %p56 = por %p54, %p55
      %p57 = scmp.ne.s32.totalorder %s49, %s51
      %p58 = scmp.eq.s32.totalorder %s20, 1
      %p59 = por %p57, %p58
      %p60 = scmp.ne.s32.totalorder %s51, %s52
      %p61 = scmp.eq.s32.totalorder %s20, 0
      %p62 = por %p60, %p61
      %p63 = scmp.ne.s32.totalorder %s51, %s52
      %p64 = scmp.eq.s32.totalorder %s21, 1
      %p65 = por %p63, %p64
      %p67 = scmp.ne.s32.totalorder %s52, %s66
      %p68 = scmp.eq.s32.totalorder %s21, 0
      %p69 = por %p67, %p68
      %s71 = sadd.s32 %s70, 1
      %p74 = scmp.eq.s32.totalorder %s15, 1
      %p75 = scmp.ne.s32.totalorder %s70, %s72
      %p76 = scmp.eq.s32.totalorder %s15, 0
      %p77 = por %p75, %p76
      %p78 = scmp.ne.s32.totalorder %s70, %s72
      %p79 = scmp.eq.s32.totalorder %s20, 1
      %p80 = por %p78, %p79
      %p81 = scmp.ne.s32.totalorder %s72, %s73
      %p82 = scmp.eq.s32.totalorder %s20, 0
      %p83 = por %p81, %p82
      %p84 = scmp.ne.s32.totalorder %s72, %s73
      %p85 = scmp.eq.s32.totalorder %s21, 1
      %p86 = por %p84, %p85
      %p88 = scmp.ne.s32.totalorder %s73, %s87
      %p89 = scmp.eq.s32.totalorder %s21, 0
      %p90 = por %p88, %p89
      %s92 = sadd.s32 %s91, 1
      %p95 = scmp.eq.s32.totalorder %s15, 1
      %p96 = scmp.ne.s32.totalorder %s91, %s93
      %p97 = scmp.eq.s32.totalorder %s15, 0
      %p98 = por %p96, %p97
      %p99 = scmp.ne.s32.totalorder %s91, %s93
      %p100 = scmp.eq.s32.totalorder %s20, 1
      %p101 = por %p99, %p100
      %p102 = scmp.ne.s32.totalorder %s93, %s94
      %p103 = scmp.eq.s32.totalorder %s20, 0
      %p104 = por %p102, %p103
      %p105 = scmp.ne.s32.totalorder %s93, %s94
      %p106 = scmp.eq.s32.totalorder %s21, 1
      %p107 = por %p105, %p106
      %p109 = scmp.ne.s32.totalorder %s94, %s108
      %p110 = scmp.eq.s32.totalorder %s21, 0
      %p111 = por %p109, %p110
      %s113 = sadd.s32 %s112, 1
      %p116 = scmp.eq.s32.totalorder %s15, 1
      %p117 = scmp.ne.s32.totalorder %s112, %s114
      %p118 = scmp.eq.s32.totalorder %s15, 0
      %p119 = por %p117, %p118
      %p120 = scmp.ne.s32.totalorder %s112, %s114
      %p121 = scmp.eq.s32.totalorder %s20, 1
      %p122 = por %p120, %p121
      %p123 = scmp.ne.s32.totalorder %s114, %s115
      %p124 = scmp.eq.s32.totalorder %s20, 0
      %p125 = por %p123, %p124
      %p126 = scmp.ne.s32.totalorder %s114, %s115
      %p127 = scmp.eq.s32.totalorder %s21, 1
      %p128 = por %p126, %p127
      %p130 = scmp.ne.s32.totalorder %s115, %s129
      %p131 = scmp.eq.s32.totalorder %s21, 0
      %p132 = por %p130, %p131
      %s133 = ssub.s32 %s15, %s22
      %p134 = scmp.eq.s32.totalorder %s133, 0
      %s136 = sadd.s32 %s135, 1
      %s137 = scalar_select %p134, %s135, %s136
      %p140 = pneg %p134
      %p141 = scmp.eq.s32.totalorder %s15, 1
      %p142 = por %p140, %p141
      %p143 = scmp.ne.s32.totalorder %s135, %s138
      %p144 = scmp.eq.s32.totalorder %s15, 0
      %p145 = por %p143, %p144
      %p146 = scmp.ne.s32.totalorder %s135, %s138
      %p147 = scmp.eq.s32.totalorder %s20, 1
      %p148 = por %p146, %p147
      %p149 = scmp.ne.s32.totalorder %s138, %s139
      %p150 = scmp.eq.s32.totalorder %s20, 0
      %p151 = por %p149, %p150
      %p152 = scmp.ne.s32.totalorder %s138, %s139
      %p153 = scmp.eq.s32.totalorder %s21, 1
      %p154 = por %p152, %p153
      %p156 = scmp.ne.s32.totalorder %s139, %s155
      %p157 = scmp.eq.s32.totalorder %s21, 0
      %p158 = por %p156, %p157
      %p159 = scmp.le.s32.totalorder 1, %s15
      %p160 = scmp.lt.s32.totalorder %s15, 3
      %p161 = pnand %p159, %p160
      %p162 = pneg %p161
      // Predicated region
      $region9: #{ppsnet_refinement_forward.10} parent=5 // pred_check
        _
      $region10: #{ppsnet_refinement_forward.10} parent=5 // pred_check_branch
        %164 = sbr.rel (%p161) target = $region12
      $region11: #{ppsnet_refinement_forward.10} parent=5 // pred_region
        %s165 = ssub.s32 %s15, 1
        // Predicated region
        $region13: #{ppsnet_refinement_forward.10} parent=11 // pred_check
          %p166 = pneg %p62
        $region14: #{ppsnet_refinement_forward.10} parent=11 // pred_check_branch
          %168 = sbr.rel (%p166) target = $region16
        $region15: #{ppsnet_refinement_forward.10} parent=11 // pred_region
          %s170 = ssub.s32 16, 16
          %171 = vsyncadd [#allocation5], %s170
          %s173 = sshll.u32 %s1, 4
          %s174 = int_to_ptr.vmem [resolvable:$true] %s173
          %176 = dma.vmem_to_smem %s174, 16, [#allocation4], [#allocation5]
        $region16: #{ppsnet_refinement_forward.10} parent=11 // pred_fallthru
          _
        // Predicated region
        $region17: #{ppsnet_refinement_forward.10} parent=11 // pred_check
          %p177 = pneg %p83
        $region18: #{ppsnet_refinement_forward.10} parent=11 // pred_check_branch
          %179 = sbr.rel (%p177) target = $region20
        $region19: #{ppsnet_refinement_forward.10} parent=11 // pred_region
          _
        $region20: #{ppsnet_refinement_forward.10} parent=11 // pred_fallthru
          _
        // Predicated region
        $region21: #{ppsnet_refinement_forward.10} parent=11 // pred_check
          %p180 = pneg %p104
        $region22: #{ppsnet_refinement_forward.10} parent=11 // pred_check_branch
          %182 = sbr.rel (%p180) target = $region24
        $region23: #{ppsnet_refinement_forward.10} parent=11 // pred_region
          %s184 = ssub.s32 16, 16
          %185 = vsyncadd [#allocation7], %s184
          %s187 = sshll.u32 %s3, 4
          %s188 = int_to_ptr.vmem [resolvable:$true] %s187
          %190 = dma.vmem_to_smem %s188, 16, [#allocation6], [#allocation7]
        $region24: #{ppsnet_refinement_forward.10} parent=11 // pred_fallthru
          _
        // Predicated region
        $region25: #{ppsnet_refinement_forward.10} parent=11 // pred_check
          %p191 = pneg %p125
        $region26: #{ppsnet_refinement_forward.10} parent=11 // pred_check_branch
          %193 = sbr.rel (%p191) target = $region28
        $region27: #{ppsnet_refinement_forward.10} parent=11 // pred_region
          _
        $region28: #{ppsnet_refinement_forward.10} parent=11 // pred_fallthru
          _
      $region12: #{ppsnet_refinement_forward.10} parent=5 // pred_fallthru
        _
      %p194 = scmp.lt.s32.totalorder %s15, 2
      // Predicated region
      $region29: #{ppsnet_refinement_forward.10} parent=5 // pred_check
        %p195 = pneg %p194
      $region30: #{ppsnet_refinement_forward.10} parent=5 // pred_check_branch
        %197 = sbr.rel (%p195) target = $region32
      $region31: #{ppsnet_refinement_forward.10} parent=5 // pred_region
        // Predicated region
        $region33: #{ppsnet_refinement_forward.10} parent=31 // pred_check
          %p198 = pneg %p35
        $region34: #{ppsnet_refinement_forward.10} parent=31 // pred_check_branch
          %200 = sbr.rel (%p198) target = $region36
        $region35: #{ppsnet_refinement_forward.10} parent=31 // pred_region
          %p201 = scmp.lt.s32.totalorder %s15, 1
          %s202 = scalar_select %p201, %s15, 1
          %s203 = smul.addr %s202, 3
          %s204 = smul.addr %s203, 8
          %s205 = scalar_lea.vmem %s0, %s204
        $region36: #{ppsnet_refinement_forward.10} parent=31 // pred_fallthru
          _
      $region32: #{ppsnet_refinement_forward.10} parent=5 // pred_fallthru
        _
      %p206 = scmp.le.s32.totalorder 1, %s15
      %p207 = scmp.lt.s32.totalorder %s15, 3
      %p208 = pnand %p206, %p207
      %p209 = pneg %p208
      // Predicated region
      $region37: #{ppsnet_refinement_forward.10} parent=5 // pred_check
        _
      $region38: #{ppsnet_refinement_forward.10} parent=5 // pred_check_branch
        %211 = sbr.rel (%p208) target = $region40
      $region39: #{ppsnet_refinement_forward.10} parent=5 // pred_region
        %s212 = ssub.s32 %s15, 1
        // Predicated region
        $region41: #{ppsnet_refinement_forward.10} parent=39 // pred_check
          %p213 = pneg %p62
        $region42: #{ppsnet_refinement_forward.10} parent=39 // pred_check_branch
          %215 = sbr.rel (%p213) target = $region44
        $region43: #{ppsnet_refinement_forward.10} parent=39 // pred_region
          %216 = dma.done [#allocation5], 16
        $region44: #{ppsnet_refinement_forward.10} parent=39 // pred_fallthru
          _
        // Predicated region
        $region45: #{ppsnet_refinement_forward.10} parent=39 // pred_check
          %p217 = pneg %p104
        $region46: #{ppsnet_refinement_forward.10} parent=39 // pred_check_branch
          %219 = sbr.rel (%p217) target = $region48
        $region47: #{ppsnet_refinement_forward.10} parent=39 // pred_region
          %220 = dma.done [#allocation7], 16
        $region48: #{ppsnet_refinement_forward.10} parent=39 // pred_fallthru
          _
        %221 = sfence
        %p222 = scmp.lt.s32.totalorder %s20, 1
        %s223 = scalar_select %p222, %s20, 1
        %s224 = smul.addr %s223, 3
        %s225 = smul.addr %s224, 8
        %s226 = scalar_lea.vmem %s0, %s225
        %p227 = pneg %p41
        %p228 = pneg %p38
        %p229 = pneg %p62
        %p230 = pneg %p59
        %p231 = pneg %p83
        %p232 = pneg %p80
        %p233 = pneg %p104
        %p234 = pneg %p101
        %p235 = pneg %p125
        %p236 = pneg %p122
        %p237 = pneg %p151
        %p238 = pneg %p148
        %p239 = scmp.lt.s32.totalorder %s20, 1
        %s240 = scalar_select %p239, %s20, 1
        %s241 = smul.addr %s240, 2
        %s242 = smul.addr %s241, 8
        %s243 = scalar_lea.vmem %s5, %s242
        %p244 = scmp.lt.s32.totalorder %s20, 1
        %s245 = scalar_select %p244, %s20, 1
        %s246 = smul.addr %s245, 3
        %s247 = smul.addr %s246, 8
        %s248 = scalar_lea.vmem %s0, %s247
        %p249 = scmp.lt.s32.totalorder %s20, 1
        %s250 = scalar_select %p249, %s20, 1
        %s251 = smul.addr %s250, 2
        %s252 = smul.addr %s251, 8
        %s253 = scalar_lea.vmem %s5, %s252
        %v254 = vld [vmem:[%s248] sm:$0xff]
        %v255 = vld [vmem:[%s248 + $0x8] sm:$0xff]
        %v256 = vld [vmem:[%s248 + $0x10] sm:$0xf]
        %s257 = sld [smem:[#allocation2]]
        %v258 = vstv %s257
        %s259 = sld [smem:[#allocation4]]
        %v260 = vstv %s259
        %v261 = vmul.f32 %v260, %v254
        %v262 = vmul.f32 %v260, %v255
        %v263 = vmul.f32 %v260, %v256
        %v264 = vadd.f32 %v258, %v261
        %v265 = vadd.f32 %v258, %v262
        %v266 = vadd.f32 %v258, %v263
        %s267 = sld [smem:[#allocation4 + $0x1]]
        %v268 = vstv %s267
        %v269 = vmul.f32 %v268, %v254
        %v270 = vmul.f32 %v268, %v255
        %v271 = vmul.f32 %v268, %v256
        %275 = vrot.lane.b32.xlu0 %v269, 127
        %v276 = vpop.permute.xlu0 %275
        %277 = vrot.lane.b32.xlu0 %v270, 127
        %v278 = vpop.permute.xlu0 %277
        %279 = vrot.lane.b32.xlu0 %v271, 127
        %v280 = vpop.permute.xlu0 %279
        %v284 = vadd.f32 %v264, %v276
        %v285 = vadd.f32 %v265, %v278
        %v286 = vadd.f32 %v266, %v280
        %s287 = sld [smem:[#allocation4 + $0x2]]
        %v288 = vstv %s287
        %v289 = vmul.f32 %v288, %v254
        %v290 = vmul.f32 %v288, %v255
        %v291 = vmul.f32 %v288, %v256
        %295 = vrot.lane.b32.xlu0 %v289, 126
        %v296 = vpop.permute.xlu0 %295
        %297 = vrot.lane.b32.xlu0 %v290, 126
        %v298 = vpop.permute.xlu0 %297
        %299 = vrot.lane.b32.xlu0 %v291, 126
        %v300 = vpop.permute.xlu0 %299
        %v304 = vadd.f32 %v284, %v296
        %v305 = vadd.f32 %v285, %v298
        %v306 = vadd.f32 %v286, %v300
        %s307 = sld [smem:[#allocation4 + $0x3]]
        %v308 = vstv %s307
        %v309 = vmul.f32 %v308, %v254
        %v310 = vmul.f32 %v308, %v255
        %v311 = vmul.f32 %v308, %v256
        %vm315 = vcmask 1046528
        %v316 = vrot.slane %v309, 1
        %v317 = vrot.slane %v310, 1
        %v318 = vsel %vm315, %v316, %v317
        %v319 = vrot.slane %v311, 1
        %v320 = vsel %vm315, %v317, %v319
        %v324 = vadd.f32 %v304, %v318
        %v325 = vadd.f32 %v305, %v320
        %v326 = vadd.f32 %v306, %v319
        %s327 = sld [smem:[#allocation4 + $0x4]]
        %v328 = vstv %s327
        %v329 = vmul.f32 %v328, %v254
        %v330 = vmul.f32 %v328, %v255
        %v331 = vmul.f32 %v328, %v256
        %v335 = vrot.slane %v329, 1
        %v336 = vrot.slane %v330, 1
        %v337 = vsel %vm315, %v335, %v336
        %v338 = vrot.slane %v331, 1
        %v339 = vsel %vm315, %v336, %v338
        %340 = vrot.lane.b32.xlu0 %v337, 127
        %v341 = vpop.permute.xlu0 %340
        %342 = vrot.lane.b32.xlu0 %v339, 127
        %v343 = vpop.permute.xlu0 %342
        %344 = vrot.lane.b32.xlu0 %v338, 127
        %v345 = vpop.permute.xlu0 %344
        %v349 = vadd.f32 %v324, %v341
        %v350 = vadd.f32 %v325, %v343
        %v351 = vadd.f32 %v326, %v345
        %s352 = sld [smem:[#allocation4 + $0x5]]
        %v353 = vstv %s352
        %v354 = vmul.f32 %v353, %v254
        %v355 = vmul.f32 %v353, %v255
        %v356 = vmul.f32 %v353, %v256
        %v360 = vrot.slane %v354, 1
        %v361 = vrot.slane %v355, 1
        %v362 = vsel %vm315, %v360, %v361
        %v363 = vrot.slane %v356, 1
        %v364 = vsel %vm315, %v361, %v363
        %365 = vrot.lane.b32.xlu0 %v362, 126
        %v366 = vpop.permute.xlu0 %365
        %367 = vrot.lane.b32.xlu0 %v364, 126
        %v368 = vpop.permute.xlu0 %367
        %369 = vrot.lane.b32.xlu0 %v363, 126
        %v370 = vpop.permute.xlu0 %369
        %v374 = vadd.f32 %v349, %v366
        %v375 = vadd.f32 %v350, %v368
        %v376 = vadd.f32 %v351, %v370
        %s377 = sld [smem:[#allocation4 + $0x6]]
        %v378 = vstv %s377
        %v379 = vmul.f32 %v378, %v254
        %v380 = vmul.f32 %v378, %v255
        %v381 = vmul.f32 %v378, %v256
        %vm385 = vcmask 1045504
        %v386 = vrot.slane %v379, 2
        %v387 = vrot.slane %v380, 2
        %v388 = vsel %vm385, %v386, %v387
        %v389 = vrot.slane %v381, 2
        %v390 = vsel %vm385, %v387, %v389
        %v394 = vadd.f32 %v374, %v388
        %v395 = vadd.f32 %v375, %v390
        %v396 = vadd.f32 %v376, %v389
        %s397 = sld [smem:[#allocation4 + $0x7]]
        %v398 = vstv %s397
        %v399 = vmul.f32 %v398, %v254
        %v400 = vmul.f32 %v398, %v255
        %v401 = vmul.f32 %v398, %v256
        %v405 = vrot.slane %v399, 2
        %v406 = vrot.slane %v400, 2
        %v407 = vsel %vm385, %v405, %v406
        %v408 = vrot.slane %v401, 2
        %v409 = vsel %vm385, %v406, %v408
        %410 = vrot.lane.b32.xlu0 %v407, 127
        %v411 = vpop.permute.xlu0 %410
        %412 = vrot.lane.b32.xlu0 %v409, 127
        %v413 = vpop.permute.xlu0 %412
        %414 = vrot.lane.b32.xlu0 %v408, 127
        %v415 = vpop.permute.xlu0 %414
        %v419 = vadd.f32 %v394, %v411
        %v420 = vadd.f32 %v395, %v413
        %v421 = vadd.f32 %v396, %v415
        %s422 = sld [smem:[#allocation4 + $0x8]]
        %v423 = vstv %s422
        %v424 = vmul.f32 %v423, %v254
        %v425 = vmul.f32 %v423, %v255
        %v426 = vmul.f32 %v423, %v256
        %v430 = vrot.slane %v424, 2
        %v431 = vrot.slane %v425, 2
        %v432 = vsel %vm385, %v430, %v431
        %v433 = vrot.slane %v426, 2
        %v434 = vsel %vm385, %v431, %v433
        %435 = vrot.lane.b32.xlu0 %v432, 126
        %v436 = vpop.permute.xlu0 %435
        %437 = vrot.lane.b32.xlu0 %v434, 126
        %v438 = vpop.permute.xlu0 %437
        %439 = vrot.lane.b32.xlu0 %v433, 126
        %v440 = vpop.permute.xlu0 %439
        %v444 = vadd.f32 %v419, %v436
        %v445 = vadd.f32 %v420, %v438
        %v446 = vadd.f32 %v421, %v440
        %v447 = vmax.f32 %v444, 0.0
        %v448 = vmax.f32 %v445, 0.0
        %v449 = vmax.f32 %v446, 0.0
        %v450 = vlaneseq
        %v451 = vshrl.u32 %v450, 7
        %v452 = vadd.s32 %v451, 8
        %v453 = vadd.s32 %v451, 16
        %v454 = vlaneseq
        %v455 = vand.u32 %v454, 127
        %vm456 = vcmp.ge.s32.totalorder %v451, 1
        %vm457 = vcmp.ge.s32.totalorder %v452, 1
        %vm458 = vcmp.ge.s32.totalorder %v453, 1
        %vm459 = vcmp.le.s32.totalorder %v451, 16
        %vm460 = vcmp.le.s32.totalorder %v452, 16
        %vm461 = vcmp.le.s32.totalorder %v453, 16
        %vm462 = vmand %vm456, %vm459
        %vm463 = vmand %vm457, %vm460
        %vm464 = vmand %vm458, %vm461
        %vm465 = vcmp.ge.s32.totalorder %v455, 1
        %vm466 = vmand %vm462, %vm465
        %vm467 = vmand %vm463, %vm465
        %vm468 = vmand %vm464, %vm465
        %vm469 = vcmp.le.s32.totalorder %v455, 16
        %vm470 = vmand %vm466, %vm469
        %vm471 = vmand %vm467, %vm469
        %vm472 = vmand %vm468, %vm469
        %v473 = vsel %vm470, %v447, 0.0
        %v474 = vsel %vm471, %v448, 0.0
        %v475 = vsel %vm472, %v449, 0.0
        %s476 = sld [smem:[#allocation3]]
        %v477 = vstv %s476
        %s478 = sld [smem:[#allocation6]]
        %v479 = vstv %s478
        %v480 = vmul.f32 %v479, %v473
        %v481 = vmul.f32 %v479, %v474
        %v482 = vadd.f32 %v477, %v480
        %v483 = vadd.f32 %v477, %v481
        %s484 = sld [smem:[#allocation6 + $0x1]]
        %v485 = vstv %s484
        %v486 = vmul.f32 %v485, %v473
        %v487 = vmul.f32 %v485, %v474
        %490 = vrot.lane.b32.xlu0 %v486, 127
        %v491 = vpop.permute.xlu0 %490
        %492 = vrot.lane.b32.xlu0 %v487, 127
        %v493 = vpop.permute.xlu0 %492
        %v496 = vadd.f32 %v482, %v491
        %v497 = vadd.f32 %v483, %v493
        %s498 = sld [smem:[#allocation6 + $0x2]]
        %v499 = vstv %s498
        %v500 = vmul.f32 %v499, %v473
        %v501 = vmul.f32 %v499, %v474
        %504 = vrot.lane.b32.xlu0 %v500, 126
        %v505 = vpop.permute.xlu0 %504
        %506 = vrot.lane.b32.xlu0 %v501, 126
        %v507 = vpop.permute.xlu0 %506
        %v510 = vadd.f32 %v496, %v505
        %v511 = vadd.f32 %v497, %v507
        %s512 = sld [smem:[#allocation6 + $0x3]]
        %v513 = vstv %s512
        %v514 = vmul.f32 %v513, %v473
        %v515 = vmul.f32 %v513, %v474
        %v516 = vmul.f32 %v513, %v475
        %v520 = vrot.slane %v514, 1
        %v521 = vrot.slane %v515, 1
        %v522 = vsel %vm315, %v520, %v521
        %v523 = vrot.slane %v516, 1
        %v524 = vsel %vm315, %v521, %v523
        %v527 = vadd.f32 %v510, %v522
        %v528 = vadd.f32 %v511, %v524
        %s529 = sld [smem:[#allocation6 + $0x4]]
        %v530 = vstv %s529
        %v531 = vmul.f32 %v530, %v473
        %v532 = vmul.f32 %v530, %v474
        %v533 = vmul.f32 %v530, %v475
        %v537 = vrot.slane %v531, 1
        %v538 = vrot.slane %v532, 1
        %v539 = vsel %vm315, %v537, %v538
        %v540 = vrot.slane %v533, 1
        %v541 = vsel %vm315, %v538, %v540
        %542 = vrot.lane.b32.xlu0 %v539, 127
        %v543 = vpop.permute.xlu0 %542
        %544 = vrot.lane.b32.xlu0 %v541, 127
        %v545 = vpop.permute.xlu0 %544
        %v548 = vadd.f32 %v527, %v543
        %v549 = vadd.f32 %v528, %v545
        %s550 = sld [smem:[#allocation6 + $0x5]]
        %v551 = vstv %s550
        %v552 = vmul.f32 %v551, %v473
        %v553 = vmul.f32 %v551, %v474
        %v554 = vmul.f32 %v551, %v475
        %v558 = vrot.slane %v552, 1
        %v559 = vrot.slane %v553, 1
        %v560 = vsel %vm315, %v558, %v559
        %v561 = vrot.slane %v554, 1
        %v562 = vsel %vm315, %v559, %v561
        %563 = vrot.lane.b32.xlu0 %v560, 126
        %v564 = vpop.permute.xlu0 %563
        %565 = vrot.lane.b32.xlu0 %v562, 126
        %v566 = vpop.permute.xlu0 %565
        %v569 = vadd.f32 %v548, %v564
        %v570 = vadd.f32 %v549, %v566
        %s571 = sld [smem:[#allocation6 + $0x6]]
        %v572 = vstv %s571
        %v573 = vmul.f32 %v572, %v473
        %v574 = vmul.f32 %v572, %v474
        %v575 = vmul.f32 %v572, %v475
        %v579 = vrot.slane %v573, 2
        %v580 = vrot.slane %v574, 2
        %v581 = vsel %vm385, %v579, %v580
        %v582 = vrot.slane %v575, 2
        %v583 = vsel %vm385, %v580, %v582
        %v586 = vadd.f32 %v569, %v581
        %v587 = vadd.f32 %v570, %v583
        %s588 = sld [smem:[#allocation6 + $0x7]]
        %v589 = vstv %s588
        %v590 = vmul.f32 %v589, %v473
        %v591 = vmul.f32 %v589, %v474
        %v592 = vmul.f32 %v589, %v475
        %v596 = vrot.slane %v590, 2
        %v597 = vrot.slane %v591, 2
        %v598 = vsel %vm385, %v596, %v597
        %v599 = vrot.slane %v592, 2
        %v600 = vsel %vm385, %v597, %v599
        %601 = vrot.lane.b32.xlu0 %v598, 127
        %v602 = vpop.permute.xlu0 %601
        %603 = vrot.lane.b32.xlu0 %v600, 127
        %v604 = vpop.permute.xlu0 %603
        %v607 = vadd.f32 %v586, %v602
        %v608 = vadd.f32 %v587, %v604
        %s609 = sld [smem:[#allocation6 + $0x8]]
        %v610 = vstv %s609
        %v611 = vmul.f32 %v610, %v473
        %v612 = vmul.f32 %v610, %v474
        %v613 = vmul.f32 %v610, %v475
        %v617 = vrot.slane %v611, 2
        %v618 = vrot.slane %v612, 2
        %v619 = vsel %vm385, %v617, %v618
        %v620 = vrot.slane %v613, 2
        %v621 = vsel %vm385, %v618, %v620
        %622 = vrot.lane.b32.xlu0 %v619, 126
        %v623 = vpop.permute.xlu0 %622
        %624 = vrot.lane.b32.xlu0 %v621, 126
        %v625 = vpop.permute.xlu0 %624
        %v628 = vadd.f32 %v607, %v623
        %v629 = vadd.f32 %v608, %v625
        %vm630 = vcmask 130048
        %631 = vst.msk [vmem:[%s253] sm:$0xff] %vm630, %v628
        %632 = vst.msk [vmem:[%s253 + $0x8] sm:$0xff] %vm630, %v629
        %p633 = scmp.lt.s32.totalorder %s20, 1
        %s634 = scalar_select %p633, %s20, 1
        %s635 = smul.addr %s634, 2
        %s636 = smul.addr %s635, 8
        %s637 = scalar_lea.vmem %s5, %s636
        // Predicated region
        $region49: #{ppsnet_refinement_forward.10} parent=39 // pred_check
          %p638 = pneg %p148
        $region50: #{ppsnet_refinement_forward.10} parent=39 // pred_check_branch
          %640 = sbr.rel (%p638) target = $region52
        $region51: #{ppsnet_refinement_forward.10} parent=39 // pred_region
          _
        $region52: #{ppsnet_refinement_forward.10} parent=39 // pred_fallthru
          _
      $region40: #{ppsnet_refinement_forward.10} parent=5 // pred_fallthru
        _
      %p641 = scmp.le.s32.totalorder 2, %s15
      // Predicated region
      $region53: #{ppsnet_refinement_forward.10} parent=5 // pred_check
        %p642 = pneg %p641
      $region54: #{ppsnet_refinement_forward.10} parent=5 // pred_check_branch
        %644 = sbr.rel (%p642) target = $region56
      $region55: #{ppsnet_refinement_forward.10} parent=5 // pred_region
        %s645 = ssub.s32 %s15, 2
        // Predicated region
        $region57: #{ppsnet_refinement_forward.10} parent=55 // pred_check
          %p646 = pneg %p154
        $region58: #{ppsnet_refinement_forward.10} parent=55 // pred_check_branch
          %648 = sbr.rel (%p646) target = $region60
        $region59: #{ppsnet_refinement_forward.10} parent=55 // pred_region
          %p649 = scmp.lt.s32.totalorder %s21, 1
          %s650 = scalar_select %p649, %s21, 1
          %s651 = smul.addr %s650, 2
          %s652 = smul.addr %s651, 8
          %s653 = scalar_lea.vmem %s5, %s652
        $region60: #{ppsnet_refinement_forward.10} parent=55 // pred_fallthru
          _
      $region56: #{ppsnet_refinement_forward.10} parent=5 // pred_fallthru
        _
    $region6: #{ppsnet_refinement_forward.10} parent=1 // loop_footer
      %s19 = sadd.s32 1, %s15
    $region7: #{ppsnet_refinement_forward.10} parent=1 // loop_footer_branch
      %14 = sbr.rel target = $region3
    $region8: #{ppsnet_refinement_forward.10} parent=1 // loop_exit
      _
    %654 = vsyncpa [#allocation5], 1
    %s655 = scalar_lea.sflag [#allocation5], 1
    %656 = vsyncpa %s655, 1
    %657 = vsyncpa [#allocation7], 1

// kernel: ppsnet_refinement_forward.11
$region0: #{ppsnet_refinement_forward.11}
  #allocation0 [shape = 'u32[]', space=smem, size = 0x4, offset = 0x4, fixed_abs, tag = 'smem constant byte address 0x4 - core index']
  #allocation1 [shape = 'u32[144,128]{1,0:T(1,128)}', space=vmem, size = 0x12000, scoped, tag = 'internal scratch']
  %s0 = inlined_call_operand.vmem [shape: f32[2,1,16,16], index: 0, kind: input, shape index: {}]
  %s1 = inlined_call_operand.vmem [shape: f32[32,16], index: 1, kind: input, shape index: {}]
  %s2 = inlined_call_operand.vmem [shape: f32[16,32], index: 2, kind: input, shape index: {}]
  %s3 = inlined_call_operand.vmem [shape: f32[2,1,32,32], index: 3, kind: input, shape index: {}]
  %s4 = inlined_call_operand.hbm [shape: f32[2,32,32], index: 4, kind: output, shape index: {}]
  %s5 = sld [smem:[#allocation0]]
  $region49: #{ppsnet_refinement_forward.11} parent=0
    _
  %s7 = ssub.s32 1, %s5
  %s8 = scalar_select 0, %s7, %s5
  $region1: #{ppsnet_refinement_forward.11} parent=0
    #allocation2 [shape = 'u8[32768]{0}', space=vmem, size = 0x8000, scoped, tag = 'output window, operand 0']
    #allocation3 [shape = 's32[2]{0}', space=sflag, size = 0x8, scoped, tag = 'scoped memory for ppsnet_refinement_forward.11']
    %9 = vsyncpa [#allocation3], 0
    %s10 = scalar_lea.sflag [#allocation3], 1
    %11 = vsyncpa %s10, 0
    loop: start=0, step=1, limit=4
    $region2: #{ppsnet_refinement_forward.11} parent=1 // loop_pre_header
      _
    $region3: #{ppsnet_refinement_forward.11} parent=1 // loop_header
      %s13 = sphi 0, %s17
      %p14 = scmp.ge.s32.totalorder %s13, 4
      %s23 = sphi 0, %s25
      %s26 = sphi 0, %s23
      %s27 = sphi 0, %s26
      %s43 = sphi 0, %s27
      %s47 = sphi 0, %s47
      %s49 = sphi 0, %s47
      %s50 = sphi 0, %s49
      %s64 = sphi 0, %s50
      %s68 = sphi 0, %s68
      %s70 = sphi 0, %s68
      %s71 = sphi 0, %s70
      %s85 = sphi 0, %s71
      %s91 = sphi 0, %s93
      %s94 = sphi 0, %s91
      %s95 = sphi 0, %s94
      %s111 = sphi 0, %s95
      %s117 = sphi 0, %s119
      %s120 = sphi 0, %s117
      %s121 = sphi 0, %s120
      %s137 = sphi 0, %s121
    $region4: #{ppsnet_refinement_forward.11} parent=1 // loop_header_branch
      %16 = sbr.rel (%p14) target = $region8
    $region5: #{ppsnet_refinement_forward.11} parent=1 // loop_body
      %s18 = ssub.s32 %s13, 1
      %s19 = ssub.s32 %s13, 2
      %s20 = sadd.s32 %s13, 1
      %s21 = ssub.s32 %s13, %s20
      %p22 = scmp.eq.s32.totalorder %s21, 0
      %s24 = sadd.s32 %s23, 1
      %s25 = scalar_select %p22, %s23, %s24
      %p28 = pneg %p22
      %p29 = scmp.eq.s32.totalorder %s13, 1
      %p30 = por %p28, %p29
      %p31 = scmp.ne.s32.totalorder %s23, %s26
      %p32 = scmp.eq.s32.totalorder %s13, 0
      %p33 = por %p31, %p32
      %p34 = scmp.ne.s32.totalorder %s23, %s26
      %p35 = scmp.eq.s32.totalorder %s18, 1
      %p36 = por %p34, %p35
      %p37 = scmp.ne.s32.totalorder %s26, %s27
      %p38 = scmp.eq.s32.totalorder %s18, 0
      %p39 = por %p37, %p38
      %p40 = scmp.ne.s32.totalorder %s26, %s27
      %p41 = scmp.eq.s32.totalorder %s19, 1
      %p42 = por %p40, %p41
      %p44 = scmp.ne.s32.totalorder %s27, %s43
      %p45 = scmp.eq.s32.totalorder %s19, 0
      %p46 = por %p44, %p45
      %s48 = sadd.s32 %s47, 1
      %p51 = scmp.eq.s32.totalorder %s13, 1
      %p52 = scmp.ne.s32.totalorder %s47, %s49
      %p53 = scmp.eq.s32.totalorder %s13, 0
      %p54 = por %p52, %p53
      %p55 = scmp.ne.s32.totalorder %s47, %s49
      %p56 = scmp.eq.s32.totalorder %s18, 1
      %p57 = por %p55, %p56
      %p58 = scmp.ne.s32.totalorder %s49, %s50
      %p59 = scmp.eq.s32.totalorder %s18, 0
      %p60 = por %p58, %p59
      %p61 = scmp.ne.s32.totalorder %s49, %s50
      %p62 = scmp.eq.s32.totalorder %s19, 1
      %p63 = por %p61, %p62
      %p65 = scmp.ne.s32.totalorder %s50, %s64
      %p66 = scmp.eq.s32.totalorder %s19, 0
      %p67 = por %p65, %p66
      %s69 = sadd.s32 %s68, 1
      %p72 = scmp.eq.s32.totalorder %s13, 1
      %p73 = scmp.ne.s32.totalorder %s68, %s70
      %p74 = scmp.eq.s32.totalorder %s13, 0
      %p75 = por %p73, %p74
      %p76 = scmp.ne.s32.totalorder %s68, %s70
      %p77 = scmp.eq.s32.totalorder %s18, 1
      %p78 = por %p76, %p77
      %p79 = scmp.ne.s32.totalorder %s70, %s71
      %p80 = scmp.eq.s32.totalorder %s18, 0
      %p81 = por %p79, %p80
      %p82 = scmp.ne.s32.totalorder %s70, %s71
      %p83 = scmp.eq.s32.totalorder %s19, 1
      %p84 = por %p82, %p83
      %p86 = scmp.ne.s32.totalorder %s71, %s85
      %p87 = scmp.eq.s32.totalorder %s19, 0
      %p88 = por %p86, %p87
      %s89 = ssub.s32 %s13, %s20
      %p90 = scmp.eq.s32.totalorder %s89, 0
      %s92 = sadd.s32 %s91, 1
      %s93 = scalar_select %p90, %s91, %s92
      %p96 = pneg %p90
      %p97 = scmp.eq.s32.totalorder %s13, 1
      %p98 = por %p96, %p97
      %p99 = scmp.ne.s32.totalorder %s91, %s94
      %p100 = scmp.eq.s32.totalorder %s13, 0
      %p101 = por %p99, %p100
      %p102 = scmp.ne.s32.totalorder %s91, %s94
      %p103 = scmp.eq.s32.totalorder %s18, 1
      %p104 = por %p102, %p103
      %p105 = scmp.ne.s32.totalorder %s94, %s95
      %p106 = scmp.eq.s32.totalorder %s18, 0
      %p107 = por %p105, %p106
      %p108 = scmp.ne.s32.totalorder %s94, %s95
      %p109 = scmp.eq.s32.totalorder %s19, 1
      %p110 = por %p108, %p109
      %p112 = scmp.ne.s32.totalorder %s95, %s111
      %p113 = scmp.eq.s32.totalorder %s19, 0
      %p114 = por %p112, %p113
      %s115 = ssub.s32 %s13, %s20
      %p116 = scmp.eq.s32.totalorder %s115, 0
      %s118 = sadd.s32 %s117, 1
      %s119 = scalar_select %p116, %s117, %s118
      %p122 = pneg %p116
      %p123 = scmp.eq.s32.totalorder %s13, 1
      %p124 = por %p122, %p123
      %p125 = scmp.ne.s32.totalorder %s117, %s120
      %p126 = scmp.eq.s32.totalorder %s13, 0
      %p127 = por %p125, %p126
      %p128 = scmp.ne.s32.totalorder %s117, %s120
      %p129 = scmp.eq.s32.totalorder %s18, 1
      %p130 = por %p128, %p129
      %p131 = scmp.ne.s32.totalorder %s120, %s121
      %p132 = scmp.eq.s32.totalorder %s18, 0
      %p133 = por %p131, %p132
      %p134 = scmp.ne.s32.totalorder %s120, %s121
      %p135 = scmp.eq.s32.totalorder %s19, 1
      %p136 = por %p134, %p135
      %p138 = scmp.ne.s32.totalorder %s121, %s137
      %p139 = scmp.eq.s32.totalorder %s19, 0
      %p140 = por %p138, %p139
      %p141 = scmp.le.s32.totalorder 1, %s13
      %p142 = scmp.lt.s32.totalorder %s13, 3
      %p143 = pnand %p141, %p142
      %p144 = pneg %p143
      // Predicated region
      $region9: #{ppsnet_refinement_forward.11} parent=5 // pred_check
        _
      $region10: #{ppsnet_refinement_forward.11} parent=5 // pred_check_branch
        %146 = sbr.rel (%p143) target = $region12
      $region11: #{ppsnet_refinement_forward.11} parent=5 // pred_region
        %s147 = ssub.s32 %s13, 1
        // Predicated region
        $region13: #{ppsnet_refinement_forward.11} parent=11 // pred_check
          %p148 = pneg %p60
        $region14: #{ppsnet_refinement_forward.11} parent=11 // pred_check_branch
          %150 = sbr.rel (%p148) target = $region16
        $region15: #{ppsnet_refinement_forward.11} parent=11 // pred_region
          _
        $region16: #{ppsnet_refinement_forward.11} parent=11 // pred_fallthru
          _
        // Predicated region
        $region17: #{ppsnet_refinement_forward.11} parent=11 // pred_check
          %p151 = pneg %p81
        $region18: #{ppsnet_refinement_forward.11} parent=11 // pred_check_branch
          %153 = sbr.rel (%p151) target = $region20
        $region19: #{ppsnet_refinement_forward.11} parent=11 // pred_region
          _
        $region20: #{ppsnet_refinement_forward.11} parent=11 // pred_fallthru
          _
      $region12: #{ppsnet_refinement_forward.11} parent=5 // pred_fallthru
        _
      %p154 = scmp.lt.s32.totalorder %s13, 2
      // Predicated region
      $region21: #{ppsnet_refinement_forward.11} parent=5 // pred_check
        %p155 = pneg %p154
      $region22: #{ppsnet_refinement_forward.11} parent=5 // pred_check_branch
        %157 = sbr.rel (%p155) target = $region24
      $region23: #{ppsnet_refinement_forward.11} parent=5 // pred_region
        // Predicated region
        $region25: #{ppsnet_refinement_forward.11} parent=23 // pred_check
          %p158 = pneg %p33
        $region26: #{ppsnet_refinement_forward.11} parent=23 // pred_check_branch
          %160 = sbr.rel (%p158) target = $region28
        $region27: #{ppsnet_refinement_forward.11} parent=23 // pred_region
          %p161 = scmp.lt.s32.totalorder %s13, 1
          %s162 = scalar_select %p161, %s13, 1
          %s163 = smul.addr %s162, 2
          %s164 = smul.addr %s163, 8
          %s165 = scalar_lea.vmem %s0, %s164
        $region28: #{ppsnet_refinement_forward.11} parent=23 // pred_fallthru
          _
        // Predicated region
        $region29: #{ppsnet_refinement_forward.11} parent=23 // pred_check
          %p166 = pneg %p101
        $region30: #{ppsnet_refinement_forward.11} parent=23 // pred_check_branch
          %168 = sbr.rel (%p166) target = $region32
        $region31: #{ppsnet_refinement_forward.11} parent=23 // pred_region
          %p169 = scmp.lt.s32.totalorder %s13, 1
          %s170 = scalar_select %p169, %s13, 1
          %s171 = smul.addr %s170, 4
          %s172 = smul.addr %s171, 8
          %s173 = scalar_lea.vmem %s3, %s172
        $region32: #{ppsnet_refinement_forward.11} parent=23 // pred_fallthru
          _
      $region24: #{ppsnet_refinement_forward.11} parent=5 // pred_fallthru
        _
      %p174 = scmp.le.s32.totalorder 1, %s13
      %p175 = scmp.lt.s32.totalorder %s13, 3
      %p176 = pnand %p174, %p175
      %p177 = pneg %p176
      // Predicated region
      $region33: #{ppsnet_refinement_forward.11} parent=5 // pred_check
        _
      $region34: #{ppsnet_refinement_forward.11} parent=5 // pred_check_branch
        %179 = sbr.rel (%p176) target = $region36
      $region35: #{ppsnet_refinement_forward.11} parent=5 // pred_region
        %s180 = ssub.s32 %s13, 1
        %p181 = scmp.lt.s32.totalorder %s18, 1
        %s182 = scalar_select %p181, %s18, 1
        %s183 = smul.addr %s182, 2
        %s184 = smul.addr %s183, 8
        %s185 = scalar_lea.vmem %s0, %s184
        %p186 = pneg %p39
        %p187 = pneg %p36
        %p188 = pneg %p60
        %p189 = pneg %p57
        %p190 = pneg %p81
        %p191 = pneg %p78
        %p192 = scmp.lt.s32.totalorder %s18, 1
        %s193 = scalar_select %p192, %s18, 1
        %s194 = smul.addr %s193, 4
        %s195 = smul.addr %s194, 8
        %s196 = scalar_lea.vmem %s3, %s195
        %p197 = pneg %p107
        %p198 = pneg %p104
        %p199 = pneg %p133
        %p200 = pneg %p130
        %s201 = sand.u32 %s120, 1
        %s202 = scalar_lea.sflag [#allocation3], %s201
        %s203 = sand.u32 %s120, 1
        %s204 = smul.addr %s203, 32
        %s205 = scalar_lea.vmem [#allocation2], %s204
        %p206 = scmp.lt.s32.totalorder %s18, 1
        %s207 = scalar_select %p206, %s18, 1
        %s208 = smul.addr %s207, 2
        %s209 = smul.addr %s208, 8
        %s210 = scalar_lea.vmem %s0, %s209
        %p211 = scmp.lt.s32.totalorder %s18, 1
        %s212 = scalar_select %p211, %s18, 1
        %s213 = smul.addr %s212, 4
        %s214 = smul.addr %s213, 8
        %s215 = scalar_lea.vmem %s3, %s214
        %v216 = vld [vmem:[%s210] sm:$0xff]
        %v217 = vld [vmem:[%s210 + $0x8] sm:$0xff]
        %v218 = vld [vmem:[%s1] sm:$0xff]
        %v219 = vld [vmem:[%s1 + $0x8] sm:$0xff]
        %v220 = vld [vmem:[%s1 + $0x10] sm:$0xff]
        %v221 = vld [vmem:[%s1 + $0x18] sm:$0xff]
        %vm222 = vcmask 130048
        %v224 = vsel %vm222, %v218, 0
        %v227 = vsel %vm222, %v219, 0
        %v230 = vsel %vm222, %v220, 0
        %v233 = vsel %vm222, %v221, 0
        %235 = vmatprep.subr.mxu0 0.0
        %236 = vmatpush1.msra.mxu0 %v216
        %237 = vmatprep.subr.mxu0 0.0
        %238 = vmatpush1.msra.mxu0 %v217
        %239 = vmatprep.subr.mxu0 0.0
        %240 = vmatpush1.msra.mxu0 0.0
        %241 = vmatprep.subr.mxu0 0.0
        %242 = vmatpush1.msra.mxu0 0.0
        %243 = vmatprep.subr.mxu0 0.0
        %244 = vmatpush1.msra.mxu0 0.0
        %245 = vmatprep.subr.mxu0 0.0
        %246 = vmatpush1.msra.mxu0 0.0
        %247 = vmatprep.subr.mxu0 0.0
        %248 = vmatpush1.msra.mxu0 0.0
        %249 = vmatprep.subr.mxu0 0.0
        %250 = vmatpush1.msra.mxu0 0.0
        %251 = vmatprep.subr.mxu0 0.0
        %252 = vmatpush1.msra.mxu0 0.0
        %253 = vmatprep.subr.mxu0 0.0
        %254 = vmatpush1.msra.mxu0 0.0
        %255 = vmatprep.subr.mxu0 0.0
        %256 = vmatpush1.msra.mxu0 0.0
        %257 = vmatprep.subr.mxu0 0.0
        %258 = vmatpush1.msra.mxu0 0.0
        %259 = vmatprep.subr.mxu0 0.0
        %260 = vmatpush1.msra.mxu0 0.0
        %261 = vmatprep.subr.mxu0 0.0
        %262 = vmatpush1.msra.mxu0 0.0
        %263 = vmatprep.subr.mxu0 0.0
        %264 = vmatpush1.msra.mxu0 0.0
        %265 = vmatprep.subr.mxu0 0.0
        %266 = vmatpush1.msra.mxu0 0.0
        %267 = vmatprep.subr.mxu0 0.0
        %268 = vmatpush1.msra.mxu0 0.0
        %269 = vmatprep.subr.mxu0 0.0
        %270 = vmatpush1.msra.mxu0 0.0
        %271 = vmatprep.subr.mxu0 0.0
        %272 = vmatpush1.msra.mxu0 0.0
        %273 = vmatprep.subr.mxu0 0.0
        %274 = vmatpush1.msra.mxu0 0.0
        %275 = vmatprep.subr.mxu0 0.0
        %276 = vmatpush1.msra.mxu0 0.0
        %277 = vmatprep.subr.mxu0 0.0
        %278 = vmatpush1.msra.mxu0 0.0
        %279 = vmatprep.subr.mxu0 0.0
        %280 = vmatpush1.msra.mxu0 0.0
        %281 = vmatprep.subr.mxu0 0.0
        %282 = vmatpush1.msra.mxu0 0.0
        %283 = vmatprep.subr.mxu0 0.0
        %284 = vmatpush1.msra.mxu0 0.0
        %285 = vmatprep.subr.mxu0 0.0
        %286 = vmatpush1.msra.mxu0 0.0
        %287 = vmatprep.subr.mxu0 0.0
        %288 = vmatpush1.msra.mxu0 0.0
        %289 = vmatprep.subr.mxu0 0.0
        %290 = vmatpush1.msra.mxu0 0.0
        %291 = vmatprep.subr.mxu0 0.0
        %292 = vmatpush1.msra.mxu0 0.0
        %293 = vmatprep.subr.mxu0 0.0
        %294 = vmatpush1.msra.mxu0 0.0
        %295 = vmatprep.subr.mxu0 0.0
        %296 = vmatpush1.msra.mxu0 0.0
        %297 = vmatprep.subr.mxu0 0.0
        %298 = vmatpush1.msra.mxu0 0.0
        %299 = vmatprep.mubr.f32.mxu0 0.0
        %300 = vmatmul.mubr.f32.gmra.mrb[0].mxu0 %v224
        %v301 = vpop.f32.mrb[0].mxu0
        %v302 = vadd.f32 0.0, %v301
        %v303 = vpop.f32.mrb[0].mxu0
        %304 = vmatprep.mubr.f32.mxu0 0.0
        %305 = vmatmul.mubr.f32.gmra.mrb[0].mxu0 %v227
        %v306 = vpop.f32.mrb[0].mxu0
        %v307 = vadd.f32 0.0, %v306
        %v308 = vpop.f32.mrb[0].mxu0
        %309 = vmatprep.mubr.f32.mxu0 0.0
        %310 = vmatmul.mubr.f32.gmra.mrb[0].mxu0 %v230
        %v311 = vpop.f32.mrb[0].mxu0
        %v312 = vadd.f32 0.0, %v311
        %v313 = vpop.f32.mrb[0].mxu0
        %314 = vmatprep.mubr.f32.mxu0 0.0
        %315 = vmatmul.mubr.f32.gmra.mrb[0].mxu0 %v233
        %v316 = vpop.f32.mrb[0].mxu0
        %v317 = vadd.f32 0.0, %v316
        %v318 = vpop.f32.mrb[0].mxu0
        %319 = vdwg.mxu0
        %v320 = vld [vmem:[%s2] sm:$0xff]
        %v321 = vld [vmem:[%s2 + $0x8] sm:$0xff]
        %v322 = vld [vmem:[%s215] sm:$0xff]
        %v323 = vld [vmem:[%s215 + $0x8] sm:$0xff]
        %v324 = vld [vmem:[%s215 + $0x10] sm:$0xff]
        %v325 = vld [vmem:[%s215 + $0x18] sm:$0xff]
        %v327 = vsel %vm222, %v302, 0
        %v330 = vsel %vm222, %v307, 0
        %v333 = vsel %vm222, %v312, 0
        %v336 = vsel %vm222, %v317, 0
        %338 = vmatprep.subr.mxu0 0.0
        %339 = vmatpush1.msra.mxu0 %v320
        %340 = vmatprep.subr.mxu0 0.0
        %341 = vmatpush1.msra.mxu0 %v321
        %342 = vmatprep.subr.mxu0 0.0
        %343 = vmatpush1.msra.mxu0 0.0
        %344 = vmatprep.subr.mxu0 0.0
        %345 = vmatpush1.msra.mxu0 0.0
        %346 = vmatprep.subr.mxu0 0.0
        %347 = vmatpush1.msra.mxu0 0.0
        %348 = vmatprep.subr.mxu0 0.0
        %349 = vmatpush1.msra.mxu0 0.0
        %350 = vmatprep.subr.mxu0 0.0
        %351 = vmatpush1.msra.mxu0 0.0
        %352 = vmatprep.subr.mxu0 0.0
        %353 = vmatpush1.msra.mxu0 0.0
        %354 = vmatprep.subr.mxu0 0.0
        %355 = vmatpush1.msra.mxu0 0.0
        %356 = vmatprep.subr.mxu0 0.0
        %357 = vmatpush1.msra.mxu0 0.0
        %358 = vmatprep.subr.mxu0 0.0
        %359 = vmatpush1.msra.mxu0 0.0
        %360 = vmatprep.subr.mxu0 0.0
        %361 = vmatpush1.msra.mxu0 0.0
        %362 = vmatprep.subr.mxu0 0.0
        %363 = vmatpush1.msra.mxu0 0.0
        %364 = vmatprep.subr.mxu0 0.0
        %365 = vmatpush1.msra.mxu0 0.0
        %366 = vmatprep.subr.mxu0 0.0
        %367 = vmatpush1.msra.mxu0 0.0
        %368 = vmatprep.subr.mxu0 0.0
        %369 = vmatpush1.msra.mxu0 0.0
        %370 = vmatprep.subr.mxu0 0.0
        %371 = vmatpush1.msra.mxu0 0.0
        %372 = vmatprep.subr.mxu0 0.0
        %373 = vmatpush1.msra.mxu0 0.0
        %374 = vmatprep.subr.mxu0 0.0
        %375 = vmatpush1.msra.mxu0 0.0
        %376 = vmatprep.subr.mxu0 0.0
        %377 = vmatpush1.msra.mxu0 0.0
        %378 = vmatprep.subr.mxu0 0.0
        %379 = vmatpush1.msra.mxu0 0.0
        %380 = vmatprep.subr.mxu0 0.0
        %381 = vmatpush1.msra.mxu0 0.0
        %382 = vmatprep.subr.mxu0 0.0
        %383 = vmatpush1.msra.mxu0 0.0
        %384 = vmatprep.subr.mxu0 0.0
        %385 = vmatpush1.msra.mxu0 0.0
        %386 = vmatprep.subr.mxu0 0.0
        %387 = vmatpush1.msra.mxu0 0.0
        %388 = vmatprep.subr.mxu0 0.0
        %389 = vmatpush1.msra.mxu0 0.0
        %390 = vmatprep.subr.mxu0 0.0
        %391 = vmatpush1.msra.mxu0 0.0
        %392 = vmatprep.subr.mxu0 0.0
        %393 = vmatpush1.msra.mxu0 0.0
        %394 = vmatprep.subr.mxu0 0.0
        %395 = vmatpush1.msra.mxu0 0.0
        %396 = vmatprep.subr.mxu0 0.0
        %397 = vmatpush1.msra.mxu0 0.0
        %398 = vmatprep.subr.mxu0 0.0
        %399 = vmatpush1.msra.mxu0 0.0
        %400 = vmatprep.subr.mxu0 0.0
        %401 = vmatpush1.msra.mxu0 0.0
        %402 = vmatprep.mubr.f32.mxu0 0.0
        %403 = vmatmul.mubr.f32.gmra.mrb[0].mxu0 %v327
        %v404 = vpop.f32.mrb[0].mxu0
        %v405 = vadd.f32 %v322, %v404
        %v406 = vpop.f32.mrb[0].mxu0
        %407 = vmatprep.mubr.f32.mxu0 0.0
        %408 = vmatmul.mubr.f32.gmra.mrb[0].mxu0 %v330
        %v409 = vpop.f32.mrb[0].mxu0
        %v410 = vadd.f32 %v323, %v409
        %v411 = vpop.f32.mrb[0].mxu0
        %412 = vmatprep.mubr.f32.mxu0 0.0
        %413 = vmatmul.mubr.f32.gmra.mrb[0].mxu0 %v333
        %v414 = vpop.f32.mrb[0].mxu0
        %v415 = vadd.f32 %v324, %v414
        %v416 = vpop.f32.mrb[0].mxu0
        %417 = vmatprep.mubr.f32.mxu0 0.0
        %418 = vmatmul.mubr.f32.gmra.mrb[0].mxu0 %v336
        %v419 = vpop.f32.mrb[0].mxu0
        %v420 = vadd.f32 %v325, %v419
        %v421 = vpop.f32.mrb[0].mxu0
        %422 = vdwg.mxu0
        %vm423 = vcmask 261120
        %424 = vst.msk [vmem:[%s205] sm:$0xff] %vm423, %v405
        %425 = vst.msk [vmem:[%s205 + $0x8] sm:$0xff] %vm423, %v410
        %426 = vst.msk [vmem:[%s205 + $0x10] sm:$0xff] %vm423, %v415
        %427 = vst.msk [vmem:[%s205 + $0x18] sm:$0xff] %vm423, %v420
        %s428 = sand.u32 %s120, 1
        %s429 = scalar_lea.sflag [#allocation3], %s428
        %s430 = sand.u32 %s120, 1
        %s431 = smul.addr %s430, 32
        %s432 = scalar_lea.vmem [#allocation2], %s431
        // Predicated region
        $region37: #{ppsnet_refinement_forward.11} parent=35 // pred_check
          %p433 = pneg %p130
        $region38: #{ppsnet_refinement_forward.11} parent=35 // pred_check_branch
          %435 = sbr.rel (%p433) target = $region40
        $region39: #{ppsnet_refinement_forward.11} parent=35 // pred_region
          %s437 = ssub.s32 512, 512
          %438 = vsyncadd %s429, %s437
          %s439 = smul.addr %s18, 4
          %s440 = smul.addr %s439, 128
          %s441 = scalar_lea.hbm %s4, %s440
          %s442 = sshll.u32 %s432, 4
          %s443 = int_to_ptr.vmem [resolvable:$true] %s442
          %448 = dma.vmem_to_hbm [thread:$0]  %s443, 512, %s441, %s429, 128, 128, 8
        $region40: #{ppsnet_refinement_forward.11} parent=35 // pred_fallthru
          _
      $region36: #{ppsnet_refinement_forward.11} parent=5 // pred_fallthru
        _
      %p449 = scmp.le.s32.totalorder 2, %s13
      // Predicated region
      $region41: #{ppsnet_refinement_forward.11} parent=5 // pred_check
        %p450 = pneg %p449
      $region42: #{ppsnet_refinement_forward.11} parent=5 // pred_check_branch
        %452 = sbr.rel (%p450) target = $region44
      $region43: #{ppsnet_refinement_forward.11} parent=5 // pred_region
        %s453 = ssub.s32 %s13, 2
        // Predicated region
        $region45: #{ppsnet_refinement_forward.11} parent=43 // pred_check
          %p454 = pneg %p136
        $region46: #{ppsnet_refinement_forward.11} parent=43 // pred_check_branch
          %456 = sbr.rel (%p454) target = $region48
        $region47: #{ppsnet_refinement_forward.11} parent=43 // pred_region
          %s457 = sand.u32 %s121, 1
          %s458 = scalar_lea.sflag [#allocation3], %s457
          %s459 = sand.u32 %s121, 1
          %s460 = smul.addr %s459, 32
          %s461 = scalar_lea.vmem [#allocation2], %s460
          %462 = dma.done %s458, 512
        $region48: #{ppsnet_refinement_forward.11} parent=43 // pred_fallthru
          _
      $region44: #{ppsnet_refinement_forward.11} parent=5 // pred_fallthru
        _
    $region6: #{ppsnet_refinement_forward.11} parent=1 // loop_footer
      %s17 = sadd.s32 1, %s13
    $region7: #{ppsnet_refinement_forward.11} parent=1 // loop_footer_branch
      %12 = sbr.rel target = $region3
    $region8: #{ppsnet_refinement_forward.11} parent=1 // loop_exit
      _
    %463 = vsyncpa [#allocation3], 1
    %s464 = scalar_lea.sflag [#allocation3], 1
    %465 = vsyncpa %s464, 1

</llo_original>
